<compile_context>
chip_gen: v6e
topology: v6e:2x2x1
jax: 0.10.0
libtpu: 0.0.40
codegen_flags: <defaults>
</compile_context>

<pallas_src>
import math

import jax
import jax.numpy as jnp
from jax import lax
from jax.experimental import pallas as pl
from jax.experimental.pallas import tpu as pltpu

LOG_2PI = math.log(2.0 * math.pi)

# softplus(_RHO_PAD) == 1  =>  padded weight elements (mu=0, eps=0, rho=_RHO_PAD)
# contribute exactly 0 to the prior partial (w == 0) and ~0 (+/- 1 ulp of
# log(1.0)) to the posterior partial.  Only used when OUT/IN are not multiples
# of 128; the demo shapes need no padding at all.
_RHO_PAD = math.log(math.e - 1.0)


def _round_up(x, m):
    return ((x + m - 1) // m) * m


def _largest_divisor_tile(total, cap):
    """Largest multiple of 128 that divides `total` (itself a 128-multiple), <= cap."""
    cap = max(128, min(cap, total))
    cap -= cap % 128
    for t in range(cap, 0, -128):
        if total % t == 0:
            return t
    return 128  # unreachable: 128 always divides `total`


def _stable_softplus(x):
    # log(1 + exp(x)) without overflow/underflow; matches torch semantics.
    return jnp.maximum(x, 0.0) + jnp.log1p(jnp.exp(-jnp.abs(x)))


def _pad2(a, rows, cols, val=0.0):
    pr = rows - a.shape[0]
    pc = cols - a.shape[1]
    if pr == 0 and pc == 0:
        return a
    return jnp.pad(a, ((0, pr), (0, pc)), constant_values=val)


def _make_kernel(neg_half_inv_ps2):
    neg_half_inv_ps2 = float(neg_half_inv_ps2)

    def kernel(x_ref, wmu_ref, wrho_ref, weps_ref,
               y_ref, prior_ref, post_ref, acc_ref):
        k = pl.program_id(1)
        nk = pl.num_programs(1)

        @pl.when(k == 0)
        def _init():
            acc_ref[...] = jnp.zeros_like(acc_ref)
            prior_ref[...] = jnp.zeros_like(prior_ref)
            post_ref[...] = jnp.zeros_like(post_ref)

        # ---- reparameterized weight sample for this (tn, tk) tile ----
        rho = wrho_ref[...]
        w_eps = weps_ref[...]
        sp_tail = jnp.log1p(jnp.exp(-jnp.abs(rho)))         # shared EUP work
        w_sigma = jnp.maximum(rho, 0.0) + sp_tail
        w = wmu_ref[...] + w_sigma * w_eps

        # ---- MXU: acc += x_blk @ w_blk^T (contract on IN; OUT stays lane-dense)
        acc_ref[...] += lax.dot_general(
            x_ref[...], w,
            dimension_numbers=(((1,), (1,)), ((), ())),
            preferred_element_type=jnp.float32)

        # ---- log-prob partial sums for this tile ----
        # prior: -0.5 * (w / prior_sigma)^2
        # post : -0.5 * eps^2 - log(sigma)        since (w - mu)/sigma == eps
        # With the default tk == IN_p there is a single k step per OUT tile, so
        # these cross-lane reductions run exactly once per n tile.
        prior_part = neg_half_inv_ps2 * jnp.sum(w * w)
        post_part = jnp.sum(-0.5 * (w_eps * w_eps) - jnp.log(w_sigma))
        prior_ref[...] += prior_part
        post_ref[...] += post_part

        @pl.when(k == nk - 1)
        def _finalize():
            y_ref[...] = acc_ref[...].astype(y_ref.dtype)

    return kernel


def linear_bbb_forward(x, w_mu, w_rho, w_eps, b_mu, b_rho, b_eps, prior_var=1.0,
                       *, max_tn=512, vmem_budget=28 * 1024 * 1024):
    """Pallas forward of Linear_BBB. Returns (y, log_prior, log_post).

    Note: as in the PyTorch module, `prior_var` is passed straight to
    Normal(0, prior_var), i.e. it is used as the *scale* (std), not variance.
    This is intentional and matches the reference; do not "fix" it.
    """
    B, IN = x.shape
    OUT, IN2 = w_mu.shape
    assert IN2 == IN
    prior_sigma = float(prior_var)
    neg_half_inv_ps2 = -0.5 / (prior_sigma * prior_sigma)
    f32 = jnp.float32

    B_p = _round_up(B, 8)
    OUT_p = _round_up(OUT, 128)
    IN_p = _round_up(IN, 128)

    # ---- tile selection: divisors of the rounded dims, no padding inflation ----
    # Guarantee gn >= 2 whenever OUT_p >= 256 so the "parallel" axis can split
    # across two TensorCores.
    tn_cap = OUT_p // 2 if OUT_p >= 256 else OUT_p
    tn = _largest_divisor_tile(OUT_p, min(max_tn, tn_cap))

    def fits(tn_, tk_):
        w_bytes = 3 * 2 * tn_ * tk_ * 4          # 3 weight streams, double-buffered
        x_bytes = 2 * B_p * tk_ * 4
        y_bytes = 2 * B_p * tn_ * 4
        acc_bytes = B_p * tn_ * 4
        misc = 4 * 2 * 8 * 128 * 4
        return w_bytes + x_bytes + y_bytes + acc_bytes + misc <= vmem_budget

    if fits(tn, IN_p):
        tk = IN_p                                 # single reduction step
    else:
        tk = 128
        for cand in range(IN_p, 0, -128):
            if IN_p % cand == 0 and fits(tn, cand):
                tk = cand
                break

    gn = OUT_p // tn
    gk = IN_p // tk

    # ---- pad only when strictly necessary (demo shapes: no pads at all) ----
    x_p = _pad2(x.astype(f32), B_p, IN_p)
    wmu_p = _pad2(w_mu.astype(f32), OUT_p, IN_p)
    wrho_p = _pad2(w_rho.astype(f32), OUT_p, IN_p, _RHO_PAD)
    weps_p = _pad2(w_eps.astype(f32), OUT_p, IN_p)

    kernel = _make_kernel(neg_half_inv_ps2)

    grid_spec = pltpu.PrefetchScalarGridSpec(
        num_scalar_prefetch=0,
        grid=(gn, gk),
        in_specs=[
            # x block index is (0, k): constant over n, and constant over the
            # whole grid when gk == 1 -> DMA'd exactly once.
            pl.BlockSpec((B_p, tk), lambda n, k: (0, k)),      # x
            pl.BlockSpec((tn, tk), lambda n, k: (n, k)),       # w_mu
            pl.BlockSpec((tn, tk), lambda n, k: (n, k)),       # w_rho
            pl.BlockSpec((tn, tk), lambda n, k: (n, k)),       # w_eps
        ],
        out_specs=[
            pl.BlockSpec((B_p, tn), lambda n, k: (0, n)),      # y (lane-dense)
            pl.BlockSpec((1, 8, 128), lambda n, k: (n, 0, 0)),  # prior partials
            pl.BlockSpec((1, 8, 128), lambda n, k: (n, 0, 0)),  # post partials
        ],
        scratch_shapes=[pltpu.VMEM((B_p, tn), jnp.float32)],   # y accumulator
    )

    y_p, prior_partials, post_partials = pl.pallas_call(
        kernel,
        out_shape=(
            jax.ShapeDtypeStruct((B_p, OUT_p), f32),
            jax.ShapeDtypeStruct((gn, 8, 128), f32),
            jax.ShapeDtypeStruct((gn, 8, 128), f32),
        ),
        grid_spec=grid_spec,
        compiler_params=pltpu.CompilerParams(
            dimension_semantics=("parallel", "arbitrary"),
            vmem_limit_bytes=48 * 1024 * 1024),
    )(x_p, wmu_p, wrho_p, weps_p)

    # ---- bias path (O(OUT)) handled in plain JAX: no kernel streams needed ----
    b_rho = b_rho.astype(f32)
    b_eps = b_eps.astype(f32)
    b_sigma = _stable_softplus(b_rho)
    b = b_mu.astype(f32) + b_sigma * b_eps

    y = y_p[:B, :OUT] + b[None, :]

    # Hoisted per-element constants over the REAL (unpadded) element counts.
    n_total = OUT * IN + OUT
    prior_const = n_total * (-math.log(prior_sigma) - 0.5 * LOG_2PI)
    post_const = n_total * (-0.5 * LOG_2PI)

    prior_b = neg_half_inv_ps2 * jnp.sum(b * b)
    post_b = jnp.sum(-0.5 * (b_eps * b_eps) - jnp.log(b_sigma))

    log_prior = jnp.sum(prior_partials[:, 0, 0]) + prior_b + prior_const
    log_post = jnp.sum(post_partials[:, 0, 0]) + post_b + post_const
    return y, log_prior, log_post


def reference_forward(x, w_mu, w_rho, w_eps, b_mu, b_rho, b_eps, prior_var=1.0):
    """Pure-JAX reference mirroring the PyTorch forward exactly."""
    w_sigma = jnp.log(1.0 + jnp.exp(w_rho))
    w = w_mu + w_sigma * w_eps
    b_sigma = jnp.log(1.0 + jnp.exp(b_rho))
    b = b_mu + b_sigma * b_eps

    def log_prob(v, mu, sigma):
        z = (v - mu) / sigma
        return -0.5 * z * z - jnp.log(sigma) - 0.5 * LOG_2PI

    lp = jnp.sum(log_prob(w, 0.0, prior_var)) + jnp.sum(log_prob(b, 0.0, prior_var))
    lq = (jnp.sum(log_prob(w, w_mu, w_sigma)) +
          jnp.sum(log_prob(b, b_mu, b_sigma)))
    y = x @ w.T + b
    return y, lp, lq


if __name__ == "__main__":
    # Small shapes, already 128-aligned (no padding path), exercising gn=3, gk=1.
    B, IN, OUT = 16, 640, 384
    prior_var = 1.0

    key = jax.random.PRNGKey(0)
    kx, kwm, kwr, kbm, kbr, kwe, kbe = jax.random.split(key, 7)

    # Deterministic "parameters" matching Linear_BBB.__init__ distributions.
    x = jax.random.normal(kx, (B, IN), dtype=jnp.float32)
    w_mu = jax.random.uniform(kwm, (OUT, IN), minval=-0.05, maxval=0.05, dtype=jnp.float32)
    w_rho = jax.random.uniform(kwr, (OUT, IN), minval=-2.0, maxval=-1.0, dtype=jnp.float32)
    b_mu = jax.random.uniform(kbm, (OUT,), minval=-0.05, maxval=0.05, dtype=jnp.float32)
    b_rho = jax.random.uniform(kbr, (OUT,), minval=-2.0, maxval=-1.0, dtype=jnp.float32)

    # Epsilon samples (the Normal(0,1).sample(...) calls inside torch forward).
    w_eps = jax.random.normal(kwe, (OUT, IN), dtype=jnp.float32)
    b_eps = jax.random.normal(kbe, (OUT,), dtype=jnp.float32)

    y, log_prior, log_post = jax.block_until_ready(
        linear_bbb_forward(x, w_mu, w_rho, w_eps, b_mu, b_rho, b_eps, prior_var)
    )

    y_ref, lp_ref, lq_ref = reference_forward(
        x, w_mu, w_rho, w_eps, b_mu, b_rho, b_eps, prior_var
    )

    assert y.shape == (B, OUT)
    assert bool(jnp.all(jnp.isfinite(y)))
    assert jnp.allclose(y, y_ref, atol=2e-3, rtol=2e-3)
    assert jnp.allclose(log_prior, lp_ref, rtol=3e-4, atol=5.0)
    assert jnp.allclose(log_post, lq_ref, rtol=3e-4, atol=5.0)

    print("KERNEL_OK")
</pallas_src>

<mosaic_0001>
module attributes {stable_mosaic.version = 11 : i64} {
  func.func @kernel(%arg0: i32, %arg1: i32, %arg2: memref<16x640xf32, #tpu.memory_space<vmem>>, %arg3: memref<128x640xf32, #tpu.memory_space<vmem>>, %arg4: memref<128x640xf32, #tpu.memory_space<vmem>>, %arg5: memref<128x640xf32, #tpu.memory_space<vmem>>, %arg6: memref<16x128xf32, #tpu.memory_space<vmem>>, %arg7: memref<1x8x128xf32, #tpu.memory_space<vmem>>, %arg8: memref<1x8x128xf32, #tpu.memory_space<vmem>>, %arg9: memref<16x128xf32, #tpu.memory_space<vmem>>) attributes {dimension_semantics = [#tpu.dimension_semantics<parallel>, #tpu.dimension_semantics<arbitrary>], iteration_bounds = array<i64: 3, 1>, scalar_prefetch = 0 : i64, scratch_operands = 1 : i64, tpu.core_type = #tpu.core_type<tc>, window_params = [{transform_indices = @transform_0, window_bounds = array<i64: 16, 640>}, {transform_indices = @transform_1, window_bounds = array<i64: 128, 640>}, {transform_indices = @transform_2, window_bounds = array<i64: 128, 640>}, {transform_indices = @transform_3, window_bounds = array<i64: 128, 640>}, {transform_indices = @transform_4, window_bounds = array<i64: 16, 128>}, {transform_indices = @transform_5, window_bounds = array<i64: 1, 8, 128>}, {transform_indices = @transform_6, window_bounds = array<i64: 1, 8, 128>}]} {
    %c0_i32 = arith.constant 0 : i32
    %0 = arith.cmpi eq, %arg1, %c0_i32 : i32
    %1 = arith.extui %0 : i1 to i32
    %c0_i32_0 = arith.constant 0 : i32
    %2 = arith.cmpi ne, %1, %c0_i32_0 : i32
    scf.if %2 {
      %cst_32 = arith.constant 0.000000e+00 : f32
      %47 = vector.broadcast %cst_32 : f32 to vector<16x128xf32>
      %c0_33 = arith.constant 0 : index
      %c0_34 = arith.constant 0 : index
      %48 = vector.load %arg9[%c0_33, %c0_34] : memref<16x128xf32, #tpu.memory_space<vmem>>, vector<16x128xf32>
      tpu.vector_store %arg9[%c0_33, %c0_34], %47 {strides = array<i32>} : memref<16x128xf32, #tpu.memory_space<vmem>>, vector<16x128xf32>,
      %cst_35 = arith.constant 0.000000e+00 : f32
      %49 = vector.broadcast %cst_35 : f32 to vector<1x8x128xf32>
      %c0_36 = arith.constant 0 : index
      %c0_37 = arith.constant 0 : index
      %c0_38 = arith.constant 0 : index
      %50 = vector.load %arg7[%c0_36, %c0_37, %c0_38] : memref<1x8x128xf32, #tpu.memory_space<vmem>>, vector<1x8x128xf32>
      tpu.vector_store %arg7[%c0_36, %c0_37, %c0_38], %49 {strides = array<i32>} : memref<1x8x128xf32, #tpu.memory_space<vmem>>, vector<1x8x128xf32>,
      %cst_39 = arith.constant 0.000000e+00 : f32
      %51 = vector.broadcast %cst_39 : f32 to vector<1x8x128xf32>
      %c0_40 = arith.constant 0 : index
      %c0_41 = arith.constant 0 : index
      %c0_42 = arith.constant 0 : index
      %52 = vector.load %arg8[%c0_40, %c0_41, %c0_42] : memref<1x8x128xf32, #tpu.memory_space<vmem>>, vector<1x8x128xf32>
      tpu.vector_store %arg8[%c0_40, %c0_41, %c0_42], %51 {strides = array<i32>} : memref<1x8x128xf32, #tpu.memory_space<vmem>>, vector<1x8x128xf32>,
    } else {
    }
    %c0 = arith.constant 0 : index
    %c0_1 = arith.constant 0 : index
    %3 = vector.load %arg4[%c0, %c0_1] : memref<128x640xf32, #tpu.memory_space<vmem>>, vector<128x640xf32>
    %c0_2 = arith.constant 0 : index
    %c0_3 = arith.constant 0 : index
    %4 = vector.load %arg5[%c0_2, %c0_3] : memref<128x640xf32, #tpu.memory_space<vmem>>, vector<128x640xf32>
    %5 = math.absf %3 : vector<128x640xf32>
    %cst = arith.constant 0.000000e+00 : f32
    %6 = vector.broadcast %cst : f32 to vector<128x640xf32>
    %7 = arith.subf %6, %5 : vector<128x640xf32>
    %8 = math.exp %7 : vector<128x640xf32>
    %9 = math.log1p %8 : vector<128x640xf32>
    %cst_4 = arith.constant 0.000000e+00 : f32
    %10 = vector.broadcast %cst_4 : f32 to vector<128x640xf32>
    %11 = arith.maximumf %3, %10 : vector<128x640xf32>
    %12 = arith.addf %11, %9 : vector<128x640xf32>
    %c0_5 = arith.constant 0 : index
    %c0_6 = arith.constant 0 : index
    %13 = vector.load %arg3[%c0_5, %c0_6] : memref<128x640xf32, #tpu.memory_space<vmem>>, vector<128x640xf32>
    %14 = arith.mulf %12, %4 : vector<128x640xf32>
    %15 = arith.addf %13, %14 : vector<128x640xf32>
    %c0_7 = arith.constant 0 : index
    %c0_8 = arith.constant 0 : index
    %16 = vector.load %arg9[%c0_7, %c0_8] : memref<16x128xf32, #tpu.memory_space<vmem>>, vector<16x128xf32>
    %c0_9 = arith.constant 0 : index
    %c0_10 = arith.constant 0 : index
    %17 = vector.load %arg2[%c0_9, %c0_10] : memref<16x640xf32, #tpu.memory_space<vmem>>, vector<16x640xf32>
    %cst_11 = arith.constant dense<0.000000e+00> : vector<16x128xf32>
    %18 = tpu.matmul %17, %15, %cst_11 {dimension_numbers = #tpu.dot_dimension_numbers<[1], [1], [0], [0], [0, 0, 1, 0], [], []>} : vector<16x640xf32>, vector<128x640xf32>, vector<16x128xf32> -> vector<16x128xf32>
    %19 = arith.addf %16, %18 : vector<16x128xf32>
    %c0_12 = arith.constant 0 : index
    %c0_13 = arith.constant 0 : index
    %20 = vector.load %arg9[%c0_12, %c0_13] : memref<16x128xf32, #tpu.memory_space<vmem>>, vector<16x128xf32>
    tpu.vector_store %arg9[%c0_12, %c0_13], %19 {strides = array<i32>} : memref<16x128xf32, #tpu.memory_space<vmem>>, vector<16x128xf32>,
    %21 = arith.mulf %15, %15 : vector<128x640xf32>
    %22 = vector.shape_cast %21 : vector<128x640xf32> to vector<1x128x640xf32>
    %cst_14 = arith.constant dense<0.000000e+00> : vector<1xf32>
    %23 = vector.multi_reduction <add>, %22, %cst_14 [1, 2] : vector<1x128x640xf32> to vector<1xf32>
    %24 = vector.shape_cast %23 : vector<1xf32> to vector<1x1x1xf32>
    %25 = vector.extract %24[0, 0, 0] : f32 from vector<1x1x1xf32>
    %cst_15 = arith.constant -5.000000e-01 : f32
    %26 = arith.mulf %cst_15, %25 : f32
    %27 = arith.mulf %4, %4 : vector<128x640xf32>
    %cst_16 = arith.constant -5.000000e-01 : f32
    %28 = vector.broadcast %cst_16 : f32 to vector<128x640xf32>
    %29 = arith.mulf %28, %27 : vector<128x640xf32>
    %30 = math.log %12 : vector<128x640xf32>
    %31 = arith.subf %29, %30 : vector<128x640xf32>
    %32 = vector.shape_cast %31 : vector<128x640xf32> to vector<1x128x640xf32>
    %cst_17 = arith.constant dense<0.000000e+00> : vector<1xf32>
    %33 = vector.multi_reduction <add>, %32, %cst_17 [1, 2] : vector<1x128x640xf32> to vector<1xf32>
    %34 = vector.shape_cast %33 : vector<1xf32> to vector<1x1x1xf32>
    %35 = vector.extract %34[0, 0, 0] : f32 from vector<1x1x1xf32>
    %c0_18 = arith.constant 0 : index
    %c0_19 = arith.constant 0 : index
    %c0_20 = arith.constant 0 : index
    %36 = vector.load %arg7[%c0_18, %c0_19, %c0_20] : memref<1x8x128xf32, #tpu.memory_space<vmem>>, vector<1x8x128xf32>
    %37 = vector.broadcast %26 : f32 to vector<1x8x128xf32>
    %38 = arith.addf %36, %37 : vector<1x8x128xf32>
    %c0_21 = arith.constant 0 : index
    %c0_22 = arith.constant 0 : index
    %c0_23 = arith.constant 0 : index
    %39 = vector.load %arg7[%c0_21, %c0_22, %c0_23] : memref<1x8x128xf32, #tpu.memory_space<vmem>>, vector<1x8x128xf32>
    tpu.vector_store %arg7[%c0_21, %c0_22, %c0_23], %38 {strides = array<i32>} : memref<1x8x128xf32, #tpu.memory_space<vmem>>, vector<1x8x128xf32>,
    %c0_24 = arith.constant 0 : index
    %c0_25 = arith.constant 0 : index
    %c0_26 = arith.constant 0 : index
    %40 = vector.load %arg8[%c0_24, %c0_25, %c0_26] : memref<1x8x128xf32, #tpu.memory_space<vmem>>, vector<1x8x128xf32>
    %41 = vector.broadcast %35 : f32 to vector<1x8x128xf32>
    %42 = arith.addf %40, %41 : vector<1x8x128xf32>
    %c0_27 = arith.constant 0 : index
    %c0_28 = arith.constant 0 : index
    %c0_29 = arith.constant 0 : index
    %43 = vector.load %arg8[%c0_27, %c0_28, %c0_29] : memref<1x8x128xf32, #tpu.memory_space<vmem>>, vector<1x8x128xf32>
    tpu.vector_store %arg8[%c0_27, %c0_28, %c0_29], %42 {strides = array<i32>} : memref<1x8x128xf32, #tpu.memory_space<vmem>>, vector<1x8x128xf32>,
    %c0_i32_30 = arith.constant 0 : i32
    %44 = arith.cmpi eq, %arg1, %c0_i32_30 : i32
    %45 = arith.extui %44 : i1 to i32
    %c0_i32_31 = arith.constant 0 : i32
    %46 = arith.cmpi ne, %45, %c0_i32_31 : i32
    scf.if %46 {
      %c0_32 = arith.constant 0 : index
      %c0_33 = arith.constant 0 : index
      %47 = vector.load %arg9[%c0_32, %c0_33] : memref<16x128xf32, #tpu.memory_space<vmem>>, vector<16x128xf32>
      %c0_34 = arith.constant 0 : index
      %c0_35 = arith.constant 0 : index
      %48 = vector.load %arg6[%c0_34, %c0_35] : memref<16x128xf32, #tpu.memory_space<vmem>>, vector<16x128xf32>
      tpu.vector_store %arg6[%c0_34, %c0_35], %47 {strides = array<i32>} : memref<16x128xf32, #tpu.memory_space<vmem>>, vector<16x128xf32>,
    } else {
    }
    return
  }
  func.func @transform_0(%arg0: i32, %arg1: i32) -> (i32, i32) {
    %c0_i32 = arith.constant 0 : i32
    %c0_i32_0 = arith.constant 0 : i32
    return %c0_i32, %arg1 : i32, i32
  }
  func.func @transform_1(%arg0: i32, %arg1: i32) -> (i32, i32) {
    %c0_i32 = arith.constant 0 : i32
    return %arg0, %arg1 : i32, i32
  }
  func.func @transform_2(%arg0: i32, %arg1: i32) -> (i32, i32) {
    %c0_i32 = arith.constant 0 : i32
    return %arg0, %arg1 : i32, i32
  }
  func.func @transform_3(%arg0: i32, %arg1: i32) -> (i32, i32) {
    %c0_i32 = arith.constant 0 : i32
    return %arg0, %arg1 : i32, i32
  }
  func.func @transform_4(%arg0: i32, %arg1: i32) -> (i32, i32) {
    %c0_i32 = arith.constant 0 : i32
    %c0_i32_0 = arith.constant 0 : i32
    return %c0_i32, %arg0 : i32, i32
  }
  func.func @transform_5(%arg0: i32, %arg1: i32) -> (i32, i32, i32) {
    %c0_i32 = arith.constant 0 : i32
    %c0_i32_0 = arith.constant 0 : i32
    %c0_i32_1 = arith.constant 0 : i32
    return %arg0, %c0_i32, %c0_i32_0 : i32, i32, i32
  }
  func.func @transform_6(%arg0: i32, %arg1: i32) -> (i32, i32, i32) {
    %c0_i32 = arith.constant 0 : i32
    %c0_i32_0 = arith.constant 0 : i32
    %c0_i32_1 = arith.constant 0 : i32
    return %arg0, %c0_i32, %c0_i32_0 : i32, i32, i32
  }
}

</mosaic_0001>

<llo_original>
// kernel: tpu_custom_call.1
$region0: #{tpu_custom_call.1}
  #allocation0 [shape = 'u32[]', space=smem, size = 0x4, offset = 0x4, fixed_abs, tag = 'smem constant byte address 0x4 - core index']
  #allocation1 [shape = 'u32[144,128]{1,0:T(1,128)}', space=vmem, size = 0x12000, scoped, tag = 'internal scratch']
  #allocation2 [shape = 'f32[16,128]{1,0:T(8,128)}', space=vmem, size = 0x2000, scoped, tag = 'scratch operand']
  %s0 = inlined_call_operand.hbm [shape: f32[16,640], index: 0, kind: input, shape index: {}]
  %s1 = inlined_call_operand.hbm [shape: f32[384,640], index: 1, kind: input, shape index: {}]
  %s2 = inlined_call_operand.hbm [shape: f32[384,640], index: 2, kind: input, shape index: {}]
  %s3 = inlined_call_operand.hbm [shape: f32[384,640], index: 3, kind: input, shape index: {}]
  %s4 = inlined_call_operand.hbm [shape: f32[16,384], index: 4, kind: output, shape index: {0}]
  %s5 = inlined_call_operand.hbm [shape: f32[3,8,128], index: 5, kind: output, shape index: {1}]
  %s6 = inlined_call_operand.hbm [shape: f32[3,8,128], index: 6, kind: output, shape index: {2}]
  %7 = xla_tuple %s4, %s5, %s6
  %s8 = sld [smem:[#allocation0]]
  $region89: #{tpu_custom_call.1} parent=0
    _
  %s10 = ssub.s32 1, %s8
  %s11 = scalar_select 0, %s10, %s8
  $region1: #{tpu_custom_call.1} parent=0
    #allocation3 [shape = 'u8[40960]{0}', space=vmem, size = 0xa000, scoped, tag = 'input window, operand 0, single buffered']
    #allocation4 [shape = 's32[2]{0}', space=sflag, size = 0x8, scoped, tag = 'scoped memory for tpu_custom_call.1']
    #allocation5 [shape = 's32[2]{0}', space=sflag, size = 0x8, scoped, tag = 'scoped memory for tpu_custom_call.1']
    #allocation6 [shape = 'u8[655360]{0}', space=vmem, size = 0xa0000, scoped, tag = 'input window, operand 1']
    #allocation7 [shape = 's32[2]{0}', space=sflag, size = 0x8, scoped, tag = 'scoped memory for tpu_custom_call.1']
    #allocation8 [shape = 'u8[655360]{0}', space=vmem, size = 0xa0000, scoped, tag = 'input window, operand 2']
    #allocation9 [shape = 'u8[655360]{0}', space=vmem, size = 0xa0000, scoped, tag = 'input window, operand 3']
    #allocation10 [shape = 's32[2]{0}', space=sflag, size = 0x8, scoped, tag = 'scoped memory for tpu_custom_call.1']
    #allocation11 [shape = 'u8[16384]{0}', space=vmem, size = 0x4000, scoped, tag = 'output window, operand 0']
    #allocation12 [shape = 'u8[8192]{0}', space=vmem, size = 0x2000, scoped, tag = 'output window, operand 1']
    #allocation13 [shape = 's32[2]{0}', space=sflag, size = 0x8, scoped, tag = 'scoped memory for tpu_custom_call.1']
    #allocation14 [shape = 'u8[8192]{0}', space=vmem, size = 0x2000, scoped, tag = 'output window, operand 2']
    %12 = vsyncpa [#allocation4], 0
    %13 = vsyncpa [#allocation7], 0
    %s14 = scalar_lea.sflag [#allocation7], 1
    %15 = vsyncpa %s14, 0
    %16 = vsyncpa [#allocation10], 0
    %s17 = scalar_lea.sflag [#allocation10], 1
    %18 = vsyncpa %s17, 0
    %19 = vsyncpa [#allocation5], 0
    %s20 = scalar_lea.sflag [#allocation5], 1
    %21 = vsyncpa %s20, 0
    %22 = vsyncpa [#allocation13], 0
    %s23 = scalar_lea.sflag [#allocation13], 1
    %24 = vsyncpa %s23, 0
    loop: start=0, step=1, limit=5
    $region2: #{tpu_custom_call.1} parent=1 // loop_pre_header
      _
    $region3: #{tpu_custom_call.1} parent=1 // loop_header
      %s26 = sphi 0, %s30
      %p27 = scmp.ge.s32.totalorder %s26, 5
      %s33 = sphi 0, %s45
      %s34 = sphi 0, %s41
      %s35 = sphi 0, %s33
      %s36 = sphi 0, %s34
      %s37 = sphi 0, %s35
      %s38 = sphi 0, %s36
      %s48 = sphi 0, %s50
      %s51 = sphi 0, %s48
      %s52 = sphi 0, %s51
      %s68 = sphi 0, %s52
      %s76 = sphi 0, %s78
      %s79 = sphi 0, %s76
      %s80 = sphi 0, %s79
      %s96 = sphi 0, %s80
      %s104 = sphi 0, %s106
      %s107 = sphi 0, %s104
      %s108 = sphi 0, %s107
      %s124 = sphi 0, %s108
      %s132 = sphi 0, %s134
      %s135 = sphi 0, %s132
      %s136 = sphi 0, %s135
      %s152 = sphi 0, %s136
      %s158 = sphi 0, %s160
      %s161 = sphi 0, %s158
      %s162 = sphi 0, %s161
      %s178 = sphi 0, %s162
      %s184 = sphi 0, %s186
      %s187 = sphi 0, %s184
      %s188 = sphi 0, %s187
      %s204 = sphi 0, %s188
      %s210 = sphi 0, %s212
      %s213 = sphi 0, %s210
      %s214 = sphi 0, %s213
      %s230 = sphi 0, %s214
    $region4: #{tpu_custom_call.1} parent=1 // loop_header_branch
      %29 = sbr.rel (%p27) target = $region8
    $region5: #{tpu_custom_call.1} parent=1 // loop_body
      %s31 = ssub.s32 %s26, 1
      %s32 = ssub.s32 %s26, 2
      %s39 = sadd.s32 1, %s34
      %p40 = scmp.ge.s32.totalorder %s39, 1
      %s41 = scalar_select %p40, 0, %s39
      %s42 = sadd.s32 1, %s33
      %s43 = scalar_select %p40, %s42, %s33
      %p44 = scmp.ge.s32.totalorder %s43, 3
      %s45 = scalar_select %p44, 0, %s43
      %s46 = ssub.s32 %s34, %s41
      %p47 = scmp.eq.s32.totalorder %s46, 0
      %s49 = sadd.s32 %s48, 1
      %s50 = scalar_select %p47, %s48, %s49
      %p53 = pneg %p47
      %p54 = scmp.eq.s32.totalorder %s26, 2
      %p55 = por %p53, %p54
      %p56 = scmp.ne.s32.totalorder %s48, %s51
      %p57 = scmp.eq.s32.totalorder %s26, 0
      %p58 = por %p56, %p57
      %p59 = scmp.ne.s32.totalorder %s48, %s51
      %p60 = scmp.eq.s32.totalorder %s31, 2
      %p61 = por %p59, %p60
      %p62 = scmp.ne.s32.totalorder %s51, %s52
      %p63 = scmp.eq.s32.totalorder %s31, 0
      %p64 = por %p62, %p63
      %p65 = scmp.ne.s32.totalorder %s51, %s52
      %p66 = scmp.eq.s32.totalorder %s32, 2
      %p67 = por %p65, %p66
      %p69 = scmp.ne.s32.totalorder %s52, %s68
      %p70 = scmp.eq.s32.totalorder %s32, 0
      %p71 = por %p69, %p70
      %s72 = ssub.s32 %s33, %s45
      %s73 = ssub.s32 %s34, %s41
      %s74 = sor.u32 %s72, %s73
      %p75 = scmp.eq.s32.totalorder %s74, 0
      %s77 = sadd.s32 %s76, 1
      %s78 = scalar_select %p75, %s76, %s77
      %p81 = pneg %p75
      %p82 = scmp.eq.s32.totalorder %s26, 2
      %p83 = por %p81, %p82
      %p84 = scmp.ne.s32.totalorder %s76, %s79
      %p85 = scmp.eq.s32.totalorder %s26, 0
      %p86 = por %p84, %p85
      %p87 = scmp.ne.s32.totalorder %s76, %s79
      %p88 = scmp.eq.s32.totalorder %s31, 2
      %p89 = por %p87, %p88
      %p90 = scmp.ne.s32.totalorder %s79, %s80
      %p91 = scmp.eq.s32.totalorder %s31, 0
      %p92 = por %p90, %p91
      %p93 = scmp.ne.s32.totalorder %s79, %s80
      %p94 = scmp.eq.s32.totalorder %s32, 2
      %p95 = por %p93, %p94
      %p97 = scmp.ne.s32.totalorder %s80, %s96
      %p98 = scmp.eq.s32.totalorder %s32, 0
      %p99 = por %p97, %p98
      %s100 = ssub.s32 %s33, %s45
      %s101 = ssub.s32 %s34, %s41
      %s102 = sor.u32 %s100, %s101
      %p103 = scmp.eq.s32.totalorder %s102, 0
      %s105 = sadd.s32 %s104, 1
      %s106 = scalar_select %p103, %s104, %s105
      %p109 = pneg %p103
      %p110 = scmp.eq.s32.totalorder %s26, 2
      %p111 = por %p109, %p110
      %p112 = scmp.ne.s32.totalorder %s104, %s107
      %p113 = scmp.eq.s32.totalorder %s26, 0
      %p114 = por %p112, %p113
      %p115 = scmp.ne.s32.totalorder %s104, %s107
      %p116 = scmp.eq.s32.totalorder %s31, 2
      %p117 = por %p115, %p116
      %p118 = scmp.ne.s32.totalorder %s107, %s108
      %p119 = scmp.eq.s32.totalorder %s31, 0
      %p120 = por %p118, %p119
      %p121 = scmp.ne.s32.totalorder %s107, %s108
      %p122 = scmp.eq.s32.totalorder %s32, 2
      %p123 = por %p121, %p122
      %p125 = scmp.ne.s32.totalorder %s108, %s124
      %p126 = scmp.eq.s32.totalorder %s32, 0
      %p127 = por %p125, %p126
      %s128 = ssub.s32 %s33, %s45
      %s129 = ssub.s32 %s34, %s41
      %s130 = sor.u32 %s128, %s129
      %p131 = scmp.eq.s32.totalorder %s130, 0
      %s133 = sadd.s32 %s132, 1
      %s134 = scalar_select %p131, %s132, %s133
      %p137 = pneg %p131
      %p138 = scmp.eq.s32.totalorder %s26, 2
      %p139 = por %p137, %p138
      %p140 = scmp.ne.s32.totalorder %s132, %s135
      %p141 = scmp.eq.s32.totalorder %s26, 0
      %p142 = por %p140, %p141
      %p143 = scmp.ne.s32.totalorder %s132, %s135
      %p144 = scmp.eq.s32.totalorder %s31, 2
      %p145 = por %p143, %p144
      %p146 = scmp.ne.s32.totalorder %s135, %s136
      %p147 = scmp.eq.s32.totalorder %s31, 0
      %p148 = por %p146, %p147
      %p149 = scmp.ne.s32.totalorder %s135, %s136
      %p150 = scmp.eq.s32.totalorder %s32, 2
      %p151 = por %p149, %p150
      %p153 = scmp.ne.s32.totalorder %s136, %s152
      %p154 = scmp.eq.s32.totalorder %s32, 0
      %p155 = por %p153, %p154
      %s156 = ssub.s32 %s33, %s45
      %p157 = scmp.eq.s32.totalorder %s156, 0
      %s159 = sadd.s32 %s158, 1
      %s160 = scalar_select %p157, %s158, %s159
      %p163 = pneg %p157
      %p164 = scmp.eq.s32.totalorder %s26, 2
      %p165 = por %p163, %p164
      %p166 = scmp.ne.s32.totalorder %s158, %s161
      %p167 = scmp.eq.s32.totalorder %s26, 0
      %p168 = por %p166, %p167
      %p169 = scmp.ne.s32.totalorder %s158, %s161
      %p170 = scmp.eq.s32.totalorder %s31, 2
      %p171 = por %p169, %p170
      %p172 = scmp.ne.s32.totalorder %s161, %s162
      %p173 = scmp.eq.s32.totalorder %s31, 0
      %p174 = por %p172, %p173
      %p175 = scmp.ne.s32.totalorder %s161, %s162
      %p176 = scmp.eq.s32.totalorder %s32, 2
      %p177 = por %p175, %p176
      %p179 = scmp.ne.s32.totalorder %s162, %s178
      %p180 = scmp.eq.s32.totalorder %s32, 0
      %p181 = por %p179, %p180
      %s182 = ssub.s32 %s33, %s45
      %p183 = scmp.eq.s32.totalorder %s182, 0
      %s185 = sadd.s32 %s184, 1
      %s186 = scalar_select %p183, %s184, %s185
      %p189 = pneg %p183
      %p190 = scmp.eq.s32.totalorder %s26, 2
      %p191 = por %p189, %p190
      %p192 = scmp.ne.s32.totalorder %s184, %s187
      %p193 = scmp.eq.s32.totalorder %s26, 0
      %p194 = por %p192, %p193
      %p195 = scmp.ne.s32.totalorder %s184, %s187
      %p196 = scmp.eq.s32.totalorder %s31, 2
      %p197 = por %p195, %p196
      %p198 = scmp.ne.s32.totalorder %s187, %s188
      %p199 = scmp.eq.s32.totalorder %s31, 0
      %p200 = por %p198, %p199
      %p201 = scmp.ne.s32.totalorder %s187, %s188
      %p202 = scmp.eq.s32.totalorder %s32, 2
      %p203 = por %p201, %p202
      %p205 = scmp.ne.s32.totalorder %s188, %s204
      %p206 = scmp.eq.s32.totalorder %s32, 0
      %p207 = por %p205, %p206
      %s208 = ssub.s32 %s33, %s45
      %p209 = scmp.eq.s32.totalorder %s208, 0
      %s211 = sadd.s32 %s210, 1
      %s212 = scalar_select %p209, %s210, %s211
      %p215 = pneg %p209
      %p216 = scmp.eq.s32.totalorder %s26, 2
      %p217 = por %p215, %p216
      %p218 = scmp.ne.s32.totalorder %s210, %s213
      %p219 = scmp.eq.s32.totalorder %s26, 0
      %p220 = por %p218, %p219
      %p221 = scmp.ne.s32.totalorder %s210, %s213
      %p222 = scmp.eq.s32.totalorder %s31, 2
      %p223 = por %p221, %p222
      %p224 = scmp.ne.s32.totalorder %s213, %s214
      %p225 = scmp.eq.s32.totalorder %s31, 0
      %p226 = por %p224, %p225
      %p227 = scmp.ne.s32.totalorder %s213, %s214
      %p228 = scmp.eq.s32.totalorder %s32, 2
      %p229 = por %p227, %p228
      %p231 = scmp.ne.s32.totalorder %s214, %s230
      %p232 = scmp.eq.s32.totalorder %s32, 0
      %p233 = por %p231, %p232
      %p234 = scmp.le.s32.totalorder 1, %s26
      %p235 = scmp.lt.s32.totalorder %s26, 4
      %p236 = pnand %p234, %p235
      %p237 = pneg %p236
      // Predicated region
      $region9: #{tpu_custom_call.1} parent=5 // pred_check
        _
      $region10: #{tpu_custom_call.1} parent=5 // pred_check_branch
        %239 = sbr.rel (%p236) target = $region12
      $region11: #{tpu_custom_call.1} parent=5 // pred_region
        %s240 = ssub.s32 %s26, 1
        // Predicated region
        $region13: #{tpu_custom_call.1} parent=11 // pred_check
          %p241 = pneg %p64
        $region14: #{tpu_custom_call.1} parent=11 // pred_check_branch
          %243 = sbr.rel (%p241) target = $region16
        $region15: #{tpu_custom_call.1} parent=11 // pred_region
          %s244 = smul.u32 5, %s36
          %s246 = ssub.s32 1280, 1280
          %247 = vsyncadd [#allocation4], %s246
          %s248 = smul.addr %s244, 128
          %s249 = scalar_lea.hbm %s0, %s248
          %s250 = sshll.u32 [#allocation3], 4
          %s251 = int_to_ptr.vmem [resolvable:$true] %s250
          %256 = dma.hbm_to_vmem [thread:$0]  %s249, 1280, %s251, [#allocation4], 640, 640, 40
        $region16: #{tpu_custom_call.1} parent=11 // pred_fallthru
          _
      $region12: #{tpu_custom_call.1} parent=5 // pred_fallthru
        _
      %p257 = scmp.lt.s32.totalorder %s26, 3
      // Predicated region
      $region17: #{tpu_custom_call.1} parent=5 // pred_check
        %p258 = pneg %p257
      $region18: #{tpu_custom_call.1} parent=5 // pred_check_branch
        %260 = sbr.rel (%p258) target = $region20
      $region19: #{tpu_custom_call.1} parent=5 // pred_region
        // Predicated region
        $region21: #{tpu_custom_call.1} parent=19 // pred_check
          %p261 = pneg %p86
        $region22: #{tpu_custom_call.1} parent=19 // pred_check_branch
          %263 = sbr.rel (%p261) target = $region24
        $region23: #{tpu_custom_call.1} parent=19 // pred_region
          %s264 = sand.u32 %s26, 1
          %s265 = scalar_lea.sflag [#allocation7], %s264
          %s266 = sand.u32 %s76, 1
          %s267 = smul.addr %s266, 640
          %s268 = scalar_lea.vmem [#allocation6], %s267
          %s269 = smul.u32 16, %s33
          %s270 = smul.u32 5, %s34
          %s272 = ssub.s32 10240, 10240
          %273 = vsyncadd %s265, %s272
          %s274 = smul.addr %s269, 5
          %s275 = sadd.s32 %s270, %s274
          %s276 = smul.addr %s275, 128
          %s277 = scalar_lea.hbm %s1, %s276
          %s278 = sshll.u32 %s268, 4
          %s279 = int_to_ptr.vmem [resolvable:$true] %s278
          %284 = dma.hbm_to_vmem [thread:$0]  %s277, 10240, %s279, %s265, 640, 640, 40
        $region24: #{tpu_custom_call.1} parent=19 // pred_fallthru
          _
        // Predicated region
        $region25: #{tpu_custom_call.1} parent=19 // pred_check
          %p285 = pneg %p114
        $region26: #{tpu_custom_call.1} parent=19 // pred_check_branch
          %287 = sbr.rel (%p285) target = $region28
        $region27: #{tpu_custom_call.1} parent=19 // pred_region
          %s288 = sand.u32 %s26, 1
          %s289 = scalar_lea.sflag [#allocation7], %s288
          %s290 = sand.u32 %s104, 1
          %s291 = smul.addr %s290, 640
          %s292 = scalar_lea.vmem [#allocation8], %s291
          %s293 = smul.u32 16, %s33
          %s294 = smul.u32 5, %s34
          %s296 = ssub.s32 10240, 10240
          %297 = vsyncadd %s289, %s296
          %s298 = smul.addr %s293, 5
          %s299 = sadd.s32 %s294, %s298
          %s300 = smul.addr %s299, 128
          %s301 = scalar_lea.hbm %s2, %s300
          %s302 = sshll.u32 %s292, 4
          %s303 = int_to_ptr.vmem [resolvable:$true] %s302
          %308 = dma.hbm_to_vmem [thread:$0]  %s301, 10240, %s303, %s289, 640, 640, 40
        $region28: #{tpu_custom_call.1} parent=19 // pred_fallthru
          _
        // Predicated region
        $region29: #{tpu_custom_call.1} parent=19 // pred_check
          %p309 = pneg %p142
        $region30: #{tpu_custom_call.1} parent=19 // pred_check_branch
          %311 = sbr.rel (%p309) target = $region32
        $region31: #{tpu_custom_call.1} parent=19 // pred_region
          %s312 = sand.u32 %s132, 1
          %s313 = scalar_lea.sflag [#allocation10], %s312
          %s314 = sand.u32 %s132, 1
          %s315 = smul.addr %s314, 640
          %s316 = scalar_lea.vmem [#allocation9], %s315
          %s317 = smul.u32 16, %s33
          %s318 = smul.u32 5, %s34
          %s320 = ssub.s32 10240, 10240
          %321 = vsyncadd %s313, %s320
          %s322 = smul.addr %s317, 5
          %s323 = sadd.s32 %s318, %s322
          %s324 = smul.addr %s323, 128
          %s325 = scalar_lea.hbm %s3, %s324
          %s326 = sshll.u32 %s316, 4
          %s327 = int_to_ptr.vmem [resolvable:$true] %s326
          %332 = dma.hbm_to_vmem [thread:$0]  %s325, 10240, %s327, %s313, 640, 640, 40
        $region32: #{tpu_custom_call.1} parent=19 // pred_fallthru
          _
      $region20: #{tpu_custom_call.1} parent=5 // pred_fallthru
        _
      %p333 = scmp.le.s32.totalorder 1, %s26
      %p334 = scmp.lt.s32.totalorder %s26, 4
      %p335 = pnand %p333, %p334
      %p336 = pneg %p335
      // Predicated region
      $region33: #{tpu_custom_call.1} parent=5 // pred_check
        _
      $region34: #{tpu_custom_call.1} parent=5 // pred_check_branch
        %338 = sbr.rel (%p335) target = $region36
      $region35: #{tpu_custom_call.1} parent=5 // pred_region
        %s339 = ssub.s32 %s26, 1
        // Predicated region
        $region37: #{tpu_custom_call.1} parent=35 // pred_check
          %p340 = pneg %p64
        $region38: #{tpu_custom_call.1} parent=35 // pred_check_branch
          %342 = sbr.rel (%p340) target = $region40
        $region39: #{tpu_custom_call.1} parent=35 // pred_region
          %343 = dma.done [#allocation4], 1280
        $region40: #{tpu_custom_call.1} parent=35 // pred_fallthru
          _
        %s344 = sand.u32 %s31, 1
        %s345 = scalar_lea.sflag [#allocation7], %s344
        %s346 = sand.u32 %s79, 1
        %s347 = smul.addr %s346, 640
        %s348 = scalar_lea.vmem [#allocation6], %s347
        // Predicated region
        $region41: #{tpu_custom_call.1} parent=35 // pred_check
          %p349 = pneg %p92
        $region42: #{tpu_custom_call.1} parent=35 // pred_check_branch
          %351 = sbr.rel (%p349) target = $region44
        $region43: #{tpu_custom_call.1} parent=35 // pred_region
          %352 = dma.done %s345, 10240
        $region44: #{tpu_custom_call.1} parent=35 // pred_fallthru
          _
        %s353 = sand.u32 %s31, 1
        %s354 = scalar_lea.sflag [#allocation7], %s353
        %s355 = sand.u32 %s107, 1
        %s356 = smul.addr %s355, 640
        %s357 = scalar_lea.vmem [#allocation8], %s356
        // Predicated region
        $region45: #{tpu_custom_call.1} parent=35 // pred_check
          %p358 = pneg %p120
        $region46: #{tpu_custom_call.1} parent=35 // pred_check_branch
          %360 = sbr.rel (%p358) target = $region48
        $region47: #{tpu_custom_call.1} parent=35 // pred_region
          %361 = dma.done %s354, 10240
        $region48: #{tpu_custom_call.1} parent=35 // pred_fallthru
          _
        %s362 = sand.u32 %s135, 1
        %s363 = scalar_lea.sflag [#allocation10], %s362
        %s364 = sand.u32 %s135, 1
        %s365 = smul.addr %s364, 640
        %s366 = scalar_lea.vmem [#allocation9], %s365
        // Predicated region
        $region49: #{tpu_custom_call.1} parent=35 // pred_check
          %p367 = pneg %p148
        $region50: #{tpu_custom_call.1} parent=35 // pred_check_branch
          %369 = sbr.rel (%p367) target = $region52
        $region51: #{tpu_custom_call.1} parent=35 // pred_region
          %370 = dma.done %s363, 10240
        $region52: #{tpu_custom_call.1} parent=35 // pred_fallthru
          _
        %p371 = pneg %p64
        %p372 = pneg %p61
        %s373 = sand.u32 %s31, 1
        %s374 = scalar_lea.sflag [#allocation7], %s373
        %s375 = sand.u32 %s79, 1
        %s376 = smul.addr %s375, 640
        %s377 = scalar_lea.vmem [#allocation6], %s376
        %p378 = pneg %p92
        %p379 = pneg %p89
        %s380 = sand.u32 %s31, 1
        %s381 = scalar_lea.sflag [#allocation7], %s380
        %s382 = sand.u32 %s107, 1
        %s383 = smul.addr %s382, 640
        %s384 = scalar_lea.vmem [#allocation8], %s383
        %p385 = pneg %p120
        %p386 = pneg %p117
        %s387 = sand.u32 %s135, 1
        %s388 = scalar_lea.sflag [#allocation10], %s387
        %s389 = sand.u32 %s135, 1
        %s390 = smul.addr %s389, 640
        %s391 = scalar_lea.vmem [#allocation9], %s390
        %p392 = pneg %p148
        %p393 = pneg %p145
        %p394 = pneg %p174
        %p395 = pneg %p171
        %s396 = sand.u32 %s161, 1
        %s397 = scalar_lea.sflag [#allocation5], %s396
        %s398 = sand.u32 %s161, 1
        %s399 = smul.addr %s398, 16
        %s400 = scalar_lea.vmem [#allocation11], %s399
        %p401 = pneg %p200
        %p402 = pneg %p197
        %s403 = sand.u32 %s31, 1
        %s404 = scalar_lea.sflag [#allocation13], %s403
        %s405 = sand.u32 %s187, 1
        %s406 = smul.addr %s405, 8
        %s407 = scalar_lea.vmem [#allocation12], %s406
        %p408 = pneg %p226
        %p409 = pneg %p223
        %s410 = sand.u32 %s31, 1
        %s411 = scalar_lea.sflag [#allocation13], %s410
        %s412 = sand.u32 %s213, 1
        %s413 = smul.addr %s412, 8
        %s414 = scalar_lea.vmem [#allocation14], %s413
        %s415 = smul.u32 5, %s36
        %s416 = smul.u32 16, %s35
        %s417 = smul.u32 5, %s36
        %s418 = smul.u32 16, %s35
        %s419 = smul.u32 5, %s36
        %s420 = smul.u32 16, %s35
        %s421 = smul.u32 5, %s36
        %p422 = scmp.eq.s32.totalorder %s36, 0
        // Predicated region
        $region53: #{tpu_custom_call.1} parent=35 // pred_check
          %p423 = pneg %p422
        $region54: #{tpu_custom_call.1} parent=35 // pred_check_branch
          %425 = sbr.rel (%p423) target = $region56
        $region55: #{tpu_custom_call.1} parent=35 // pred_region
          %426 = vst [vmem:[#allocation2] sm:$0xff] 0.0
          %427 = vst [vmem:[#allocation2 + $0x8] sm:$0xff] 0.0
          %428 = vst [vmem:[%s407] sm:$0xff] 0.0
          %429 = vst [vmem:[%s414] sm:$0xff] 0.0
        $region56: #{tpu_custom_call.1} parent=35 // pred_fallthru
          _
        %v430 = vld [vmem:[%s357] sm:$0xff]
        %v431 = vld [vmem:[%s357 + $0x8] sm:$0xff]
        %v432 = vld [vmem:[%s357 + $0x10] sm:$0xff]
        %v433 = vld [vmem:[%s357 + $0x18] sm:$0xff]
        %v434 = vld [vmem:[%s357 + $0x20] sm:$0xff]
        %v435 = vld [vmem:[%s357 + $0x28] sm:$0xff]
        %v436 = vld [vmem:[%s357 + $0x30] sm:$0xff]
        %v437 = vld [vmem:[%s357 + $0x38] sm:$0xff]
        %v438 = vld [vmem:[%s357 + $0x40] sm:$0xff]
        %v439 = vld [vmem:[%s357 + $0x48] sm:$0xff]
        %v440 = vld [vmem:[%s357 + $0x50] sm:$0xff]
        %v441 = vld [vmem:[%s357 + $0x58] sm:$0xff]
        %v442 = vld [vmem:[%s357 + $0x60] sm:$0xff]
        %v443 = vld [vmem:[%s357 + $0x68] sm:$0xff]
        %v444 = vld [vmem:[%s357 + $0x70] sm:$0xff]
        %v445 = vld [vmem:[%s357 + $0x78] sm:$0xff]
        %v446 = vld [vmem:[%s357 + $0x80] sm:$0xff]
        %v447 = vld [vmem:[%s357 + $0x88] sm:$0xff]
        %v448 = vld [vmem:[%s357 + $0x90] sm:$0xff]
        %v449 = vld [vmem:[%s357 + $0x98] sm:$0xff]
        %v450 = vld [vmem:[%s357 + $0xa0] sm:$0xff]
        %v451 = vld [vmem:[%s357 + $0xa8] sm:$0xff]
        %v452 = vld [vmem:[%s357 + $0xb0] sm:$0xff]
        %v453 = vld [vmem:[%s357 + $0xb8] sm:$0xff]
        %v454 = vld [vmem:[%s357 + $0xc0] sm:$0xff]
        %v455 = vld [vmem:[%s357 + $0xc8] sm:$0xff]
        %v456 = vld [vmem:[%s357 + $0xd0] sm:$0xff]
        %v457 = vld [vmem:[%s357 + $0xd8] sm:$0xff]
        %v458 = vld [vmem:[%s357 + $0xe0] sm:$0xff]
        %v459 = vld [vmem:[%s357 + $0xe8] sm:$0xff]
        %v460 = vld [vmem:[%s357 + $0xf0] sm:$0xff]
        %v461 = vld [vmem:[%s357 + $0xf8] sm:$0xff]
        %v462 = vld [vmem:[%s357 + $0x100] sm:$0xff]
        %v463 = vld [vmem:[%s357 + $0x108] sm:$0xff]
        %v464 = vld [vmem:[%s357 + $0x110] sm:$0xff]
        %v465 = vld [vmem:[%s357 + $0x118] sm:$0xff]
        %v466 = vld [vmem:[%s357 + $0x120] sm:$0xff]
        %v467 = vld [vmem:[%s357 + $0x128] sm:$0xff]
        %v468 = vld [vmem:[%s357 + $0x130] sm:$0xff]
        %v469 = vld [vmem:[%s357 + $0x138] sm:$0xff]
        %v470 = vld [vmem:[%s357 + $0x140] sm:$0xff]
        %v471 = vld [vmem:[%s357 + $0x148] sm:$0xff]
        %v472 = vld [vmem:[%s357 + $0x150] sm:$0xff]
        %v473 = vld [vmem:[%s357 + $0x158] sm:$0xff]
        %v474 = vld [vmem:[%s357 + $0x160] sm:$0xff]
        %v475 = vld [vmem:[%s357 + $0x168] sm:$0xff]
        %v476 = vld [vmem:[%s357 + $0x170] sm:$0xff]
        %v477 = vld [vmem:[%s357 + $0x178] sm:$0xff]
        %v478 = vld [vmem:[%s357 + $0x180] sm:$0xff]
        %v479 = vld [vmem:[%s357 + $0x188] sm:$0xff]
        %v480 = vld [vmem:[%s357 + $0x190] sm:$0xff]
        %v481 = vld [vmem:[%s357 + $0x198] sm:$0xff]
        %v482 = vld [vmem:[%s357 + $0x1a0] sm:$0xff]
        %v483 = vld [vmem:[%s357 + $0x1a8] sm:$0xff]
        %v484 = vld [vmem:[%s357 + $0x1b0] sm:$0xff]
        %v485 = vld [vmem:[%s357 + $0x1b8] sm:$0xff]
        %v486 = vld [vmem:[%s357 + $0x1c0] sm:$0xff]
        %v487 = vld [vmem:[%s357 + $0x1c8] sm:$0xff]
        %v488 = vld [vmem:[%s357 + $0x1d0] sm:$0xff]
        %v489 = vld [vmem:[%s357 + $0x1d8] sm:$0xff]
        %v490 = vld [vmem:[%s357 + $0x1e0] sm:$0xff]
        %v491 = vld [vmem:[%s357 + $0x1e8] sm:$0xff]
        %v492 = vld [vmem:[%s357 + $0x1f0] sm:$0xff]
        %v493 = vld [vmem:[%s357 + $0x1f8] sm:$0xff]
        %v494 = vld [vmem:[%s357 + $0x200] sm:$0xff]
        %v495 = vld [vmem:[%s357 + $0x208] sm:$0xff]
        %v496 = vld [vmem:[%s357 + $0x210] sm:$0xff]
        %v497 = vld [vmem:[%s357 + $0x218] sm:$0xff]
        %v498 = vld [vmem:[%s357 + $0x220] sm:$0xff]
        %v499 = vld [vmem:[%s357 + $0x228] sm:$0xff]
        %v500 = vld [vmem:[%s357 + $0x230] sm:$0xff]
        %v501 = vld [vmem:[%s357 + $0x238] sm:$0xff]
        %v502 = vld [vmem:[%s357 + $0x240] sm:$0xff]
        %v503 = vld [vmem:[%s357 + $0x248] sm:$0xff]
        %v504 = vld [vmem:[%s357 + $0x250] sm:$0xff]
        %v505 = vld [vmem:[%s357 + $0x258] sm:$0xff]
        %v506 = vld [vmem:[%s357 + $0x260] sm:$0xff]
        %v507 = vld [vmem:[%s357 + $0x268] sm:$0xff]
        %v508 = vld [vmem:[%s357 + $0x270] sm:$0xff]
        %v509 = vld [vmem:[%s357 + $0x278] sm:$0xff]
        %v510 = vld [vmem:[%s366] sm:$0xff]
        %v511 = vld [vmem:[%s366 + $0x8] sm:$0xff]
        %v512 = vld [vmem:[%s366 + $0x10] sm:$0xff]
        %v513 = vld [vmem:[%s366 + $0x18] sm:$0xff]
        %v514 = vld [vmem:[%s366 + $0x20] sm:$0xff]
        %v515 = vld [vmem:[%s366 + $0x28] sm:$0xff]
        %v516 = vld [vmem:[%s366 + $0x30] sm:$0xff]
        %v517 = vld [vmem:[%s366 + $0x38] sm:$0xff]
        %v518 = vld [vmem:[%s366 + $0x40] sm:$0xff]
        %v519 = vld [vmem:[%s366 + $0x48] sm:$0xff]
        %v520 = vld [vmem:[%s366 + $0x50] sm:$0xff]
        %v521 = vld [vmem:[%s366 + $0x58] sm:$0xff]
        %v522 = vld [vmem:[%s366 + $0x60] sm:$0xff]
        %v523 = vld [vmem:[%s366 + $0x68] sm:$0xff]
        %v524 = vld [vmem:[%s366 + $0x70] sm:$0xff]
        %v525 = vld [vmem:[%s366 + $0x78] sm:$0xff]
        %v526 = vld [vmem:[%s366 + $0x80] sm:$0xff]
        %v527 = vld [vmem:[%s366 + $0x88] sm:$0xff]
        %v528 = vld [vmem:[%s366 + $0x90] sm:$0xff]
        %v529 = vld [vmem:[%s366 + $0x98] sm:$0xff]
        %v530 = vld [vmem:[%s366 + $0xa0] sm:$0xff]
        %v531 = vld [vmem:[%s366 + $0xa8] sm:$0xff]
        %v532 = vld [vmem:[%s366 + $0xb0] sm:$0xff]
        %v533 = vld [vmem:[%s366 + $0xb8] sm:$0xff]
        %v534 = vld [vmem:[%s366 + $0xc0] sm:$0xff]
        %v535 = vld [vmem:[%s366 + $0xc8] sm:$0xff]
        %v536 = vld [vmem:[%s366 + $0xd0] sm:$0xff]
        %v537 = vld [vmem:[%s366 + $0xd8] sm:$0xff]
        %v538 = vld [vmem:[%s366 + $0xe0] sm:$0xff]
        %v539 = vld [vmem:[%s366 + $0xe8] sm:$0xff]
        %v540 = vld [vmem:[%s366 + $0xf0] sm:$0xff]
        %v541 = vld [vmem:[%s366 + $0xf8] sm:$0xff]
        %v542 = vld [vmem:[%s366 + $0x100] sm:$0xff]
        %v543 = vld [vmem:[%s366 + $0x108] sm:$0xff]
        %v544 = vld [vmem:[%s366 + $0x110] sm:$0xff]
        %v545 = vld [vmem:[%s366 + $0x118] sm:$0xff]
        %v546 = vld [vmem:[%s366 + $0x120] sm:$0xff]
        %v547 = vld [vmem:[%s366 + $0x128] sm:$0xff]
        %v548 = vld [vmem:[%s366 + $0x130] sm:$0xff]
        %v549 = vld [vmem:[%s366 + $0x138] sm:$0xff]
        %v550 = vld [vmem:[%s366 + $0x140] sm:$0xff]
        %v551 = vld [vmem:[%s366 + $0x148] sm:$0xff]
        %v552 = vld [vmem:[%s366 + $0x150] sm:$0xff]
        %v553 = vld [vmem:[%s366 + $0x158] sm:$0xff]
        %v554 = vld [vmem:[%s366 + $0x160] sm:$0xff]
        %v555 = vld [vmem:[%s366 + $0x168] sm:$0xff]
        %v556 = vld [vmem:[%s366 + $0x170] sm:$0xff]
        %v557 = vld [vmem:[%s366 + $0x178] sm:$0xff]
        %v558 = vld [vmem:[%s366 + $0x180] sm:$0xff]
        %v559 = vld [vmem:[%s366 + $0x188] sm:$0xff]
        %v560 = vld [vmem:[%s366 + $0x190] sm:$0xff]
        %v561 = vld [vmem:[%s366 + $0x198] sm:$0xff]
        %v562 = vld [vmem:[%s366 + $0x1a0] sm:$0xff]
        %v563 = vld [vmem:[%s366 + $0x1a8] sm:$0xff]
        %v564 = vld [vmem:[%s366 + $0x1b0] sm:$0xff]
        %v565 = vld [vmem:[%s366 + $0x1b8] sm:$0xff]
        %v566 = vld [vmem:[%s366 + $0x1c0] sm:$0xff]
        %v567 = vld [vmem:[%s366 + $0x1c8] sm:$0xff]
        %v568 = vld [vmem:[%s366 + $0x1d0] sm:$0xff]
        %v569 = vld [vmem:[%s366 + $0x1d8] sm:$0xff]
        %v570 = vld [vmem:[%s366 + $0x1e0] sm:$0xff]
        %v571 = vld [vmem:[%s366 + $0x1e8] sm:$0xff]
        %v572 = vld [vmem:[%s366 + $0x1f0] sm:$0xff]
        %v573 = vld [vmem:[%s366 + $0x1f8] sm:$0xff]
        %v574 = vld [vmem:[%s366 + $0x200] sm:$0xff]
        %v575 = vld [vmem:[%s366 + $0x208] sm:$0xff]
        %v576 = vld [vmem:[%s366 + $0x210] sm:$0xff]
        %v577 = vld [vmem:[%s366 + $0x218] sm:$0xff]
        %v578 = vld [vmem:[%s366 + $0x220] sm:$0xff]
        %v579 = vld [vmem:[%s366 + $0x228] sm:$0xff]
        %v580 = vld [vmem:[%s366 + $0x230] sm:$0xff]
        %v581 = vld [vmem:[%s366 + $0x238] sm:$0xff]
        %v582 = vld [vmem:[%s366 + $0x240] sm:$0xff]
        %v583 = vld [vmem:[%s366 + $0x248] sm:$0xff]
        %v584 = vld [vmem:[%s366 + $0x250] sm:$0xff]
        %v585 = vld [vmem:[%s366 + $0x258] sm:$0xff]
        %v586 = vld [vmem:[%s366 + $0x260] sm:$0xff]
        %v587 = vld [vmem:[%s366 + $0x268] sm:$0xff]
        %v588 = vld [vmem:[%s366 + $0x270] sm:$0xff]
        %v589 = vld [vmem:[%s366 + $0x278] sm:$0xff]
        %v590 = vand.u32 2147483647, %v430
        %v591 = vand.u32 2147483647, %v431
        %v592 = vand.u32 2147483647, %v432
        %v593 = vand.u32 2147483647, %v433
        %v594 = vand.u32 2147483647, %v434
        %v595 = vand.u32 2147483647, %v435
        %v596 = vand.u32 2147483647, %v436
        %v597 = vand.u32 2147483647, %v437
        %v598 = vand.u32 2147483647, %v438
        %v599 = vand.u32 2147483647, %v439
        %v600 = vand.u32 2147483647, %v440
        %v601 = vand.u32 2147483647, %v441
        %v602 = vand.u32 2147483647, %v442
        %v603 = vand.u32 2147483647, %v443
        %v604 = vand.u32 2147483647, %v444
        %v605 = vand.u32 2147483647, %v445
        %v606 = vand.u32 2147483647, %v446
        %v607 = vand.u32 2147483647, %v447
        %v608 = vand.u32 2147483647, %v448
        %v609 = vand.u32 2147483647, %v449
        %v610 = vand.u32 2147483647, %v450
        %v611 = vand.u32 2147483647, %v451
        %v612 = vand.u32 2147483647, %v452
        %v613 = vand.u32 2147483647, %v453
        %v614 = vand.u32 2147483647, %v454
        %v615 = vand.u32 2147483647, %v455
        %v616 = vand.u32 2147483647, %v456
        %v617 = vand.u32 2147483647, %v457
        %v618 = vand.u32 2147483647, %v458
        %v619 = vand.u32 2147483647, %v459
        %v620 = vand.u32 2147483647, %v460
        %v621 = vand.u32 2147483647, %v461
        %v622 = vand.u32 2147483647, %v462
        %v623 = vand.u32 2147483647, %v463
        %v624 = vand.u32 2147483647, %v464
        %v625 = vand.u32 2147483647, %v465
        %v626 = vand.u32 2147483647, %v466
        %v627 = vand.u32 2147483647, %v467
        %v628 = vand.u32 2147483647, %v468
        %v629 = vand.u32 2147483647, %v469
        %v630 = vand.u32 2147483647, %v470
        %v631 = vand.u32 2147483647, %v471
        %v632 = vand.u32 2147483647, %v472
        %v633 = vand.u32 2147483647, %v473
        %v634 = vand.u32 2147483647, %v474
        %v635 = vand.u32 2147483647, %v475
        %v636 = vand.u32 2147483647, %v476
        %v637 = vand.u32 2147483647, %v477
        %v638 = vand.u32 2147483647, %v478
        %v639 = vand.u32 2147483647, %v479
        %v640 = vand.u32 2147483647, %v480
        %v641 = vand.u32 2147483647, %v481
        %v642 = vand.u32 2147483647, %v482
        %v643 = vand.u32 2147483647, %v483
        %v644 = vand.u32 2147483647, %v484
        %v645 = vand.u32 2147483647, %v485
        %v646 = vand.u32 2147483647, %v486
        %v647 = vand.u32 2147483647, %v487
        %v648 = vand.u32 2147483647, %v488
        %v649 = vand.u32 2147483647, %v489
        %v650 = vand.u32 2147483647, %v490
        %v651 = vand.u32 2147483647, %v491
        %v652 = vand.u32 2147483647, %v492
        %v653 = vand.u32 2147483647, %v493
        %v654 = vand.u32 2147483647, %v494
        %v655 = vand.u32 2147483647, %v495
        %v656 = vand.u32 2147483647, %v496
        %v657 = vand.u32 2147483647, %v497
        %v658 = vand.u32 2147483647, %v498
        %v659 = vand.u32 2147483647, %v499
        %v660 = vand.u32 2147483647, %v500
        %v661 = vand.u32 2147483647, %v501
        %v662 = vand.u32 2147483647, %v502
        %v663 = vand.u32 2147483647, %v503
        %v664 = vand.u32 2147483647, %v504
        %v665 = vand.u32 2147483647, %v505
        %v666 = vand.u32 2147483647, %v506
        %v667 = vand.u32 2147483647, %v507
        %v668 = vand.u32 2147483647, %v508
        %v669 = vand.u32 2147483647, %v509
        %v670 = vsub.f32 0.0, %v590
        %v671 = vsub.f32 0.0, %v591
        %v672 = vsub.f32 0.0, %v592
        %v673 = vsub.f32 0.0, %v593
        %v674 = vsub.f32 0.0, %v594
        %v675 = vsub.f32 0.0, %v595
        %v676 = vsub.f32 0.0, %v596
        %v677 = vsub.f32 0.0, %v597
        %v678 = vsub.f32 0.0, %v598
        %v679 = vsub.f32 0.0, %v599
        %v680 = vsub.f32 0.0, %v600
        %v681 = vsub.f32 0.0, %v601
        %v682 = vsub.f32 0.0, %v602
        %v683 = vsub.f32 0.0, %v603
        %v684 = vsub.f32 0.0, %v604
        %v685 = vsub.f32 0.0, %v605
        %v686 = vsub.f32 0.0, %v606
        %v687 = vsub.f32 0.0, %v607
        %v688 = vsub.f32 0.0, %v608
        %v689 = vsub.f32 0.0, %v609
        %v690 = vsub.f32 0.0, %v610
        %v691 = vsub.f32 0.0, %v611
        %v692 = vsub.f32 0.0, %v612
        %v693 = vsub.f32 0.0, %v613
        %v694 = vsub.f32 0.0, %v614
        %v695 = vsub.f32 0.0, %v615
        %v696 = vsub.f32 0.0, %v616
        %v697 = vsub.f32 0.0, %v617
        %v698 = vsub.f32 0.0, %v618
        %v699 = vsub.f32 0.0, %v619
        %v700 = vsub.f32 0.0, %v620
        %v701 = vsub.f32 0.0, %v621
        %v702 = vsub.f32 0.0, %v622
        %v703 = vsub.f32 0.0, %v623
        %v704 = vsub.f32 0.0, %v624
        %v705 = vsub.f32 0.0, %v625
        %v706 = vsub.f32 0.0, %v626
        %v707 = vsub.f32 0.0, %v627
        %v708 = vsub.f32 0.0, %v628
        %v709 = vsub.f32 0.0, %v629
        %v710 = vsub.f32 0.0, %v630
        %v711 = vsub.f32 0.0, %v631
        %v712 = vsub.f32 0.0, %v632
        %v713 = vsub.f32 0.0, %v633
        %v714 = vsub.f32 0.0, %v634
        %v715 = vsub.f32 0.0, %v635
        %v716 = vsub.f32 0.0, %v636
        %v717 = vsub.f32 0.0, %v637
        %v718 = vsub.f32 0.0, %v638
        %v719 = vsub.f32 0.0, %v639
        %v720 = vsub.f32 0.0, %v640
        %v721 = vsub.f32 0.0, %v641
        %v722 = vsub.f32 0.0, %v642
        %v723 = vsub.f32 0.0, %v643
        %v724 = vsub.f32 0.0, %v644
        %v725 = vsub.f32 0.0, %v645
        %v726 = vsub.f32 0.0, %v646
        %v727 = vsub.f32 0.0, %v647
        %v728 = vsub.f32 0.0, %v648
        %v729 = vsub.f32 0.0, %v649
        %v730 = vsub.f32 0.0, %v650
        %v731 = vsub.f32 0.0, %v651
        %v732 = vsub.f32 0.0, %v652
        %v733 = vsub.f32 0.0, %v653
        %v734 = vsub.f32 0.0, %v654
        %v735 = vsub.f32 0.0, %v655
        %v736 = vsub.f32 0.0, %v656
        %v737 = vsub.f32 0.0, %v657
        %v738 = vsub.f32 0.0, %v658
        %v739 = vsub.f32 0.0, %v659
        %v740 = vsub.f32 0.0, %v660
        %v741 = vsub.f32 0.0, %v661
        %v742 = vsub.f32 0.0, %v662
        %v743 = vsub.f32 0.0, %v663
        %v744 = vsub.f32 0.0, %v664
        %v745 = vsub.f32 0.0, %v665
        %v746 = vsub.f32 0.0, %v666
        %v747 = vsub.f32 0.0, %v667
        %v748 = vsub.f32 0.0, %v668
        %v749 = vsub.f32 0.0, %v669
        %v750 = vmul.f32 %v670, 1.442695
        %v751 = vpow.pop %v750
        %v752 = vmul.f32 %v671, 1.442695
        %v753 = vpow.pop %v752
        %v754 = vmul.f32 %v672, 1.442695
        %v755 = vpow.pop %v754
        %v756 = vmul.f32 %v673, 1.442695
        %v757 = vpow.pop %v756
        %v758 = vmul.f32 %v674, 1.442695
        %v759 = vpow.pop %v758
        %v760 = vmul.f32 %v675, 1.442695
        %v761 = vpow.pop %v760
        %v762 = vmul.f32 %v676, 1.442695
        %v763 = vpow.pop %v762
        %v764 = vmul.f32 %v677, 1.442695
        %v765 = vpow.pop %v764
        %v766 = vmul.f32 %v678, 1.442695
        %v767 = vpow.pop %v766
        %v768 = vmul.f32 %v679, 1.442695
        %v769 = vpow.pop %v768
        %v770 = vmul.f32 %v680, 1.442695
        %v771 = vpow.pop %v770
        %v772 = vmul.f32 %v681, 1.442695
        %v773 = vpow.pop %v772
        %v774 = vmul.f32 %v682, 1.442695
        %v775 = vpow.pop %v774
        %v776 = vmul.f32 %v683, 1.442695
        %v777 = vpow.pop %v776
        %v778 = vmul.f32 %v684, 1.442695
        %v779 = vpow.pop %v778
        %v780 = vmul.f32 %v685, 1.442695
        %v781 = vpow.pop %v780
        %v782 = vmul.f32 %v686, 1.442695
        %v783 = vpow.pop %v782
        %v784 = vmul.f32 %v687, 1.442695
        %v785 = vpow.pop %v784
        %v786 = vmul.f32 %v688, 1.442695
        %v787 = vpow.pop %v786
        %v788 = vmul.f32 %v689, 1.442695
        %v789 = vpow.pop %v788
        %v790 = vmul.f32 %v690, 1.442695
        %v791 = vpow.pop %v790
        %v792 = vmul.f32 %v691, 1.442695
        %v793 = vpow.pop %v792
        %v794 = vmul.f32 %v692, 1.442695
        %v795 = vpow.pop %v794
        %v796 = vmul.f32 %v693, 1.442695
        %v797 = vpow.pop %v796
        %v798 = vmul.f32 %v694, 1.442695
        %v799 = vpow.pop %v798
        %v800 = vmul.f32 %v695, 1.442695
        %v801 = vpow.pop %v800
        %v802 = vmul.f32 %v696, 1.442695
        %v803 = vpow.pop %v802
        %v804 = vmul.f32 %v697, 1.442695
        %v805 = vpow.pop %v804
        %v806 = vmul.f32 %v698, 1.442695
        %v807 = vpow.pop %v806
        %v808 = vmul.f32 %v699, 1.442695
        %v809 = vpow.pop %v808
        %v810 = vmul.f32 %v700, 1.442695
        %v811 = vpow.pop %v810
        %v812 = vmul.f32 %v701, 1.442695
        %v813 = vpow.pop %v812
        %v814 = vmul.f32 %v702, 1.442695
        %v815 = vpow.pop %v814
        %v816 = vmul.f32 %v703, 1.442695
        %v817 = vpow.pop %v816
        %v818 = vmul.f32 %v704, 1.442695
        %v819 = vpow.pop %v818
        %v820 = vmul.f32 %v705, 1.442695
        %v821 = vpow.pop %v820
        %v822 = vmul.f32 %v706, 1.442695
        %v823 = vpow.pop %v822
        %v824 = vmul.f32 %v707, 1.442695
        %v825 = vpow.pop %v824
        %v826 = vmul.f32 %v708, 1.442695
        %v827 = vpow.pop %v826
        %v828 = vmul.f32 %v709, 1.442695
        %v829 = vpow.pop %v828
        %v830 = vmul.f32 %v710, 1.442695
        %v831 = vpow.pop %v830
        %v832 = vmul.f32 %v711, 1.442695
        %v833 = vpow.pop %v832
        %v834 = vmul.f32 %v712, 1.442695
        %v835 = vpow.pop %v834
        %v836 = vmul.f32 %v713, 1.442695
        %v837 = vpow.pop %v836
        %v838 = vmul.f32 %v714, 1.442695
        %v839 = vpow.pop %v838
        %v840 = vmul.f32 %v715, 1.442695
        %v841 = vpow.pop %v840
        %v842 = vmul.f32 %v716, 1.442695
        %v843 = vpow.pop %v842
        %v844 = vmul.f32 %v717, 1.442695
        %v845 = vpow.pop %v844
        %v846 = vmul.f32 %v718, 1.442695
        %v847 = vpow.pop %v846
        %v848 = vmul.f32 %v719, 1.442695
        %v849 = vpow.pop %v848
        %v850 = vmul.f32 %v720, 1.442695
        %v851 = vpow.pop %v850
        %v852 = vmul.f32 %v721, 1.442695
        %v853 = vpow.pop %v852
        %v854 = vmul.f32 %v722, 1.442695
        %v855 = vpow.pop %v854
        %v856 = vmul.f32 %v723, 1.442695
        %v857 = vpow.pop %v856
        %v858 = vmul.f32 %v724, 1.442695
        %v859 = vpow.pop %v858
        %v860 = vmul.f32 %v725, 1.442695
        %v861 = vpow.pop %v860
        %v862 = vmul.f32 %v726, 1.442695
        %v863 = vpow.pop %v862
        %v864 = vmul.f32 %v727, 1.442695
        %v865 = vpow.pop %v864
        %v866 = vmul.f32 %v728, 1.442695
        %v867 = vpow.pop %v866
        %v868 = vmul.f32 %v729, 1.442695
        %v869 = vpow.pop %v868
        %v870 = vmul.f32 %v730, 1.442695
        %v871 = vpow.pop %v870
        %v872 = vmul.f32 %v731, 1.442695
        %v873 = vpow.pop %v872
        %v874 = vmul.f32 %v732, 1.442695
        %v875 = vpow.pop %v874
        %v876 = vmul.f32 %v733, 1.442695
        %v877 = vpow.pop %v876
        %v878 = vmul.f32 %v734, 1.442695
        %v879 = vpow.pop %v878
        %v880 = vmul.f32 %v735, 1.442695
        %v881 = vpow.pop %v880
        %v882 = vmul.f32 %v736, 1.442695
        %v883 = vpow.pop %v882
        %v884 = vmul.f32 %v737, 1.442695
        %v885 = vpow.pop %v884
        %v886 = vmul.f32 %v738, 1.442695
        %v887 = vpow.pop %v886
        %v888 = vmul.f32 %v739, 1.442695
        %v889 = vpow.pop %v888
        %v890 = vmul.f32 %v740, 1.442695
        %v891 = vpow.pop %v890
        %v892 = vmul.f32 %v741, 1.442695
        %v893 = vpow.pop %v892
        %v894 = vmul.f32 %v742, 1.442695
        %v895 = vpow.pop %v894
        %v896 = vmul.f32 %v743, 1.442695
        %v897 = vpow.pop %v896
        %v898 = vmul.f32 %v744, 1.442695
        %v899 = vpow.pop %v898
        %v900 = vmul.f32 %v745, 1.442695
        %v901 = vpow.pop %v900
        %v902 = vmul.f32 %v746, 1.442695
        %v903 = vpow.pop %v902
        %v904 = vmul.f32 %v747, 1.442695
        %v905 = vpow.pop %v904
        %v906 = vmul.f32 %v748, 1.442695
        %v907 = vpow.pop %v906
        %v908 = vmul.f32 %v749, 1.442695
        %v909 = vpow.pop %v908
        %v910 = vadd.f32 %v751, 1.0
        %v911 = vlog2.pop %v910
        %v912 = vmul.f32 %v911, 0.6931472
        %v913 = vmul.f32 -0.5, %v751
        %v914 = vadd.f32 %v913, 1.0
        %v915 = vmul.f32 %v914, %v751
        %v916 = vand.u32 2147483647, %v751
        %vm917 = vcmp.lt.f32.partialorder %v916, 0.0004427343
        %v918 = vsel %vm917, %v915, %v912
        %v919 = vadd.f32 %v753, 1.0
        %v920 = vlog2.pop %v919
        %v921 = vmul.f32 %v920, 0.6931472
        %v922 = vmul.f32 -0.5, %v753
        %v923 = vadd.f32 %v922, 1.0
        %v924 = vmul.f32 %v923, %v753
        %v925 = vand.u32 2147483647, %v753
        %vm926 = vcmp.lt.f32.partialorder %v925, 0.0004427343
        %v927 = vsel %vm926, %v924, %v921
        %v928 = vadd.f32 %v755, 1.0
        %v929 = vlog2.pop %v928
        %v930 = vmul.f32 %v929, 0.6931472
        %v931 = vmul.f32 -0.5, %v755
        %v932 = vadd.f32 %v931, 1.0
        %v933 = vmul.f32 %v932, %v755
        %v934 = vand.u32 2147483647, %v755
        %vm935 = vcmp.lt.f32.partialorder %v934, 0.0004427343
        %v936 = vsel %vm935, %v933, %v930
        %v937 = vadd.f32 %v757, 1.0
        %v938 = vlog2.pop %v937
        %v939 = vmul.f32 %v938, 0.6931472
        %v940 = vmul.f32 -0.5, %v757
        %v941 = vadd.f32 %v940, 1.0
        %v942 = vmul.f32 %v941, %v757
        %v943 = vand.u32 2147483647, %v757
        %vm944 = vcmp.lt.f32.partialorder %v943, 0.0004427343
        %v945 = vsel %vm944, %v942, %v939
        %v946 = vadd.f32 %v759, 1.0
        %v947 = vlog2.pop %v946
        %v948 = vmul.f32 %v947, 0.6931472
        %v949 = vmul.f32 -0.5, %v759
        %v950 = vadd.f32 %v949, 1.0
        %v951 = vmul.f32 %v950, %v759
        %v952 = vand.u32 2147483647, %v759
        %vm953 = vcmp.lt.f32.partialorder %v952, 0.0004427343
        %v954 = vsel %vm953, %v951, %v948
        %v955 = vadd.f32 %v761, 1.0
        %v956 = vlog2.pop %v955
        %v957 = vmul.f32 %v956, 0.6931472
        %v958 = vmul.f32 -0.5, %v761
        %v959 = vadd.f32 %v958, 1.0
        %v960 = vmul.f32 %v959, %v761
        %v961 = vand.u32 2147483647, %v761
        %vm962 = vcmp.lt.f32.partialorder %v961, 0.0004427343
        %v963 = vsel %vm962, %v960, %v957
        %v964 = vadd.f32 %v763, 1.0
        %v965 = vlog2.pop %v964
        %v966 = vmul.f32 %v965, 0.6931472
        %v967 = vmul.f32 -0.5, %v763
        %v968 = vadd.f32 %v967, 1.0
        %v969 = vmul.f32 %v968, %v763
        %v970 = vand.u32 2147483647, %v763
        %vm971 = vcmp.lt.f32.partialorder %v970, 0.0004427343
        %v972 = vsel %vm971, %v969, %v966
        %v973 = vadd.f32 %v765, 1.0
        %v974 = vlog2.pop %v973
        %v975 = vmul.f32 %v974, 0.6931472
        %v976 = vmul.f32 -0.5, %v765
        %v977 = vadd.f32 %v976, 1.0
        %v978 = vmul.f32 %v977, %v765
        %v979 = vand.u32 2147483647, %v765
        %vm980 = vcmp.lt.f32.partialorder %v979, 0.0004427343
        %v981 = vsel %vm980, %v978, %v975
        %v982 = vadd.f32 %v767, 1.0
        %v983 = vlog2.pop %v982
        %v984 = vmul.f32 %v983, 0.6931472
        %v985 = vmul.f32 -0.5, %v767
        %v986 = vadd.f32 %v985, 1.0
        %v987 = vmul.f32 %v986, %v767
        %v988 = vand.u32 2147483647, %v767
        %vm989 = vcmp.lt.f32.partialorder %v988, 0.0004427343
        %v990 = vsel %vm989, %v987, %v984
        %v991 = vadd.f32 %v769, 1.0
        %v992 = vlog2.pop %v991
        %v993 = vmul.f32 %v992, 0.6931472
        %v994 = vmul.f32 -0.5, %v769
        %v995 = vadd.f32 %v994, 1.0
        %v996 = vmul.f32 %v995, %v769
        %v997 = vand.u32 2147483647, %v769
        %vm998 = vcmp.lt.f32.partialorder %v997, 0.0004427343
        %v999 = vsel %vm998, %v996, %v993
        %v1000 = vadd.f32 %v771, 1.0
        %v1001 = vlog2.pop %v1000
        %v1002 = vmul.f32 %v1001, 0.6931472
        %v1003 = vmul.f32 -0.5, %v771
        %v1004 = vadd.f32 %v1003, 1.0
        %v1005 = vmul.f32 %v1004, %v771
        %v1006 = vand.u32 2147483647, %v771
        %vm1007 = vcmp.lt.f32.partialorder %v1006, 0.0004427343
        %v1008 = vsel %vm1007, %v1005, %v1002
        %v1009 = vadd.f32 %v773, 1.0
        %v1010 = vlog2.pop %v1009
        %v1011 = vmul.f32 %v1010, 0.6931472
        %v1012 = vmul.f32 -0.5, %v773
        %v1013 = vadd.f32 %v1012, 1.0
        %v1014 = vmul.f32 %v1013, %v773
        %v1015 = vand.u32 2147483647, %v773
        %vm1016 = vcmp.lt.f32.partialorder %v1015, 0.0004427343
        %v1017 = vsel %vm1016, %v1014, %v1011
        %v1018 = vadd.f32 %v775, 1.0
        %v1019 = vlog2.pop %v1018
        %v1020 = vmul.f32 %v1019, 0.6931472
        %v1021 = vmul.f32 -0.5, %v775
        %v1022 = vadd.f32 %v1021, 1.0
        %v1023 = vmul.f32 %v1022, %v775
        %v1024 = vand.u32 2147483647, %v775
        %vm1025 = vcmp.lt.f32.partialorder %v1024, 0.0004427343
        %v1026 = vsel %vm1025, %v1023, %v1020
        %v1027 = vadd.f32 %v777, 1.0
        %v1028 = vlog2.pop %v1027
        %v1029 = vmul.f32 %v1028, 0.6931472
        %v1030 = vmul.f32 -0.5, %v777
        %v1031 = vadd.f32 %v1030, 1.0
        %v1032 = vmul.f32 %v1031, %v777
        %v1033 = vand.u32 2147483647, %v777
        %vm1034 = vcmp.lt.f32.partialorder %v1033, 0.0004427343
        %v1035 = vsel %vm1034, %v1032, %v1029
        %v1036 = vadd.f32 %v779, 1.0
        %v1037 = vlog2.pop %v1036
        %v1038 = vmul.f32 %v1037, 0.6931472
        %v1039 = vmul.f32 -0.5, %v779
        %v1040 = vadd.f32 %v1039, 1.0
        %v1041 = vmul.f32 %v1040, %v779
        %v1042 = vand.u32 2147483647, %v779
        %vm1043 = vcmp.lt.f32.partialorder %v1042, 0.0004427343
        %v1044 = vsel %vm1043, %v1041, %v1038
        %v1045 = vadd.f32 %v781, 1.0
        %v1046 = vlog2.pop %v1045
        %v1047 = vmul.f32 %v1046, 0.6931472
        %v1048 = vmul.f32 -0.5, %v781
        %v1049 = vadd.f32 %v1048, 1.0
        %v1050 = vmul.f32 %v1049, %v781
        %v1051 = vand.u32 2147483647, %v781
        %vm1052 = vcmp.lt.f32.partialorder %v1051, 0.0004427343
        %v1053 = vsel %vm1052, %v1050, %v1047
        %v1054 = vadd.f32 %v783, 1.0
        %v1055 = vlog2.pop %v1054
        %v1056 = vmul.f32 %v1055, 0.6931472
        %v1057 = vmul.f32 -0.5, %v783
        %v1058 = vadd.f32 %v1057, 1.0
        %v1059 = vmul.f32 %v1058, %v783
        %v1060 = vand.u32 2147483647, %v783
        %vm1061 = vcmp.lt.f32.partialorder %v1060, 0.0004427343
        %v1062 = vsel %vm1061, %v1059, %v1056
        %v1063 = vadd.f32 %v785, 1.0
        %v1064 = vlog2.pop %v1063
        %v1065 = vmul.f32 %v1064, 0.6931472
        %v1066 = vmul.f32 -0.5, %v785
        %v1067 = vadd.f32 %v1066, 1.0
        %v1068 = vmul.f32 %v1067, %v785
        %v1069 = vand.u32 2147483647, %v785
        %vm1070 = vcmp.lt.f32.partialorder %v1069, 0.0004427343
        %v1071 = vsel %vm1070, %v1068, %v1065
        %v1072 = vadd.f32 %v787, 1.0
        %v1073 = vlog2.pop %v1072
        %v1074 = vmul.f32 %v1073, 0.6931472
        %v1075 = vmul.f32 -0.5, %v787
        %v1076 = vadd.f32 %v1075, 1.0
        %v1077 = vmul.f32 %v1076, %v787
        %v1078 = vand.u32 2147483647, %v787
        %vm1079 = vcmp.lt.f32.partialorder %v1078, 0.0004427343
        %v1080 = vsel %vm1079, %v1077, %v1074
        %v1081 = vadd.f32 %v789, 1.0
        %v1082 = vlog2.pop %v1081
        %v1083 = vmul.f32 %v1082, 0.6931472
        %v1084 = vmul.f32 -0.5, %v789
        %v1085 = vadd.f32 %v1084, 1.0
        %v1086 = vmul.f32 %v1085, %v789
        %v1087 = vand.u32 2147483647, %v789
        %vm1088 = vcmp.lt.f32.partialorder %v1087, 0.0004427343
        %v1089 = vsel %vm1088, %v1086, %v1083
        %v1090 = vadd.f32 %v791, 1.0
        %v1091 = vlog2.pop %v1090
        %v1092 = vmul.f32 %v1091, 0.6931472
        %v1093 = vmul.f32 -0.5, %v791
        %v1094 = vadd.f32 %v1093, 1.0
        %v1095 = vmul.f32 %v1094, %v791
        %v1096 = vand.u32 2147483647, %v791
        %vm1097 = vcmp.lt.f32.partialorder %v1096, 0.0004427343
        %v1098 = vsel %vm1097, %v1095, %v1092
        %v1099 = vadd.f32 %v793, 1.0
        %v1100 = vlog2.pop %v1099
        %v1101 = vmul.f32 %v1100, 0.6931472
        %v1102 = vmul.f32 -0.5, %v793
        %v1103 = vadd.f32 %v1102, 1.0
        %v1104 = vmul.f32 %v1103, %v793
        %v1105 = vand.u32 2147483647, %v793
        %vm1106 = vcmp.lt.f32.partialorder %v1105, 0.0004427343
        %v1107 = vsel %vm1106, %v1104, %v1101
        %v1108 = vadd.f32 %v795, 1.0
        %v1109 = vlog2.pop %v1108
        %v1110 = vmul.f32 %v1109, 0.6931472
        %v1111 = vmul.f32 -0.5, %v795
        %v1112 = vadd.f32 %v1111, 1.0
        %v1113 = vmul.f32 %v1112, %v795
        %v1114 = vand.u32 2147483647, %v795
        %vm1115 = vcmp.lt.f32.partialorder %v1114, 0.0004427343
        %v1116 = vsel %vm1115, %v1113, %v1110
        %v1117 = vadd.f32 %v797, 1.0
        %v1118 = vlog2.pop %v1117
        %v1119 = vmul.f32 %v1118, 0.6931472
        %v1120 = vmul.f32 -0.5, %v797
        %v1121 = vadd.f32 %v1120, 1.0
        %v1122 = vmul.f32 %v1121, %v797
        %v1123 = vand.u32 2147483647, %v797
        %vm1124 = vcmp.lt.f32.partialorder %v1123, 0.0004427343
        %v1125 = vsel %vm1124, %v1122, %v1119
        %v1126 = vadd.f32 %v799, 1.0
        %v1127 = vlog2.pop %v1126
        %v1128 = vmul.f32 %v1127, 0.6931472
        %v1129 = vmul.f32 -0.5, %v799
        %v1130 = vadd.f32 %v1129, 1.0
        %v1131 = vmul.f32 %v1130, %v799
        %v1132 = vand.u32 2147483647, %v799
        %vm1133 = vcmp.lt.f32.partialorder %v1132, 0.0004427343
        %v1134 = vsel %vm1133, %v1131, %v1128
        %v1135 = vadd.f32 %v801, 1.0
        %v1136 = vlog2.pop %v1135
        %v1137 = vmul.f32 %v1136, 0.6931472
        %v1138 = vmul.f32 -0.5, %v801
        %v1139 = vadd.f32 %v1138, 1.0
        %v1140 = vmul.f32 %v1139, %v801
        %v1141 = vand.u32 2147483647, %v801
        %vm1142 = vcmp.lt.f32.partialorder %v1141, 0.0004427343
        %v1143 = vsel %vm1142, %v1140, %v1137
        %v1144 = vadd.f32 %v803, 1.0
        %v1145 = vlog2.pop %v1144
        %v1146 = vmul.f32 %v1145, 0.6931472
        %v1147 = vmul.f32 -0.5, %v803
        %v1148 = vadd.f32 %v1147, 1.0
        %v1149 = vmul.f32 %v1148, %v803
        %v1150 = vand.u32 2147483647, %v803
        %vm1151 = vcmp.lt.f32.partialorder %v1150, 0.0004427343
        %v1152 = vsel %vm1151, %v1149, %v1146
        %v1153 = vadd.f32 %v805, 1.0
        %v1154 = vlog2.pop %v1153
        %v1155 = vmul.f32 %v1154, 0.6931472
        %v1156 = vmul.f32 -0.5, %v805
        %v1157 = vadd.f32 %v1156, 1.0
        %v1158 = vmul.f32 %v1157, %v805
        %v1159 = vand.u32 2147483647, %v805
        %vm1160 = vcmp.lt.f32.partialorder %v1159, 0.0004427343
        %v1161 = vsel %vm1160, %v1158, %v1155
        %v1162 = vadd.f32 %v807, 1.0
        %v1163 = vlog2.pop %v1162
        %v1164 = vmul.f32 %v1163, 0.6931472
        %v1165 = vmul.f32 -0.5, %v807
        %v1166 = vadd.f32 %v1165, 1.0
        %v1167 = vmul.f32 %v1166, %v807
        %v1168 = vand.u32 2147483647, %v807
        %vm1169 = vcmp.lt.f32.partialorder %v1168, 0.0004427343
        %v1170 = vsel %vm1169, %v1167, %v1164
        %v1171 = vadd.f32 %v809, 1.0
        %v1172 = vlog2.pop %v1171
        %v1173 = vmul.f32 %v1172, 0.6931472
        %v1174 = vmul.f32 -0.5, %v809
        %v1175 = vadd.f32 %v1174, 1.0
        %v1176 = vmul.f32 %v1175, %v809
        %v1177 = vand.u32 2147483647, %v809
        %vm1178 = vcmp.lt.f32.partialorder %v1177, 0.0004427343
        %v1179 = vsel %vm1178, %v1176, %v1173
        %v1180 = vadd.f32 %v811, 1.0
        %v1181 = vlog2.pop %v1180
        %v1182 = vmul.f32 %v1181, 0.6931472
        %v1183 = vmul.f32 -0.5, %v811
        %v1184 = vadd.f32 %v1183, 1.0
        %v1185 = vmul.f32 %v1184, %v811
        %v1186 = vand.u32 2147483647, %v811
        %vm1187 = vcmp.lt.f32.partialorder %v1186, 0.0004427343
        %v1188 = vsel %vm1187, %v1185, %v1182
        %v1189 = vadd.f32 %v813, 1.0
        %v1190 = vlog2.pop %v1189
        %v1191 = vmul.f32 %v1190, 0.6931472
        %v1192 = vmul.f32 -0.5, %v813
        %v1193 = vadd.f32 %v1192, 1.0
        %v1194 = vmul.f32 %v1193, %v813
        %v1195 = vand.u32 2147483647, %v813
        %vm1196 = vcmp.lt.f32.partialorder %v1195, 0.0004427343
        %v1197 = vsel %vm1196, %v1194, %v1191
        %v1198 = vadd.f32 %v815, 1.0
        %v1199 = vlog2.pop %v1198
        %v1200 = vmul.f32 %v1199, 0.6931472
        %v1201 = vmul.f32 -0.5, %v815
        %v1202 = vadd.f32 %v1201, 1.0
        %v1203 = vmul.f32 %v1202, %v815
        %v1204 = vand.u32 2147483647, %v815
        %vm1205 = vcmp.lt.f32.partialorder %v1204, 0.0004427343
        %v1206 = vsel %vm1205, %v1203, %v1200
        %v1207 = vadd.f32 %v817, 1.0
        %v1208 = vlog2.pop %v1207
        %v1209 = vmul.f32 %v1208, 0.6931472
        %v1210 = vmul.f32 -0.5, %v817
        %v1211 = vadd.f32 %v1210, 1.0
        %v1212 = vmul.f32 %v1211, %v817
        %v1213 = vand.u32 2147483647, %v817
        %vm1214 = vcmp.lt.f32.partialorder %v1213, 0.0004427343
        %v1215 = vsel %vm1214, %v1212, %v1209
        %v1216 = vadd.f32 %v819, 1.0
        %v1217 = vlog2.pop %v1216
        %v1218 = vmul.f32 %v1217, 0.6931472
        %v1219 = vmul.f32 -0.5, %v819
        %v1220 = vadd.f32 %v1219, 1.0
        %v1221 = vmul.f32 %v1220, %v819
        %v1222 = vand.u32 2147483647, %v819
        %vm1223 = vcmp.lt.f32.partialorder %v1222, 0.0004427343
        %v1224 = vsel %vm1223, %v1221, %v1218
        %v1225 = vadd.f32 %v821, 1.0
        %v1226 = vlog2.pop %v1225
        %v1227 = vmul.f32 %v1226, 0.6931472
        %v1228 = vmul.f32 -0.5, %v821
        %v1229 = vadd.f32 %v1228, 1.0
        %v1230 = vmul.f32 %v1229, %v821
        %v1231 = vand.u32 2147483647, %v821
        %vm1232 = vcmp.lt.f32.partialorder %v1231, 0.0004427343
        %v1233 = vsel %vm1232, %v1230, %v1227
        %v1234 = vadd.f32 %v823, 1.0
        %v1235 = vlog2.pop %v1234
        %v1236 = vmul.f32 %v1235, 0.6931472
        %v1237 = vmul.f32 -0.5, %v823
        %v1238 = vadd.f32 %v1237, 1.0
        %v1239 = vmul.f32 %v1238, %v823
        %v1240 = vand.u32 2147483647, %v823
        %vm1241 = vcmp.lt.f32.partialorder %v1240, 0.0004427343
        %v1242 = vsel %vm1241, %v1239, %v1236
        %v1243 = vadd.f32 %v825, 1.0
        %v1244 = vlog2.pop %v1243
        %v1245 = vmul.f32 %v1244, 0.6931472
        %v1246 = vmul.f32 -0.5, %v825
        %v1247 = vadd.f32 %v1246, 1.0
        %v1248 = vmul.f32 %v1247, %v825
        %v1249 = vand.u32 2147483647, %v825
        %vm1250 = vcmp.lt.f32.partialorder %v1249, 0.0004427343
        %v1251 = vsel %vm1250, %v1248, %v1245
        %v1252 = vadd.f32 %v827, 1.0
        %v1253 = vlog2.pop %v1252
        %v1254 = vmul.f32 %v1253, 0.6931472
        %v1255 = vmul.f32 -0.5, %v827
        %v1256 = vadd.f32 %v1255, 1.0
        %v1257 = vmul.f32 %v1256, %v827
        %v1258 = vand.u32 2147483647, %v827
        %vm1259 = vcmp.lt.f32.partialorder %v1258, 0.0004427343
        %v1260 = vsel %vm1259, %v1257, %v1254
        %v1261 = vadd.f32 %v829, 1.0
        %v1262 = vlog2.pop %v1261
        %v1263 = vmul.f32 %v1262, 0.6931472
        %v1264 = vmul.f32 -0.5, %v829
        %v1265 = vadd.f32 %v1264, 1.0
        %v1266 = vmul.f32 %v1265, %v829
        %v1267 = vand.u32 2147483647, %v829
        %vm1268 = vcmp.lt.f32.partialorder %v1267, 0.0004427343
        %v1269 = vsel %vm1268, %v1266, %v1263
        %v1270 = vadd.f32 %v831, 1.0
        %v1271 = vlog2.pop %v1270
        %v1272 = vmul.f32 %v1271, 0.6931472
        %v1273 = vmul.f32 -0.5, %v831
        %v1274 = vadd.f32 %v1273, 1.0
        %v1275 = vmul.f32 %v1274, %v831
        %v1276 = vand.u32 2147483647, %v831
        %vm1277 = vcmp.lt.f32.partialorder %v1276, 0.0004427343
        %v1278 = vsel %vm1277, %v1275, %v1272
        %v1279 = vadd.f32 %v833, 1.0
        %v1280 = vlog2.pop %v1279
        %v1281 = vmul.f32 %v1280, 0.6931472
        %v1282 = vmul.f32 -0.5, %v833
        %v1283 = vadd.f32 %v1282, 1.0
        %v1284 = vmul.f32 %v1283, %v833
        %v1285 = vand.u32 2147483647, %v833
        %vm1286 = vcmp.lt.f32.partialorder %v1285, 0.0004427343
        %v1287 = vsel %vm1286, %v1284, %v1281
        %v1288 = vadd.f32 %v835, 1.0
        %v1289 = vlog2.pop %v1288
        %v1290 = vmul.f32 %v1289, 0.6931472
        %v1291 = vmul.f32 -0.5, %v835
        %v1292 = vadd.f32 %v1291, 1.0
        %v1293 = vmul.f32 %v1292, %v835
        %v1294 = vand.u32 2147483647, %v835
        %vm1295 = vcmp.lt.f32.partialorder %v1294, 0.0004427343
        %v1296 = vsel %vm1295, %v1293, %v1290
        %v1297 = vadd.f32 %v837, 1.0
        %v1298 = vlog2.pop %v1297
        %v1299 = vmul.f32 %v1298, 0.6931472
        %v1300 = vmul.f32 -0.5, %v837
        %v1301 = vadd.f32 %v1300, 1.0
        %v1302 = vmul.f32 %v1301, %v837
        %v1303 = vand.u32 2147483647, %v837
        %vm1304 = vcmp.lt.f32.partialorder %v1303, 0.0004427343
        %v1305 = vsel %vm1304, %v1302, %v1299
        %v1306 = vadd.f32 %v839, 1.0
        %v1307 = vlog2.pop %v1306
        %v1308 = vmul.f32 %v1307, 0.6931472
        %v1309 = vmul.f32 -0.5, %v839
        %v1310 = vadd.f32 %v1309, 1.0
        %v1311 = vmul.f32 %v1310, %v839
        %v1312 = vand.u32 2147483647, %v839
        %vm1313 = vcmp.lt.f32.partialorder %v1312, 0.0004427343
        %v1314 = vsel %vm1313, %v1311, %v1308
        %v1315 = vadd.f32 %v841, 1.0
        %v1316 = vlog2.pop %v1315
        %v1317 = vmul.f32 %v1316, 0.6931472
        %v1318 = vmul.f32 -0.5, %v841
        %v1319 = vadd.f32 %v1318, 1.0
        %v1320 = vmul.f32 %v1319, %v841
        %v1321 = vand.u32 2147483647, %v841
        %vm1322 = vcmp.lt.f32.partialorder %v1321, 0.0004427343
        %v1323 = vsel %vm1322, %v1320, %v1317
        %v1324 = vadd.f32 %v843, 1.0
        %v1325 = vlog2.pop %v1324
        %v1326 = vmul.f32 %v1325, 0.6931472
        %v1327 = vmul.f32 -0.5, %v843
        %v1328 = vadd.f32 %v1327, 1.0
        %v1329 = vmul.f32 %v1328, %v843
        %v1330 = vand.u32 2147483647, %v843
        %vm1331 = vcmp.lt.f32.partialorder %v1330, 0.0004427343
        %v1332 = vsel %vm1331, %v1329, %v1326
        %v1333 = vadd.f32 %v845, 1.0
        %v1334 = vlog2.pop %v1333
        %v1335 = vmul.f32 %v1334, 0.6931472
        %v1336 = vmul.f32 -0.5, %v845
        %v1337 = vadd.f32 %v1336, 1.0
        %v1338 = vmul.f32 %v1337, %v845
        %v1339 = vand.u32 2147483647, %v845
        %vm1340 = vcmp.lt.f32.partialorder %v1339, 0.0004427343
        %v1341 = vsel %vm1340, %v1338, %v1335
        %v1342 = vadd.f32 %v847, 1.0
        %v1343 = vlog2.pop %v1342
        %v1344 = vmul.f32 %v1343, 0.6931472
        %v1345 = vmul.f32 -0.5, %v847
        %v1346 = vadd.f32 %v1345, 1.0
        %v1347 = vmul.f32 %v1346, %v847
        %v1348 = vand.u32 2147483647, %v847
        %vm1349 = vcmp.lt.f32.partialorder %v1348, 0.0004427343
        %v1350 = vsel %vm1349, %v1347, %v1344
        %v1351 = vadd.f32 %v849, 1.0
        %v1352 = vlog2.pop %v1351
        %v1353 = vmul.f32 %v1352, 0.6931472
        %v1354 = vmul.f32 -0.5, %v849
        %v1355 = vadd.f32 %v1354, 1.0
        %v1356 = vmul.f32 %v1355, %v849
        %v1357 = vand.u32 2147483647, %v849
        %vm1358 = vcmp.lt.f32.partialorder %v1357, 0.0004427343
        %v1359 = vsel %vm1358, %v1356, %v1353
        %v1360 = vadd.f32 %v851, 1.0
        %v1361 = vlog2.pop %v1360
        %v1362 = vmul.f32 %v1361, 0.6931472
        %v1363 = vmul.f32 -0.5, %v851
        %v1364 = vadd.f32 %v1363, 1.0
        %v1365 = vmul.f32 %v1364, %v851
        %v1366 = vand.u32 2147483647, %v851
        %vm1367 = vcmp.lt.f32.partialorder %v1366, 0.0004427343
        %v1368 = vsel %vm1367, %v1365, %v1362
        %v1369 = vadd.f32 %v853, 1.0
        %v1370 = vlog2.pop %v1369
        %v1371 = vmul.f32 %v1370, 0.6931472
        %v1372 = vmul.f32 -0.5, %v853
        %v1373 = vadd.f32 %v1372, 1.0
        %v1374 = vmul.f32 %v1373, %v853
        %v1375 = vand.u32 2147483647, %v853
        %vm1376 = vcmp.lt.f32.partialorder %v1375, 0.0004427343
        %v1377 = vsel %vm1376, %v1374, %v1371
        %v1378 = vadd.f32 %v855, 1.0
        %v1379 = vlog2.pop %v1378
        %v1380 = vmul.f32 %v1379, 0.6931472
        %v1381 = vmul.f32 -0.5, %v855
        %v1382 = vadd.f32 %v1381, 1.0
        %v1383 = vmul.f32 %v1382, %v855
        %v1384 = vand.u32 2147483647, %v855
        %vm1385 = vcmp.lt.f32.partialorder %v1384, 0.0004427343
        %v1386 = vsel %vm1385, %v1383, %v1380
        %v1387 = vadd.f32 %v857, 1.0
        %v1388 = vlog2.pop %v1387
        %v1389 = vmul.f32 %v1388, 0.6931472
        %v1390 = vmul.f32 -0.5, %v857
        %v1391 = vadd.f32 %v1390, 1.0
        %v1392 = vmul.f32 %v1391, %v857
        %v1393 = vand.u32 2147483647, %v857
        %vm1394 = vcmp.lt.f32.partialorder %v1393, 0.0004427343
        %v1395 = vsel %vm1394, %v1392, %v1389
        %v1396 = vadd.f32 %v859, 1.0
        %v1397 = vlog2.pop %v1396
        %v1398 = vmul.f32 %v1397, 0.6931472
        %v1399 = vmul.f32 -0.5, %v859
        %v1400 = vadd.f32 %v1399, 1.0
        %v1401 = vmul.f32 %v1400, %v859
        %v1402 = vand.u32 2147483647, %v859
        %vm1403 = vcmp.lt.f32.partialorder %v1402, 0.0004427343
        %v1404 = vsel %vm1403, %v1401, %v1398
        %v1405 = vadd.f32 %v861, 1.0
        %v1406 = vlog2.pop %v1405
        %v1407 = vmul.f32 %v1406, 0.6931472
        %v1408 = vmul.f32 -0.5, %v861
        %v1409 = vadd.f32 %v1408, 1.0
        %v1410 = vmul.f32 %v1409, %v861
        %v1411 = vand.u32 2147483647, %v861
        %vm1412 = vcmp.lt.f32.partialorder %v1411, 0.0004427343
        %v1413 = vsel %vm1412, %v1410, %v1407
        %v1414 = vadd.f32 %v863, 1.0
        %v1415 = vlog2.pop %v1414
        %v1416 = vmul.f32 %v1415, 0.6931472
        %v1417 = vmul.f32 -0.5, %v863
        %v1418 = vadd.f32 %v1417, 1.0
        %v1419 = vmul.f32 %v1418, %v863
        %v1420 = vand.u32 2147483647, %v863
        %vm1421 = vcmp.lt.f32.partialorder %v1420, 0.0004427343
        %v1422 = vsel %vm1421, %v1419, %v1416
        %v1423 = vadd.f32 %v865, 1.0
        %v1424 = vlog2.pop %v1423
        %v1425 = vmul.f32 %v1424, 0.6931472
        %v1426 = vmul.f32 -0.5, %v865
        %v1427 = vadd.f32 %v1426, 1.0
        %v1428 = vmul.f32 %v1427, %v865
        %v1429 = vand.u32 2147483647, %v865
        %vm1430 = vcmp.lt.f32.partialorder %v1429, 0.0004427343
        %v1431 = vsel %vm1430, %v1428, %v1425
        %v1432 = vadd.f32 %v867, 1.0
        %v1433 = vlog2.pop %v1432
        %v1434 = vmul.f32 %v1433, 0.6931472
        %v1435 = vmul.f32 -0.5, %v867
        %v1436 = vadd.f32 %v1435, 1.0
        %v1437 = vmul.f32 %v1436, %v867
        %v1438 = vand.u32 2147483647, %v867
        %vm1439 = vcmp.lt.f32.partialorder %v1438, 0.0004427343
        %v1440 = vsel %vm1439, %v1437, %v1434
        %v1441 = vadd.f32 %v869, 1.0
        %v1442 = vlog2.pop %v1441
        %v1443 = vmul.f32 %v1442, 0.6931472
        %v1444 = vmul.f32 -0.5, %v869
        %v1445 = vadd.f32 %v1444, 1.0
        %v1446 = vmul.f32 %v1445, %v869
        %v1447 = vand.u32 2147483647, %v869
        %vm1448 = vcmp.lt.f32.partialorder %v1447, 0.0004427343
        %v1449 = vsel %vm1448, %v1446, %v1443
        %v1450 = vadd.f32 %v871, 1.0
        %v1451 = vlog2.pop %v1450
        %v1452 = vmul.f32 %v1451, 0.6931472
        %v1453 = vmul.f32 -0.5, %v871
        %v1454 = vadd.f32 %v1453, 1.0
        %v1455 = vmul.f32 %v1454, %v871
        %v1456 = vand.u32 2147483647, %v871
        %vm1457 = vcmp.lt.f32.partialorder %v1456, 0.0004427343
        %v1458 = vsel %vm1457, %v1455, %v1452
        %v1459 = vadd.f32 %v873, 1.0
        %v1460 = vlog2.pop %v1459
        %v1461 = vmul.f32 %v1460, 0.6931472
        %v1462 = vmul.f32 -0.5, %v873
        %v1463 = vadd.f32 %v1462, 1.0
        %v1464 = vmul.f32 %v1463, %v873
        %v1465 = vand.u32 2147483647, %v873
        %vm1466 = vcmp.lt.f32.partialorder %v1465, 0.0004427343
        %v1467 = vsel %vm1466, %v1464, %v1461
        %v1468 = vadd.f32 %v875, 1.0
        %v1469 = vlog2.pop %v1468
        %v1470 = vmul.f32 %v1469, 0.6931472
        %v1471 = vmul.f32 -0.5, %v875
        %v1472 = vadd.f32 %v1471, 1.0
        %v1473 = vmul.f32 %v1472, %v875
        %v1474 = vand.u32 2147483647, %v875
        %vm1475 = vcmp.lt.f32.partialorder %v1474, 0.0004427343
        %v1476 = vsel %vm1475, %v1473, %v1470
        %v1477 = vadd.f32 %v877, 1.0
        %v1478 = vlog2.pop %v1477
        %v1479 = vmul.f32 %v1478, 0.6931472
        %v1480 = vmul.f32 -0.5, %v877
        %v1481 = vadd.f32 %v1480, 1.0
        %v1482 = vmul.f32 %v1481, %v877
        %v1483 = vand.u32 2147483647, %v877
        %vm1484 = vcmp.lt.f32.partialorder %v1483, 0.0004427343
        %v1485 = vsel %vm1484, %v1482, %v1479
        %v1486 = vadd.f32 %v879, 1.0
        %v1487 = vlog2.pop %v1486
        %v1488 = vmul.f32 %v1487, 0.6931472
        %v1489 = vmul.f32 -0.5, %v879
        %v1490 = vadd.f32 %v1489, 1.0
        %v1491 = vmul.f32 %v1490, %v879
        %v1492 = vand.u32 2147483647, %v879
        %vm1493 = vcmp.lt.f32.partialorder %v1492, 0.0004427343
        %v1494 = vsel %vm1493, %v1491, %v1488
        %v1495 = vadd.f32 %v881, 1.0
        %v1496 = vlog2.pop %v1495
        %v1497 = vmul.f32 %v1496, 0.6931472
        %v1498 = vmul.f32 -0.5, %v881
        %v1499 = vadd.f32 %v1498, 1.0
        %v1500 = vmul.f32 %v1499, %v881
        %v1501 = vand.u32 2147483647, %v881
        %vm1502 = vcmp.lt.f32.partialorder %v1501, 0.0004427343
        %v1503 = vsel %vm1502, %v1500, %v1497
        %v1504 = vadd.f32 %v883, 1.0
        %v1505 = vlog2.pop %v1504
        %v1506 = vmul.f32 %v1505, 0.6931472
        %v1507 = vmul.f32 -0.5, %v883
        %v1508 = vadd.f32 %v1507, 1.0
        %v1509 = vmul.f32 %v1508, %v883
        %v1510 = vand.u32 2147483647, %v883
        %vm1511 = vcmp.lt.f32.partialorder %v1510, 0.0004427343
        %v1512 = vsel %vm1511, %v1509, %v1506
        %v1513 = vadd.f32 %v885, 1.0
        %v1514 = vlog2.pop %v1513
        %v1515 = vmul.f32 %v1514, 0.6931472
        %v1516 = vmul.f32 -0.5, %v885
        %v1517 = vadd.f32 %v1516, 1.0
        %v1518 = vmul.f32 %v1517, %v885
        %v1519 = vand.u32 2147483647, %v885
        %vm1520 = vcmp.lt.f32.partialorder %v1519, 0.0004427343
        %v1521 = vsel %vm1520, %v1518, %v1515
        %v1522 = vadd.f32 %v887, 1.0
        %v1523 = vlog2.pop %v1522
        %v1524 = vmul.f32 %v1523, 0.6931472
        %v1525 = vmul.f32 -0.5, %v887
        %v1526 = vadd.f32 %v1525, 1.0
        %v1527 = vmul.f32 %v1526, %v887
        %v1528 = vand.u32 2147483647, %v887
        %vm1529 = vcmp.lt.f32.partialorder %v1528, 0.0004427343
        %v1530 = vsel %vm1529, %v1527, %v1524
        %v1531 = vadd.f32 %v889, 1.0
        %v1532 = vlog2.pop %v1531
        %v1533 = vmul.f32 %v1532, 0.6931472
        %v1534 = vmul.f32 -0.5, %v889
        %v1535 = vadd.f32 %v1534, 1.0
        %v1536 = vmul.f32 %v1535, %v889
        %v1537 = vand.u32 2147483647, %v889
        %vm1538 = vcmp.lt.f32.partialorder %v1537, 0.0004427343
        %v1539 = vsel %vm1538, %v1536, %v1533
        %v1540 = vadd.f32 %v891, 1.0
        %v1541 = vlog2.pop %v1540
        %v1542 = vmul.f32 %v1541, 0.6931472
        %v1543 = vmul.f32 -0.5, %v891
        %v1544 = vadd.f32 %v1543, 1.0
        %v1545 = vmul.f32 %v1544, %v891
        %v1546 = vand.u32 2147483647, %v891
        %vm1547 = vcmp.lt.f32.partialorder %v1546, 0.0004427343
        %v1548 = vsel %vm1547, %v1545, %v1542
        %v1549 = vadd.f32 %v893, 1.0
        %v1550 = vlog2.pop %v1549
        %v1551 = vmul.f32 %v1550, 0.6931472
        %v1552 = vmul.f32 -0.5, %v893
        %v1553 = vadd.f32 %v1552, 1.0
        %v1554 = vmul.f32 %v1553, %v893
        %v1555 = vand.u32 2147483647, %v893
        %vm1556 = vcmp.lt.f32.partialorder %v1555, 0.0004427343
        %v1557 = vsel %vm1556, %v1554, %v1551
        %v1558 = vadd.f32 %v895, 1.0
        %v1559 = vlog2.pop %v1558
        %v1560 = vmul.f32 %v1559, 0.6931472
        %v1561 = vmul.f32 -0.5, %v895
        %v1562 = vadd.f32 %v1561, 1.0
        %v1563 = vmul.f32 %v1562, %v895
        %v1564 = vand.u32 2147483647, %v895
        %vm1565 = vcmp.lt.f32.partialorder %v1564, 0.0004427343
        %v1566 = vsel %vm1565, %v1563, %v1560
        %v1567 = vadd.f32 %v897, 1.0
        %v1568 = vlog2.pop %v1567
        %v1569 = vmul.f32 %v1568, 0.6931472
        %v1570 = vmul.f32 -0.5, %v897
        %v1571 = vadd.f32 %v1570, 1.0
        %v1572 = vmul.f32 %v1571, %v897
        %v1573 = vand.u32 2147483647, %v897
        %vm1574 = vcmp.lt.f32.partialorder %v1573, 0.0004427343
        %v1575 = vsel %vm1574, %v1572, %v1569
        %v1576 = vadd.f32 %v899, 1.0
        %v1577 = vlog2.pop %v1576
        %v1578 = vmul.f32 %v1577, 0.6931472
        %v1579 = vmul.f32 -0.5, %v899
        %v1580 = vadd.f32 %v1579, 1.0
        %v1581 = vmul.f32 %v1580, %v899
        %v1582 = vand.u32 2147483647, %v899
        %vm1583 = vcmp.lt.f32.partialorder %v1582, 0.0004427343
        %v1584 = vsel %vm1583, %v1581, %v1578
        %v1585 = vadd.f32 %v901, 1.0
        %v1586 = vlog2.pop %v1585
        %v1587 = vmul.f32 %v1586, 0.6931472
        %v1588 = vmul.f32 -0.5, %v901
        %v1589 = vadd.f32 %v1588, 1.0
        %v1590 = vmul.f32 %v1589, %v901
        %v1591 = vand.u32 2147483647, %v901
        %vm1592 = vcmp.lt.f32.partialorder %v1591, 0.0004427343
        %v1593 = vsel %vm1592, %v1590, %v1587
        %v1594 = vadd.f32 %v903, 1.0
        %v1595 = vlog2.pop %v1594
        %v1596 = vmul.f32 %v1595, 0.6931472
        %v1597 = vmul.f32 -0.5, %v903
        %v1598 = vadd.f32 %v1597, 1.0
        %v1599 = vmul.f32 %v1598, %v903
        %v1600 = vand.u32 2147483647, %v903
        %vm1601 = vcmp.lt.f32.partialorder %v1600, 0.0004427343
        %v1602 = vsel %vm1601, %v1599, %v1596
        %v1603 = vadd.f32 %v905, 1.0
        %v1604 = vlog2.pop %v1603
        %v1605 = vmul.f32 %v1604, 0.6931472
        %v1606 = vmul.f32 -0.5, %v905
        %v1607 = vadd.f32 %v1606, 1.0
        %v1608 = vmul.f32 %v1607, %v905
        %v1609 = vand.u32 2147483647, %v905
        %vm1610 = vcmp.lt.f32.partialorder %v1609, 0.0004427343
        %v1611 = vsel %vm1610, %v1608, %v1605
        %v1612 = vadd.f32 %v907, 1.0
        %v1613 = vlog2.pop %v1612
        %v1614 = vmul.f32 %v1613, 0.6931472
        %v1615 = vmul.f32 -0.5, %v907
        %v1616 = vadd.f32 %v1615, 1.0
        %v1617 = vmul.f32 %v1616, %v907
        %v1618 = vand.u32 2147483647, %v907
        %vm1619 = vcmp.lt.f32.partialorder %v1618, 0.0004427343
        %v1620 = vsel %vm1619, %v1617, %v1614
        %v1621 = vadd.f32 %v909, 1.0
        %v1622 = vlog2.pop %v1621
        %v1623 = vmul.f32 %v1622, 0.6931472
        %v1624 = vmul.f32 -0.5, %v909
        %v1625 = vadd.f32 %v1624, 1.0
        %v1626 = vmul.f32 %v1625, %v909
        %v1627 = vand.u32 2147483647, %v909
        %vm1628 = vcmp.lt.f32.partialorder %v1627, 0.0004427343
        %v1629 = vsel %vm1628, %v1626, %v1623
        %v1630 = vmax.f32 %v430, 0.0
        %v1631 = vmax.f32 %v431, 0.0
        %v1632 = vmax.f32 %v432, 0.0
        %v1633 = vmax.f32 %v433, 0.0
        %v1634 = vmax.f32 %v434, 0.0
        %v1635 = vmax.f32 %v435, 0.0
        %v1636 = vmax.f32 %v436, 0.0
        %v1637 = vmax.f32 %v437, 0.0
        %v1638 = vmax.f32 %v438, 0.0
        %v1639 = vmax.f32 %v439, 0.0
        %v1640 = vmax.f32 %v440, 0.0
        %v1641 = vmax.f32 %v441, 0.0
        %v1642 = vmax.f32 %v442, 0.0
        %v1643 = vmax.f32 %v443, 0.0
        %v1644 = vmax.f32 %v444, 0.0
        %v1645 = vmax.f32 %v445, 0.0
        %v1646 = vmax.f32 %v446, 0.0
        %v1647 = vmax.f32 %v447, 0.0
        %v1648 = vmax.f32 %v448, 0.0
        %v1649 = vmax.f32 %v449, 0.0
        %v1650 = vmax.f32 %v450, 0.0
        %v1651 = vmax.f32 %v451, 0.0
        %v1652 = vmax.f32 %v452, 0.0
        %v1653 = vmax.f32 %v453, 0.0
        %v1654 = vmax.f32 %v454, 0.0
        %v1655 = vmax.f32 %v455, 0.0
        %v1656 = vmax.f32 %v456, 0.0
        %v1657 = vmax.f32 %v457, 0.0
        %v1658 = vmax.f32 %v458, 0.0
        %v1659 = vmax.f32 %v459, 0.0
        %v1660 = vmax.f32 %v460, 0.0
        %v1661 = vmax.f32 %v461, 0.0
        %v1662 = vmax.f32 %v462, 0.0
        %v1663 = vmax.f32 %v463, 0.0
        %v1664 = vmax.f32 %v464, 0.0
        %v1665 = vmax.f32 %v465, 0.0
        %v1666 = vmax.f32 %v466, 0.0
        %v1667 = vmax.f32 %v467, 0.0
        %v1668 = vmax.f32 %v468, 0.0
        %v1669 = vmax.f32 %v469, 0.0
        %v1670 = vmax.f32 %v470, 0.0
        %v1671 = vmax.f32 %v471, 0.0
        %v1672 = vmax.f32 %v472, 0.0
        %v1673 = vmax.f32 %v473, 0.0
        %v1674 = vmax.f32 %v474, 0.0
        %v1675 = vmax.f32 %v475, 0.0
        %v1676 = vmax.f32 %v476, 0.0
        %v1677 = vmax.f32 %v477, 0.0
        %v1678 = vmax.f32 %v478, 0.0
        %v1679 = vmax.f32 %v479, 0.0
        %v1680 = vmax.f32 %v480, 0.0
        %v1681 = vmax.f32 %v481, 0.0
        %v1682 = vmax.f32 %v482, 0.0
        %v1683 = vmax.f32 %v483, 0.0
        %v1684 = vmax.f32 %v484, 0.0
        %v1685 = vmax.f32 %v485, 0.0
        %v1686 = vmax.f32 %v486, 0.0
        %v1687 = vmax.f32 %v487, 0.0
        %v1688 = vmax.f32 %v488, 0.0
        %v1689 = vmax.f32 %v489, 0.0
        %v1690 = vmax.f32 %v490, 0.0
        %v1691 = vmax.f32 %v491, 0.0
        %v1692 = vmax.f32 %v492, 0.0
        %v1693 = vmax.f32 %v493, 0.0
        %v1694 = vmax.f32 %v494, 0.0
        %v1695 = vmax.f32 %v495, 0.0
        %v1696 = vmax.f32 %v496, 0.0
        %v1697 = vmax.f32 %v497, 0.0
        %v1698 = vmax.f32 %v498, 0.0
        %v1699 = vmax.f32 %v499, 0.0
        %v1700 = vmax.f32 %v500, 0.0
        %v1701 = vmax.f32 %v501, 0.0
        %v1702 = vmax.f32 %v502, 0.0
        %v1703 = vmax.f32 %v503, 0.0
        %v1704 = vmax.f32 %v504, 0.0
        %v1705 = vmax.f32 %v505, 0.0
        %v1706 = vmax.f32 %v506, 0.0
        %v1707 = vmax.f32 %v507, 0.0
        %v1708 = vmax.f32 %v508, 0.0
        %v1709 = vmax.f32 %v509, 0.0
        %v1710 = vadd.f32 %v1630, %v918
        %v1711 = vadd.f32 %v1631, %v927
        %v1712 = vadd.f32 %v1632, %v936
        %v1713 = vadd.f32 %v1633, %v945
        %v1714 = vadd.f32 %v1634, %v954
        %v1715 = vadd.f32 %v1635, %v963
        %v1716 = vadd.f32 %v1636, %v972
        %v1717 = vadd.f32 %v1637, %v981
        %v1718 = vadd.f32 %v1638, %v990
        %v1719 = vadd.f32 %v1639, %v999
        %v1720 = vadd.f32 %v1640, %v1008
        %v1721 = vadd.f32 %v1641, %v1017
        %v1722 = vadd.f32 %v1642, %v1026
        %v1723 = vadd.f32 %v1643, %v1035
        %v1724 = vadd.f32 %v1644, %v1044
        %v1725 = vadd.f32 %v1645, %v1053
        %v1726 = vadd.f32 %v1646, %v1062
        %v1727 = vadd.f32 %v1647, %v1071
        %v1728 = vadd.f32 %v1648, %v1080
        %v1729 = vadd.f32 %v1649, %v1089
        %v1730 = vadd.f32 %v1650, %v1098
        %v1731 = vadd.f32 %v1651, %v1107
        %v1732 = vadd.f32 %v1652, %v1116
        %v1733 = vadd.f32 %v1653, %v1125
        %v1734 = vadd.f32 %v1654, %v1134
        %v1735 = vadd.f32 %v1655, %v1143
        %v1736 = vadd.f32 %v1656, %v1152
        %v1737 = vadd.f32 %v1657, %v1161
        %v1738 = vadd.f32 %v1658, %v1170
        %v1739 = vadd.f32 %v1659, %v1179
        %v1740 = vadd.f32 %v1660, %v1188
        %v1741 = vadd.f32 %v1661, %v1197
        %v1742 = vadd.f32 %v1662, %v1206
        %v1743 = vadd.f32 %v1663, %v1215
        %v1744 = vadd.f32 %v1664, %v1224
        %v1745 = vadd.f32 %v1665, %v1233
        %v1746 = vadd.f32 %v1666, %v1242
        %v1747 = vadd.f32 %v1667, %v1251
        %v1748 = vadd.f32 %v1668, %v1260
        %v1749 = vadd.f32 %v1669, %v1269
        %v1750 = vadd.f32 %v1670, %v1278
        %v1751 = vadd.f32 %v1671, %v1287
        %v1752 = vadd.f32 %v1672, %v1296
        %v1753 = vadd.f32 %v1673, %v1305
        %v1754 = vadd.f32 %v1674, %v1314
        %v1755 = vadd.f32 %v1675, %v1323
        %v1756 = vadd.f32 %v1676, %v1332
        %v1757 = vadd.f32 %v1677, %v1341
        %v1758 = vadd.f32 %v1678, %v1350
        %v1759 = vadd.f32 %v1679, %v1359
        %v1760 = vadd.f32 %v1680, %v1368
        %v1761 = vadd.f32 %v1681, %v1377
        %v1762 = vadd.f32 %v1682, %v1386
        %v1763 = vadd.f32 %v1683, %v1395
        %v1764 = vadd.f32 %v1684, %v1404
        %v1765 = vadd.f32 %v1685, %v1413
        %v1766 = vadd.f32 %v1686, %v1422
        %v1767 = vadd.f32 %v1687, %v1431
        %v1768 = vadd.f32 %v1688, %v1440
        %v1769 = vadd.f32 %v1689, %v1449
        %v1770 = vadd.f32 %v1690, %v1458
        %v1771 = vadd.f32 %v1691, %v1467
        %v1772 = vadd.f32 %v1692, %v1476
        %v1773 = vadd.f32 %v1693, %v1485
        %v1774 = vadd.f32 %v1694, %v1494
        %v1775 = vadd.f32 %v1695, %v1503
        %v1776 = vadd.f32 %v1696, %v1512
        %v1777 = vadd.f32 %v1697, %v1521
        %v1778 = vadd.f32 %v1698, %v1530
        %v1779 = vadd.f32 %v1699, %v1539
        %v1780 = vadd.f32 %v1700, %v1548
        %v1781 = vadd.f32 %v1701, %v1557
        %v1782 = vadd.f32 %v1702, %v1566
        %v1783 = vadd.f32 %v1703, %v1575
        %v1784 = vadd.f32 %v1704, %v1584
        %v1785 = vadd.f32 %v1705, %v1593
        %v1786 = vadd.f32 %v1706, %v1602
        %v1787 = vadd.f32 %v1707, %v1611
        %v1788 = vadd.f32 %v1708, %v1620
        %v1789 = vadd.f32 %v1709, %v1629
        %v1790 = vld [vmem:[%s348] sm:$0xff]
        %v1791 = vld [vmem:[%s348 + $0x8] sm:$0xff]
        %v1792 = vld [vmem:[%s348 + $0x10] sm:$0xff]
        %v1793 = vld [vmem:[%s348 + $0x18] sm:$0xff]
        %v1794 = vld [vmem:[%s348 + $0x20] sm:$0xff]
        %v1795 = vld [vmem:[%s348 + $0x28] sm:$0xff]
        %v1796 = vld [vmem:[%s348 + $0x30] sm:$0xff]
        %v1797 = vld [vmem:[%s348 + $0x38] sm:$0xff]
        %v1798 = vld [vmem:[%s348 + $0x40] sm:$0xff]
        %v1799 = vld [vmem:[%s348 + $0x48] sm:$0xff]
        %v1800 = vld [vmem:[%s348 + $0x50] sm:$0xff]
        %v1801 = vld [vmem:[%s348 + $0x58] sm:$0xff]
        %v1802 = vld [vmem:[%s348 + $0x60] sm:$0xff]
        %v1803 = vld [vmem:[%s348 + $0x68] sm:$0xff]
        %v1804 = vld [vmem:[%s348 + $0x70] sm:$0xff]
        %v1805 = vld [vmem:[%s348 + $0x78] sm:$0xff]
        %v1806 = vld [vmem:[%s348 + $0x80] sm:$0xff]
        %v1807 = vld [vmem:[%s348 + $0x88] sm:$0xff]
        %v1808 = vld [vmem:[%s348 + $0x90] sm:$0xff]
        %v1809 = vld [vmem:[%s348 + $0x98] sm:$0xff]
        %v1810 = vld [vmem:[%s348 + $0xa0] sm:$0xff]
        %v1811 = vld [vmem:[%s348 + $0xa8] sm:$0xff]
        %v1812 = vld [vmem:[%s348 + $0xb0] sm:$0xff]
        %v1813 = vld [vmem:[%s348 + $0xb8] sm:$0xff]
        %v1814 = vld [vmem:[%s348 + $0xc0] sm:$0xff]
        %v1815 = vld [vmem:[%s348 + $0xc8] sm:$0xff]
        %v1816 = vld [vmem:[%s348 + $0xd0] sm:$0xff]
        %v1817 = vld [vmem:[%s348 + $0xd8] sm:$0xff]
        %v1818 = vld [vmem:[%s348 + $0xe0] sm:$0xff]
        %v1819 = vld [vmem:[%s348 + $0xe8] sm:$0xff]
        %v1820 = vld [vmem:[%s348 + $0xf0] sm:$0xff]
        %v1821 = vld [vmem:[%s348 + $0xf8] sm:$0xff]
        %v1822 = vld [vmem:[%s348 + $0x100] sm:$0xff]
        %v1823 = vld [vmem:[%s348 + $0x108] sm:$0xff]
        %v1824 = vld [vmem:[%s348 + $0x110] sm:$0xff]
        %v1825 = vld [vmem:[%s348 + $0x118] sm:$0xff]
        %v1826 = vld [vmem:[%s348 + $0x120] sm:$0xff]
        %v1827 = vld [vmem:[%s348 + $0x128] sm:$0xff]
        %v1828 = vld [vmem:[%s348 + $0x130] sm:$0xff]
        %v1829 = vld [vmem:[%s348 + $0x138] sm:$0xff]
        %v1830 = vld [vmem:[%s348 + $0x140] sm:$0xff]
        %v1831 = vld [vmem:[%s348 + $0x148] sm:$0xff]
        %v1832 = vld [vmem:[%s348 + $0x150] sm:$0xff]
        %v1833 = vld [vmem:[%s348 + $0x158] sm:$0xff]
        %v1834 = vld [vmem:[%s348 + $0x160] sm:$0xff]
        %v1835 = vld [vmem:[%s348 + $0x168] sm:$0xff]
        %v1836 = vld [vmem:[%s348 + $0x170] sm:$0xff]
        %v1837 = vld [vmem:[%s348 + $0x178] sm:$0xff]
        %v1838 = vld [vmem:[%s348 + $0x180] sm:$0xff]
        %v1839 = vld [vmem:[%s348 + $0x188] sm:$0xff]
        %v1840 = vld [vmem:[%s348 + $0x190] sm:$0xff]
        %v1841 = vld [vmem:[%s348 + $0x198] sm:$0xff]
        %v1842 = vld [vmem:[%s348 + $0x1a0] sm:$0xff]
        %v1843 = vld [vmem:[%s348 + $0x1a8] sm:$0xff]
        %v1844 = vld [vmem:[%s348 + $0x1b0] sm:$0xff]
        %v1845 = vld [vmem:[%s348 + $0x1b8] sm:$0xff]
        %v1846 = vld [vmem:[%s348 + $0x1c0] sm:$0xff]
        %v1847 = vld [vmem:[%s348 + $0x1c8] sm:$0xff]
        %v1848 = vld [vmem:[%s348 + $0x1d0] sm:$0xff]
        %v1849 = vld [vmem:[%s348 + $0x1d8] sm:$0xff]
        %v1850 = vld [vmem:[%s348 + $0x1e0] sm:$0xff]
        %v1851 = vld [vmem:[%s348 + $0x1e8] sm:$0xff]
        %v1852 = vld [vmem:[%s348 + $0x1f0] sm:$0xff]
        %v1853 = vld [vmem:[%s348 + $0x1f8] sm:$0xff]
        %v1854 = vld [vmem:[%s348 + $0x200] sm:$0xff]
        %v1855 = vld [vmem:[%s348 + $0x208] sm:$0xff]
        %v1856 = vld [vmem:[%s348 + $0x210] sm:$0xff]
        %v1857 = vld [vmem:[%s348 + $0x218] sm:$0xff]
        %v1858 = vld [vmem:[%s348 + $0x220] sm:$0xff]
        %v1859 = vld [vmem:[%s348 + $0x228] sm:$0xff]
        %v1860 = vld [vmem:[%s348 + $0x230] sm:$0xff]
        %v1861 = vld [vmem:[%s348 + $0x238] sm:$0xff]
        %v1862 = vld [vmem:[%s348 + $0x240] sm:$0xff]
        %v1863 = vld [vmem:[%s348 + $0x248] sm:$0xff]
        %v1864 = vld [vmem:[%s348 + $0x250] sm:$0xff]
        %v1865 = vld [vmem:[%s348 + $0x258] sm:$0xff]
        %v1866 = vld [vmem:[%s348 + $0x260] sm:$0xff]
        %v1867 = vld [vmem:[%s348 + $0x268] sm:$0xff]
        %v1868 = vld [vmem:[%s348 + $0x270] sm:$0xff]
        %v1869 = vld [vmem:[%s348 + $0x278] sm:$0xff]
        %v1870 = vmul.f32 %v1710, %v510
        %v1871 = vmul.f32 %v1711, %v511
        %v1872 = vmul.f32 %v1712, %v512
        %v1873 = vmul.f32 %v1713, %v513
        %v1874 = vmul.f32 %v1714, %v514
        %v1875 = vmul.f32 %v1715, %v515
        %v1876 = vmul.f32 %v1716, %v516
        %v1877 = vmul.f32 %v1717, %v517
        %v1878 = vmul.f32 %v1718, %v518
        %v1879 = vmul.f32 %v1719, %v519
        %v1880 = vmul.f32 %v1720, %v520
        %v1881 = vmul.f32 %v1721, %v521
        %v1882 = vmul.f32 %v1722, %v522
        %v1883 = vmul.f32 %v1723, %v523
        %v1884 = vmul.f32 %v1724, %v524
        %v1885 = vmul.f32 %v1725, %v525
        %v1886 = vmul.f32 %v1726, %v526
        %v1887 = vmul.f32 %v1727, %v527
        %v1888 = vmul.f32 %v1728, %v528
        %v1889 = vmul.f32 %v1729, %v529
        %v1890 = vmul.f32 %v1730, %v530
        %v1891 = vmul.f32 %v1731, %v531
        %v1892 = vmul.f32 %v1732, %v532
        %v1893 = vmul.f32 %v1733, %v533
        %v1894 = vmul.f32 %v1734, %v534
        %v1895 = vmul.f32 %v1735, %v535
        %v1896 = vmul.f32 %v1736, %v536
        %v1897 = vmul.f32 %v1737, %v537
        %v1898 = vmul.f32 %v1738, %v538
        %v1899 = vmul.f32 %v1739, %v539
        %v1900 = vmul.f32 %v1740, %v540
        %v1901 = vmul.f32 %v1741, %v541
        %v1902 = vmul.f32 %v1742, %v542
        %v1903 = vmul.f32 %v1743, %v543
        %v1904 = vmul.f32 %v1744, %v544
        %v1905 = vmul.f32 %v1745, %v545
        %v1906 = vmul.f32 %v1746, %v546
        %v1907 = vmul.f32 %v1747, %v547
        %v1908 = vmul.f32 %v1748, %v548
        %v1909 = vmul.f32 %v1749, %v549
        %v1910 = vmul.f32 %v1750, %v550
        %v1911 = vmul.f32 %v1751, %v551
        %v1912 = vmul.f32 %v1752, %v552
        %v1913 = vmul.f32 %v1753, %v553
        %v1914 = vmul.f32 %v1754, %v554
        %v1915 = vmul.f32 %v1755, %v555
        %v1916 = vmul.f32 %v1756, %v556
        %v1917 = vmul.f32 %v1757, %v557
        %v1918 = vmul.f32 %v1758, %v558
        %v1919 = vmul.f32 %v1759, %v559
        %v1920 = vmul.f32 %v1760, %v560
        %v1921 = vmul.f32 %v1761, %v561
        %v1922 = vmul.f32 %v1762, %v562
        %v1923 = vmul.f32 %v1763, %v563
        %v1924 = vmul.f32 %v1764, %v564
        %v1925 = vmul.f32 %v1765, %v565
        %v1926 = vmul.f32 %v1766, %v566
        %v1927 = vmul.f32 %v1767, %v567
        %v1928 = vmul.f32 %v1768, %v568
        %v1929 = vmul.f32 %v1769, %v569
        %v1930 = vmul.f32 %v1770, %v570
        %v1931 = vmul.f32 %v1771, %v571
        %v1932 = vmul.f32 %v1772, %v572
        %v1933 = vmul.f32 %v1773, %v573
        %v1934 = vmul.f32 %v1774, %v574
        %v1935 = vmul.f32 %v1775, %v575
        %v1936 = vmul.f32 %v1776, %v576
        %v1937 = vmul.f32 %v1777, %v577
        %v1938 = vmul.f32 %v1778, %v578
        %v1939 = vmul.f32 %v1779, %v579
        %v1940 = vmul.f32 %v1780, %v580
        %v1941 = vmul.f32 %v1781, %v581
        %v1942 = vmul.f32 %v1782, %v582
        %v1943 = vmul.f32 %v1783, %v583
        %v1944 = vmul.f32 %v1784, %v584
        %v1945 = vmul.f32 %v1785, %v585
        %v1946 = vmul.f32 %v1786, %v586
        %v1947 = vmul.f32 %v1787, %v587
        %v1948 = vmul.f32 %v1788, %v588
        %v1949 = vmul.f32 %v1789, %v589
        %v1950 = vadd.f32 %v1790, %v1870
        %v1951 = vadd.f32 %v1791, %v1871
        %v1952 = vadd.f32 %v1792, %v1872
        %v1953 = vadd.f32 %v1793, %v1873
        %v1954 = vadd.f32 %v1794, %v1874
        %v1955 = vadd.f32 %v1795, %v1875
        %v1956 = vadd.f32 %v1796, %v1876
        %v1957 = vadd.f32 %v1797, %v1877
        %v1958 = vadd.f32 %v1798, %v1878
        %v1959 = vadd.f32 %v1799, %v1879
        %v1960 = vadd.f32 %v1800, %v1880
        %v1961 = vadd.f32 %v1801, %v1881
        %v1962 = vadd.f32 %v1802, %v1882
        %v1963 = vadd.f32 %v1803, %v1883
        %v1964 = vadd.f32 %v1804, %v1884
        %v1965 = vadd.f32 %v1805, %v1885
        %v1966 = vadd.f32 %v1806, %v1886
        %v1967 = vadd.f32 %v1807, %v1887
        %v1968 = vadd.f32 %v1808, %v1888
        %v1969 = vadd.f32 %v1809, %v1889
        %v1970 = vadd.f32 %v1810, %v1890
        %v1971 = vadd.f32 %v1811, %v1891
        %v1972 = vadd.f32 %v1812, %v1892
        %v1973 = vadd.f32 %v1813, %v1893
        %v1974 = vadd.f32 %v1814, %v1894
        %v1975 = vadd.f32 %v1815, %v1895
        %v1976 = vadd.f32 %v1816, %v1896
        %v1977 = vadd.f32 %v1817, %v1897
        %v1978 = vadd.f32 %v1818, %v1898
        %v1979 = vadd.f32 %v1819, %v1899
        %v1980 = vadd.f32 %v1820, %v1900
        %v1981 = vadd.f32 %v1821, %v1901
        %v1982 = vadd.f32 %v1822, %v1902
        %v1983 = vadd.f32 %v1823, %v1903
        %v1984 = vadd.f32 %v1824, %v1904
        %v1985 = vadd.f32 %v1825, %v1905
        %v1986 = vadd.f32 %v1826, %v1906
        %v1987 = vadd.f32 %v1827, %v1907
        %v1988 = vadd.f32 %v1828, %v1908
        %v1989 = vadd.f32 %v1829, %v1909
        %v1990 = vadd.f32 %v1830, %v1910
        %v1991 = vadd.f32 %v1831, %v1911
        %v1992 = vadd.f32 %v1832, %v1912
        %v1993 = vadd.f32 %v1833, %v1913
        %v1994 = vadd.f32 %v1834, %v1914
        %v1995 = vadd.f32 %v1835, %v1915
        %v1996 = vadd.f32 %v1836, %v1916
        %v1997 = vadd.f32 %v1837, %v1917
        %v1998 = vadd.f32 %v1838, %v1918
        %v1999 = vadd.f32 %v1839, %v1919
        %v2000 = vadd.f32 %v1840, %v1920
        %v2001 = vadd.f32 %v1841, %v1921
        %v2002 = vadd.f32 %v1842, %v1922
        %v2003 = vadd.f32 %v1843, %v1923
        %v2004 = vadd.f32 %v1844, %v1924
        %v2005 = vadd.f32 %v1845, %v1925
        %v2006 = vadd.f32 %v1846, %v1926
        %v2007 = vadd.f32 %v1847, %v1927
        %v2008 = vadd.f32 %v1848, %v1928
        %v2009 = vadd.f32 %v1849, %v1929
        %v2010 = vadd.f32 %v1850, %v1930
        %v2011 = vadd.f32 %v1851, %v1931
        %v2012 = vadd.f32 %v1852, %v1932
        %v2013 = vadd.f32 %v1853, %v1933
        %v2014 = vadd.f32 %v1854, %v1934
        %v2015 = vadd.f32 %v1855, %v1935
        %v2016 = vadd.f32 %v1856, %v1936
        %v2017 = vadd.f32 %v1857, %v1937
        %v2018 = vadd.f32 %v1858, %v1938
        %v2019 = vadd.f32 %v1859, %v1939
        %v2020 = vadd.f32 %v1860, %v1940
        %v2021 = vadd.f32 %v1861, %v1941
        %v2022 = vadd.f32 %v1862, %v1942
        %v2023 = vadd.f32 %v1863, %v1943
        %v2024 = vadd.f32 %v1864, %v1944
        %v2025 = vadd.f32 %v1865, %v1945
        %v2026 = vadd.f32 %v1866, %v1946
        %v2027 = vadd.f32 %v1867, %v1947
        %v2028 = vadd.f32 %v1868, %v1948
        %v2029 = vadd.f32 %v1869, %v1949
        %v2030 = vld [vmem:[#allocation2] sm:$0xff]
        %v2031 = vld [vmem:[#allocation2 + $0x8] sm:$0xff]
        %v2032 = vld [vmem:[#allocation3] sm:$0xff]
        %v2033 = vld [vmem:[#allocation3 + $0x8] sm:$0xff]
        %v2034 = vld [vmem:[#allocation3 + $0x10] sm:$0xff]
        %v2035 = vld [vmem:[#allocation3 + $0x18] sm:$0xff]
        %v2036 = vld [vmem:[#allocation3 + $0x20] sm:$0xff]
        %v2037 = vld [vmem:[#allocation3 + $0x28] sm:$0xff]
        %v2038 = vld [vmem:[#allocation3 + $0x30] sm:$0xff]
        %v2039 = vld [vmem:[#allocation3 + $0x38] sm:$0xff]
        %v2040 = vld [vmem:[#allocation3 + $0x40] sm:$0xff]
        %v2041 = vld [vmem:[#allocation3 + $0x48] sm:$0xff]
        %2042 = vmatprep.subr.mxu0 %v2026
        %2043 = vmatpush1.xpose.msra.mxu0 %v2025
        %2044 = vmatprep.subr.mxu0 %v2021
        %2045 = vmatpush1.xpose.msra.mxu0 %v2020
        %2046 = vmatprep.subr.mxu0 %v2016
        %2047 = vmatpush1.xpose.msra.mxu0 %v2015
        %2048 = vmatprep.subr.mxu0 %v2011
        %2049 = vmatpush1.xpose.msra.mxu0 %v2010
        %2050 = vmatprep.subr.mxu0 %v2006
        %2051 = vmatpush1.xpose.msra.mxu0 %v2005
        %2052 = vmatprep.subr.mxu0 %v2001
        %2053 = vmatpush1.xpose.msra.mxu0 %v2000
        %2054 = vmatprep.subr.mxu0 %v1996
        %2055 = vmatpush1.xpose.msra.mxu0 %v1995
        %2056 = vmatprep.subr.mxu0 %v1991
        %2057 = vmatpush1.xpose.msra.mxu0 %v1990
        %2058 = vmatprep.subr.mxu0 %v1986
        %2059 = vmatpush1.xpose.msra.mxu0 %v1985
        %2060 = vmatprep.subr.mxu0 %v1981
        %2061 = vmatpush1.xpose.msra.mxu0 %v1980
        %2062 = vmatprep.subr.mxu0 %v1976
        %2063 = vmatpush1.xpose.msra.mxu0 %v1975
        %2064 = vmatprep.subr.mxu0 %v1971
        %2065 = vmatpush1.xpose.msra.mxu0 %v1970
        %2066 = vmatprep.subr.mxu0 %v1966
        %2067 = vmatpush1.xpose.msra.mxu0 %v1965
        %2068 = vmatprep.subr.mxu0 %v1961
        %2069 = vmatpush1.xpose.msra.mxu0 %v1960
        %2070 = vmatprep.subr.mxu0 %v1956
        %2071 = vmatpush1.xpose.msra.mxu0 %v1955
        %2072 = vmatprep.subr.mxu0 %v1951
        %2073 = vmatpush1.xpose.msra.mxu0 %v1950
        %2074 = vmatprep.subr.mxu0 0.0
        %2075 = vmatpush2.xpose.msra.mxu0 0.0
        %2076 = vmatprep.subr.mxu0 0.0
        %2077 = vmatpush2.xpose.msra.mxu0 0.0
        %2078 = vmatprep.subr.mxu0 0.0
        %2079 = vmatpush2.xpose.msra.mxu0 0.0
        %2080 = vmatprep.subr.mxu0 0.0
        %2081 = vmatpush2.xpose.msra.mxu0 0.0
        %2082 = vmatprep.subr.mxu0 0.0
        %2083 = vmatpush2.xpose.msra.mxu0 0.0
        %2084 = vmatprep.subr.mxu0 0.0
        %2085 = vmatpush2.xpose.msra.mxu0 0.0
        %2086 = vmatprep.subr.mxu0 0.0
        %2087 = vmatpush2.xpose.msra.mxu0 0.0
        %2088 = vmatprep.subr.mxu0 0.0
        %2089 = vmatpush2.xpose.msra.mxu0 0.0
        %2090 = vmatprep.subr.mxu0 0.0
        %2091 = vmatpush2.xpose.msra.mxu0 0.0
        %2092 = vmatprep.subr.mxu0 0.0
        %2093 = vmatpush2.xpose.msra.mxu0 0.0
        %2094 = vmatprep.subr.mxu0 0.0
        %2095 = vmatpush2.xpose.msra.mxu0 0.0
        %2096 = vmatprep.subr.mxu0 0.0
        %2097 = vmatpush2.xpose.msra.mxu0 0.0
        %2098 = vmatprep.subr.mxu0 0.0
        %2099 = vmatpush2.xpose.msra.mxu0 0.0
        %2100 = vmatprep.subr.mxu0 0.0
        %2101 = vmatpush2.xpose.msra.mxu0 0.0
        %2102 = vmatprep.subr.mxu0 0.0
        %2103 = vmatpush2.xpose.msra.mxu0 0.0
        %2104 = vmatprep.subr.mxu0 0.0
        %2105 = vmatpush2.xpose.msra.mxu0 0.0
        %2106 = vmatprep.mubr.f32.mxu0 %v2033
        %2107 = vmatmul.mubr.f32.gmra.mxu0 %v2032
        %v2108 = vpop.f32.mrf.mxu0
        %v2109 = vadd.f32 0.0, %v2108
        %v2110 = vpop.f32.mrf.mxu0
        %2111 = vmatprep.mubr.f32.mxu0 %v2038
        %2112 = vmatmul.mubr.f32.gmra.mxu0 %v2037
        %v2113 = vpop.f32.mrf.mxu0
        %v2114 = vadd.f32 0.0, %v2113
        %v2115 = vpop.f32.mrf.mxu0
        %2116 = vdwg.mxu0
        %2117 = vmatprep.subr.mxu0 %v2028
        %2118 = vmatpush1.xpose.msra.mxu0 %v2027
        %2119 = vmatprep.subr.mxu0 %v2023
        %2120 = vmatpush1.xpose.msra.mxu0 %v2022
        %2121 = vmatprep.subr.mxu0 %v2018
        %2122 = vmatpush1.xpose.msra.mxu0 %v2017
        %2123 = vmatprep.subr.mxu0 %v2013
        %2124 = vmatpush1.xpose.msra.mxu0 %v2012
        %2125 = vmatprep.subr.mxu0 %v2008
        %2126 = vmatpush1.xpose.msra.mxu0 %v2007
        %2127 = vmatprep.subr.mxu0 %v2003
        %2128 = vmatpush1.xpose.msra.mxu0 %v2002
        %2129 = vmatprep.subr.mxu0 %v1998
        %2130 = vmatpush1.xpose.msra.mxu0 %v1997
        %2131 = vmatprep.subr.mxu0 %v1993
        %2132 = vmatpush1.xpose.msra.mxu0 %v1992
        %2133 = vmatprep.subr.mxu0 %v1988
        %2134 = vmatpush1.xpose.msra.mxu0 %v1987
        %2135 = vmatprep.subr.mxu0 %v1983
        %2136 = vmatpush1.xpose.msra.mxu0 %v1982
        %2137 = vmatprep.subr.mxu0 %v1978
        %2138 = vmatpush1.xpose.msra.mxu0 %v1977
        %2139 = vmatprep.subr.mxu0 %v1973
        %2140 = vmatpush1.xpose.msra.mxu0 %v1972
        %2141 = vmatprep.subr.mxu0 %v1968
        %2142 = vmatpush1.xpose.msra.mxu0 %v1967
        %2143 = vmatprep.subr.mxu0 %v1963
        %2144 = vmatpush1.xpose.msra.mxu0 %v1962
        %2145 = vmatprep.subr.mxu0 %v1958
        %2146 = vmatpush1.xpose.msra.mxu0 %v1957
        %2147 = vmatprep.subr.mxu0 %v1953
        %2148 = vmatpush1.xpose.msra.mxu0 %v1952
        %2149 = vmatprep.subr.mxu0 0.0
        %2150 = vmatpush2.xpose.msra.mxu0 0.0
        %2151 = vmatprep.subr.mxu0 0.0
        %2152 = vmatpush2.xpose.msra.mxu0 0.0
        %2153 = vmatprep.subr.mxu0 0.0
        %2154 = vmatpush2.xpose.msra.mxu0 0.0
        %2155 = vmatprep.subr.mxu0 0.0
        %2156 = vmatpush2.xpose.msra.mxu0 0.0
        %2157 = vmatprep.subr.mxu0 0.0
        %2158 = vmatpush2.xpose.msra.mxu0 0.0
        %2159 = vmatprep.subr.mxu0 0.0
        %2160 = vmatpush2.xpose.msra.mxu0 0.0
        %2161 = vmatprep.subr.mxu0 0.0
        %2162 = vmatpush2.xpose.msra.mxu0 0.0
        %2163 = vmatprep.subr.mxu0 0.0
        %2164 = vmatpush2.xpose.msra.mxu0 0.0
        %2165 = vmatprep.subr.mxu0 0.0
        %2166 = vmatpush2.xpose.msra.mxu0 0.0
        %2167 = vmatprep.subr.mxu0 0.0
        %2168 = vmatpush2.xpose.msra.mxu0 0.0
        %2169 = vmatprep.subr.mxu0 0.0
        %2170 = vmatpush2.xpose.msra.mxu0 0.0
        %2171 = vmatprep.subr.mxu0 0.0
        %2172 = vmatpush2.xpose.msra.mxu0 0.0
        %2173 = vmatprep.subr.mxu0 0.0
        %2174 = vmatpush2.xpose.msra.mxu0 0.0
        %2175 = vmatprep.subr.mxu0 0.0
        %2176 = vmatpush2.xpose.msra.mxu0 0.0
        %2177 = vmatprep.subr.mxu0 0.0
        %2178 = vmatpush2.xpose.msra.mxu0 0.0
        %2179 = vmatprep.subr.mxu0 0.0
        %2180 = vmatpush2.xpose.msra.mxu0 0.0
        %2181 = vmatprep.mubr.f32.mxu0 %v2035
        %2182 = vmatmul.mubr.f32.gmra.mxu0 %v2034
        %v2183 = vpop.f32.mrf.mxu0
        %v2184 = vadd.f32 %v2109, %v2183
        %v2185 = vpop.f32.mrf.mxu0
        %2186 = vmatprep.mubr.f32.mxu0 %v2040
        %2187 = vmatmul.mubr.f32.gmra.mxu0 %v2039
        %v2188 = vpop.f32.mrf.mxu0
        %v2189 = vadd.f32 %v2114, %v2188
        %v2190 = vpop.f32.mrf.mxu0
        %2191 = vdwg.mxu0
        %2192 = vmatprep.subr.mxu0 0.0
        %2193 = vmatpush1.xpose.msra.mxu0 %v2029
        %2194 = vmatprep.subr.mxu0 0.0
        %2195 = vmatpush1.xpose.msra.mxu0 %v2024
        %2196 = vmatprep.subr.mxu0 0.0
        %2197 = vmatpush1.xpose.msra.mxu0 %v2019
        %2198 = vmatprep.subr.mxu0 0.0
        %2199 = vmatpush1.xpose.msra.mxu0 %v2014
        %2200 = vmatprep.subr.mxu0 0.0
        %2201 = vmatpush1.xpose.msra.mxu0 %v2009
        %2202 = vmatprep.subr.mxu0 0.0
        %2203 = vmatpush1.xpose.msra.mxu0 %v2004
        %2204 = vmatprep.subr.mxu0 0.0
        %2205 = vmatpush1.xpose.msra.mxu0 %v1999
        %2206 = vmatprep.subr.mxu0 0.0
        %2207 = vmatpush1.xpose.msra.mxu0 %v1994
        %2208 = vmatprep.subr.mxu0 0.0
        %2209 = vmatpush1.xpose.msra.mxu0 %v1989
        %2210 = vmatprep.subr.mxu0 0.0
        %2211 = vmatpush1.xpose.msra.mxu0 %v1984
        %2212 = vmatprep.subr.mxu0 0.0
        %2213 = vmatpush1.xpose.msra.mxu0 %v1979
        %2214 = vmatprep.subr.mxu0 0.0
        %2215 = vmatpush1.xpose.msra.mxu0 %v1974
        %2216 = vmatprep.subr.mxu0 0.0
        %2217 = vmatpush1.xpose.msra.mxu0 %v1969
        %2218 = vmatprep.subr.mxu0 0.0
        %2219 = vmatpush1.xpose.msra.mxu0 %v1964
        %2220 = vmatprep.subr.mxu0 0.0
        %2221 = vmatpush1.xpose.msra.mxu0 %v1959
        %2222 = vmatprep.subr.mxu0 0.0
        %2223 = vmatpush1.xpose.msra.mxu0 %v1954
        %2224 = vmatprep.subr.mxu0 0.0
        %2225 = vmatpush2.xpose.msra.mxu0 0.0
        %2226 = vmatprep.subr.mxu0 0.0
        %2227 = vmatpush2.xpose.msra.mxu0 0.0
        %2228 = vmatprep.subr.mxu0 0.0
        %2229 = vmatpush2.xpose.msra.mxu0 0.0
        %2230 = vmatprep.subr.mxu0 0.0
        %2231 = vmatpush2.xpose.msra.mxu0 0.0
        %2232 = vmatprep.subr.mxu0 0.0
        %2233 = vmatpush2.xpose.msra.mxu0 0.0
        %2234 = vmatprep.subr.mxu0 0.0
        %2235 = vmatpush2.xpose.msra.mxu0 0.0
        %2236 = vmatprep.subr.mxu0 0.0
        %2237 = vmatpush2.xpose.msra.mxu0 0.0
        %2238 = vmatprep.subr.mxu0 0.0
        %2239 = vmatpush2.xpose.msra.mxu0 0.0
        %2240 = vmatprep.subr.mxu0 0.0
        %2241 = vmatpush2.xpose.msra.mxu0 0.0
        %2242 = vmatprep.subr.mxu0 0.0
        %2243 = vmatpush2.xpose.msra.mxu0 0.0
        %2244 = vmatprep.subr.mxu0 0.0
        %2245 = vmatpush2.xpose.msra.mxu0 0.0
        %2246 = vmatprep.subr.mxu0 0.0
        %2247 = vmatpush2.xpose.msra.mxu0 0.0
        %2248 = vmatprep.subr.mxu0 0.0
        %2249 = vmatpush2.xpose.msra.mxu0 0.0
        %2250 = vmatprep.subr.mxu0 0.0
        %2251 = vmatpush2.xpose.msra.mxu0 0.0
        %2252 = vmatprep.subr.mxu0 0.0
        %2253 = vmatpush2.xpose.msra.mxu0 0.0
        %2254 = vmatprep.subr.mxu0 0.0
        %2255 = vmatpush2.xpose.msra.mxu0 0.0
        %2256 = vmatprep.mubr.f32.mxu0 0.0
        %2257 = vmatmul.mubr.f32.gmra.mxu0 %v2036
        %v2258 = vpop.f32.mrf.mxu0
        %v2259 = vadd.f32 %v2184, %v2258
        %v2260 = vpop.f32.mrf.mxu0
        %2261 = vmatprep.mubr.f32.mxu0 0.0
        %2262 = vmatmul.mubr.f32.gmra.mxu0 %v2041
        %v2263 = vpop.f32.mrf.mxu0
        %v2264 = vadd.f32 %v2189, %v2263
        %v2265 = vpop.f32.mrf.mxu0
        %2266 = vdwg.mxu0
        %v2267 = vadd.f32 %v2030, %v2259
        %v2268 = vadd.f32 %v2031, %v2264
        %2269 = vst [vmem:[#allocation2] sm:$0xff] %v2267
        %2270 = vst [vmem:[#allocation2 + $0x8] sm:$0xff] %v2268
        %v2271 = vmul.f32 %v1950, %v1950
        %v2272 = vmul.f32 %v1951, %v1951
        %v2273 = vmul.f32 %v1952, %v1952
        %v2274 = vmul.f32 %v1953, %v1953
        %v2275 = vmul.f32 %v1954, %v1954
        %v2276 = vmul.f32 %v1955, %v1955
        %v2277 = vmul.f32 %v1956, %v1956
        %v2278 = vmul.f32 %v1957, %v1957
        %v2279 = vmul.f32 %v1958, %v1958
        %v2280 = vmul.f32 %v1959, %v1959
        %v2281 = vmul.f32 %v1960, %v1960
        %v2282 = vmul.f32 %v1961, %v1961
        %v2283 = vmul.f32 %v1962, %v1962
        %v2284 = vmul.f32 %v1963, %v1963
        %v2285 = vmul.f32 %v1964, %v1964
        %v2286 = vmul.f32 %v1965, %v1965
        %v2287 = vmul.f32 %v1966, %v1966
        %v2288 = vmul.f32 %v1967, %v1967
        %v2289 = vmul.f32 %v1968, %v1968
        %v2290 = vmul.f32 %v1969, %v1969
        %v2291 = vmul.f32 %v1970, %v1970
        %v2292 = vmul.f32 %v1971, %v1971
        %v2293 = vmul.f32 %v1972, %v1972
        %v2294 = vmul.f32 %v1973, %v1973
        %v2295 = vmul.f32 %v1974, %v1974
        %v2296 = vmul.f32 %v1975, %v1975
        %v2297 = vmul.f32 %v1976, %v1976
        %v2298 = vmul.f32 %v1977, %v1977
        %v2299 = vmul.f32 %v1978, %v1978
        %v2300 = vmul.f32 %v1979, %v1979
        %v2301 = vmul.f32 %v1980, %v1980
        %v2302 = vmul.f32 %v1981, %v1981
        %v2303 = vmul.f32 %v1982, %v1982
        %v2304 = vmul.f32 %v1983, %v1983
        %v2305 = vmul.f32 %v1984, %v1984
        %v2306 = vmul.f32 %v1985, %v1985
        %v2307 = vmul.f32 %v1986, %v1986
        %v2308 = vmul.f32 %v1987, %v1987
        %v2309 = vmul.f32 %v1988, %v1988
        %v2310 = vmul.f32 %v1989, %v1989
        %v2311 = vmul.f32 %v1990, %v1990
        %v2312 = vmul.f32 %v1991, %v1991
        %v2313 = vmul.f32 %v1992, %v1992
        %v2314 = vmul.f32 %v1993, %v1993
        %v2315 = vmul.f32 %v1994, %v1994
        %v2316 = vmul.f32 %v1995, %v1995
        %v2317 = vmul.f32 %v1996, %v1996
        %v2318 = vmul.f32 %v1997, %v1997
        %v2319 = vmul.f32 %v1998, %v1998
        %v2320 = vmul.f32 %v1999, %v1999
        %v2321 = vmul.f32 %v2000, %v2000
        %v2322 = vmul.f32 %v2001, %v2001
        %v2323 = vmul.f32 %v2002, %v2002
        %v2324 = vmul.f32 %v2003, %v2003
        %v2325 = vmul.f32 %v2004, %v2004
        %v2326 = vmul.f32 %v2005, %v2005
        %v2327 = vmul.f32 %v2006, %v2006
        %v2328 = vmul.f32 %v2007, %v2007
        %v2329 = vmul.f32 %v2008, %v2008
        %v2330 = vmul.f32 %v2009, %v2009
        %v2331 = vmul.f32 %v2010, %v2010
        %v2332 = vmul.f32 %v2011, %v2011
        %v2333 = vmul.f32 %v2012, %v2012
        %v2334 = vmul.f32 %v2013, %v2013
        %v2335 = vmul.f32 %v2014, %v2014
        %v2336 = vmul.f32 %v2015, %v2015
        %v2337 = vmul.f32 %v2016, %v2016
        %v2338 = vmul.f32 %v2017, %v2017
        %v2339 = vmul.f32 %v2018, %v2018
        %v2340 = vmul.f32 %v2019, %v2019
        %v2341 = vmul.f32 %v2020, %v2020
        %v2342 = vmul.f32 %v2021, %v2021
        %v2343 = vmul.f32 %v2022, %v2022
        %v2344 = vmul.f32 %v2023, %v2023
        %v2345 = vmul.f32 %v2024, %v2024
        %v2346 = vmul.f32 %v2025, %v2025
        %v2347 = vmul.f32 %v2026, %v2026
        %v2348 = vmul.f32 %v2027, %v2027
        %v2349 = vmul.f32 %v2028, %v2028
        %v2350 = vmul.f32 %v2029, %v2029
        %v2351 = vadd.f32 %v2271, %v2272
        %v2352 = vadd.f32 %v2351, %v2273
        %v2353 = vadd.f32 %v2352, %v2274
        %v2354 = vadd.f32 %v2353, %v2275
        %v2355 = vadd.f32 %v2354, %v2276
        %v2356 = vadd.f32 %v2355, %v2277
        %v2357 = vadd.f32 %v2356, %v2278
        %v2358 = vadd.f32 %v2357, %v2279
        %v2359 = vadd.f32 %v2358, %v2280
        %v2360 = vadd.f32 %v2359, %v2281
        %v2361 = vadd.f32 %v2360, %v2282
        %v2362 = vadd.f32 %v2361, %v2283
        %v2363 = vadd.f32 %v2362, %v2284
        %v2364 = vadd.f32 %v2363, %v2285
        %v2365 = vadd.f32 %v2364, %v2286
        %v2366 = vadd.f32 %v2365, %v2287
        %v2367 = vadd.f32 %v2366, %v2288
        %v2368 = vadd.f32 %v2367, %v2289
        %v2369 = vadd.f32 %v2368, %v2290
        %v2370 = vadd.f32 %v2369, %v2291
        %v2371 = vadd.f32 %v2370, %v2292
        %v2372 = vadd.f32 %v2371, %v2293
        %v2373 = vadd.f32 %v2372, %v2294
        %v2374 = vadd.f32 %v2373, %v2295
        %v2375 = vadd.f32 %v2374, %v2296
        %v2376 = vadd.f32 %v2375, %v2297
        %v2377 = vadd.f32 %v2376, %v2298
        %v2378 = vadd.f32 %v2377, %v2299
        %v2379 = vadd.f32 %v2378, %v2300
        %v2380 = vadd.f32 %v2379, %v2301
        %v2381 = vadd.f32 %v2380, %v2302
        %v2382 = vadd.f32 %v2381, %v2303
        %v2383 = vadd.f32 %v2382, %v2304
        %v2384 = vadd.f32 %v2383, %v2305
        %v2385 = vadd.f32 %v2384, %v2306
        %v2386 = vadd.f32 %v2385, %v2307
        %v2387 = vadd.f32 %v2386, %v2308
        %v2388 = vadd.f32 %v2387, %v2309
        %v2389 = vadd.f32 %v2388, %v2310
        %v2390 = vadd.f32 %v2389, %v2311
        %v2391 = vadd.f32 %v2390, %v2312
        %v2392 = vadd.f32 %v2391, %v2313
        %v2393 = vadd.f32 %v2392, %v2314
        %v2394 = vadd.f32 %v2393, %v2315
        %v2395 = vadd.f32 %v2394, %v2316
        %v2396 = vadd.f32 %v2395, %v2317
        %v2397 = vadd.f32 %v2396, %v2318
        %v2398 = vadd.f32 %v2397, %v2319
        %v2399 = vadd.f32 %v2398, %v2320
        %v2400 = vadd.f32 %v2399, %v2321
        %v2401 = vadd.f32 %v2400, %v2322
        %v2402 = vadd.f32 %v2401, %v2323
        %v2403 = vadd.f32 %v2402, %v2324
        %v2404 = vadd.f32 %v2403, %v2325
        %v2405 = vadd.f32 %v2404, %v2326
        %v2406 = vadd.f32 %v2405, %v2327
        %v2407 = vadd.f32 %v2406, %v2328
        %v2408 = vadd.f32 %v2407, %v2329
        %v2409 = vadd.f32 %v2408, %v2330
        %v2410 = vadd.f32 %v2409, %v2331
        %v2411 = vadd.f32 %v2410, %v2332
        %v2412 = vadd.f32 %v2411, %v2333
        %v2413 = vadd.f32 %v2412, %v2334
        %v2414 = vadd.f32 %v2413, %v2335
        %v2415 = vadd.f32 %v2414, %v2336
        %v2416 = vadd.f32 %v2415, %v2337
        %v2417 = vadd.f32 %v2416, %v2338
        %v2418 = vadd.f32 %v2417, %v2339
        %v2419 = vadd.f32 %v2418, %v2340
        %v2420 = vadd.f32 %v2419, %v2341
        %v2421 = vadd.f32 %v2420, %v2342
        %v2422 = vadd.f32 %v2421, %v2343
        %v2423 = vadd.f32 %v2422, %v2344
        %v2424 = vadd.f32 %v2423, %v2345
        %v2425 = vadd.f32 %v2424, %v2346
        %v2426 = vadd.f32 %v2425, %v2347
        %v2427 = vadd.f32 %v2426, %v2348
        %v2428 = vadd.f32 %v2427, %v2349
        %v2429 = vadd.f32 %v2428, %v2350
        %2430 = vadd.xlane.f32.xlu0 %v2429
        %v2431 = vpop.xlane.xlu0 %2430
        %v2432 = vrot.slane %v2431, 4
        %v2433 = vadd.f32 %v2431, %v2432
        %v2434 = vrot.slane %v2433, 2
        %v2435 = vadd.f32 %v2433, %v2434
        %v2436 = vrot.slane %v2435, 1
        %v2437 = vadd.f32 %v2435, %v2436
        %s2438 = vtos %v2437
        %s2439 = smul.f32 %s2438, -0.5
        %v2440 = vmul.f32 %v510, %v510
        %v2441 = vmul.f32 %v511, %v511
        %v2442 = vmul.f32 %v512, %v512
        %v2443 = vmul.f32 %v513, %v513
        %v2444 = vmul.f32 %v514, %v514
        %v2445 = vmul.f32 %v515, %v515
        %v2446 = vmul.f32 %v516, %v516
        %v2447 = vmul.f32 %v517, %v517
        %v2448 = vmul.f32 %v518, %v518
        %v2449 = vmul.f32 %v519, %v519
        %v2450 = vmul.f32 %v520, %v520
        %v2451 = vmul.f32 %v521, %v521
        %v2452 = vmul.f32 %v522, %v522
        %v2453 = vmul.f32 %v523, %v523
        %v2454 = vmul.f32 %v524, %v524
        %v2455 = vmul.f32 %v525, %v525
        %v2456 = vmul.f32 %v526, %v526
        %v2457 = vmul.f32 %v527, %v527
        %v2458 = vmul.f32 %v528, %v528
        %v2459 = vmul.f32 %v529, %v529
        %v2460 = vmul.f32 %v530, %v530
        %v2461 = vmul.f32 %v531, %v531
        %v2462 = vmul.f32 %v532, %v532
        %v2463 = vmul.f32 %v533, %v533
        %v2464 = vmul.f32 %v534, %v534
        %v2465 = vmul.f32 %v535, %v535
        %v2466 = vmul.f32 %v536, %v536
        %v2467 = vmul.f32 %v537, %v537
        %v2468 = vmul.f32 %v538, %v538
        %v2469 = vmul.f32 %v539, %v539
        %v2470 = vmul.f32 %v540, %v540
        %v2471 = vmul.f32 %v541, %v541
        %v2472 = vmul.f32 %v542, %v542
        %v2473 = vmul.f32 %v543, %v543
        %v2474 = vmul.f32 %v544, %v544
        %v2475 = vmul.f32 %v545, %v545
        %v2476 = vmul.f32 %v546, %v546
        %v2477 = vmul.f32 %v547, %v547
        %v2478 = vmul.f32 %v548, %v548
        %v2479 = vmul.f32 %v549, %v549
        %v2480 = vmul.f32 %v550, %v550
        %v2481 = vmul.f32 %v551, %v551
        %v2482 = vmul.f32 %v552, %v552
        %v2483 = vmul.f32 %v553, %v553
        %v2484 = vmul.f32 %v554, %v554
        %v2485 = vmul.f32 %v555, %v555
        %v2486 = vmul.f32 %v556, %v556
        %v2487 = vmul.f32 %v557, %v557
        %v2488 = vmul.f32 %v558, %v558
        %v2489 = vmul.f32 %v559, %v559
        %v2490 = vmul.f32 %v560, %v560
        %v2491 = vmul.f32 %v561, %v561
        %v2492 = vmul.f32 %v562, %v562
        %v2493 = vmul.f32 %v563, %v563
        %v2494 = vmul.f32 %v564, %v564
        %v2495 = vmul.f32 %v565, %v565
        %v2496 = vmul.f32 %v566, %v566
        %v2497 = vmul.f32 %v567, %v567
        %v2498 = vmul.f32 %v568, %v568
        %v2499 = vmul.f32 %v569, %v569
        %v2500 = vmul.f32 %v570, %v570
        %v2501 = vmul.f32 %v571, %v571
        %v2502 = vmul.f32 %v572, %v572
        %v2503 = vmul.f32 %v573, %v573
        %v2504 = vmul.f32 %v574, %v574
        %v2505 = vmul.f32 %v575, %v575
        %v2506 = vmul.f32 %v576, %v576
        %v2507 = vmul.f32 %v577, %v577
        %v2508 = vmul.f32 %v578, %v578
        %v2509 = vmul.f32 %v579, %v579
        %v2510 = vmul.f32 %v580, %v580
        %v2511 = vmul.f32 %v581, %v581
        %v2512 = vmul.f32 %v582, %v582
        %v2513 = vmul.f32 %v583, %v583
        %v2514 = vmul.f32 %v584, %v584
        %v2515 = vmul.f32 %v585, %v585
        %v2516 = vmul.f32 %v586, %v586
        %v2517 = vmul.f32 %v587, %v587
        %v2518 = vmul.f32 %v588, %v588
        %v2519 = vmul.f32 %v589, %v589
        %v2520 = vmul.f32 %v2440, -0.5
        %v2521 = vmul.f32 %v2441, -0.5
        %v2522 = vmul.f32 %v2442, -0.5
        %v2523 = vmul.f32 %v2443, -0.5
        %v2524 = vmul.f32 %v2444, -0.5
        %v2525 = vmul.f32 %v2445, -0.5
        %v2526 = vmul.f32 %v2446, -0.5
        %v2527 = vmul.f32 %v2447, -0.5
        %v2528 = vmul.f32 %v2448, -0.5
        %v2529 = vmul.f32 %v2449, -0.5
        %v2530 = vmul.f32 %v2450, -0.5
        %v2531 = vmul.f32 %v2451, -0.5
        %v2532 = vmul.f32 %v2452, -0.5
        %v2533 = vmul.f32 %v2453, -0.5
        %v2534 = vmul.f32 %v2454, -0.5
        %v2535 = vmul.f32 %v2455, -0.5
        %v2536 = vmul.f32 %v2456, -0.5
        %v2537 = vmul.f32 %v2457, -0.5
        %v2538 = vmul.f32 %v2458, -0.5
        %v2539 = vmul.f32 %v2459, -0.5
        %v2540 = vmul.f32 %v2460, -0.5
        %v2541 = vmul.f32 %v2461, -0.5
        %v2542 = vmul.f32 %v2462, -0.5
        %v2543 = vmul.f32 %v2463, -0.5
        %v2544 = vmul.f32 %v2464, -0.5
        %v2545 = vmul.f32 %v2465, -0.5
        %v2546 = vmul.f32 %v2466, -0.5
        %v2547 = vmul.f32 %v2467, -0.5
        %v2548 = vmul.f32 %v2468, -0.5
        %v2549 = vmul.f32 %v2469, -0.5
        %v2550 = vmul.f32 %v2470, -0.5
        %v2551 = vmul.f32 %v2471, -0.5
        %v2552 = vmul.f32 %v2472, -0.5
        %v2553 = vmul.f32 %v2473, -0.5
        %v2554 = vmul.f32 %v2474, -0.5
        %v2555 = vmul.f32 %v2475, -0.5
        %v2556 = vmul.f32 %v2476, -0.5
        %v2557 = vmul.f32 %v2477, -0.5
        %v2558 = vmul.f32 %v2478, -0.5
        %v2559 = vmul.f32 %v2479, -0.5
        %v2560 = vmul.f32 %v2480, -0.5
        %v2561 = vmul.f32 %v2481, -0.5
        %v2562 = vmul.f32 %v2482, -0.5
        %v2563 = vmul.f32 %v2483, -0.5
        %v2564 = vmul.f32 %v2484, -0.5
        %v2565 = vmul.f32 %v2485, -0.5
        %v2566 = vmul.f32 %v2486, -0.5
        %v2567 = vmul.f32 %v2487, -0.5
        %v2568 = vmul.f32 %v2488, -0.5
        %v2569 = vmul.f32 %v2489, -0.5
        %v2570 = vmul.f32 %v2490, -0.5
        %v2571 = vmul.f32 %v2491, -0.5
        %v2572 = vmul.f32 %v2492, -0.5
        %v2573 = vmul.f32 %v2493, -0.5
        %v2574 = vmul.f32 %v2494, -0.5
        %v2575 = vmul.f32 %v2495, -0.5
        %v2576 = vmul.f32 %v2496, -0.5
        %v2577 = vmul.f32 %v2497, -0.5
        %v2578 = vmul.f32 %v2498, -0.5
        %v2579 = vmul.f32 %v2499, -0.5
        %v2580 = vmul.f32 %v2500, -0.5
        %v2581 = vmul.f32 %v2501, -0.5
        %v2582 = vmul.f32 %v2502, -0.5
        %v2583 = vmul.f32 %v2503, -0.5
        %v2584 = vmul.f32 %v2504, -0.5
        %v2585 = vmul.f32 %v2505, -0.5
        %v2586 = vmul.f32 %v2506, -0.5
        %v2587 = vmul.f32 %v2507, -0.5
        %v2588 = vmul.f32 %v2508, -0.5
        %v2589 = vmul.f32 %v2509, -0.5
        %v2590 = vmul.f32 %v2510, -0.5
        %v2591 = vmul.f32 %v2511, -0.5
        %v2592 = vmul.f32 %v2512, -0.5
        %v2593 = vmul.f32 %v2513, -0.5
        %v2594 = vmul.f32 %v2514, -0.5
        %v2595 = vmul.f32 %v2515, -0.5
        %v2596 = vmul.f32 %v2516, -0.5
        %v2597 = vmul.f32 %v2517, -0.5
        %v2598 = vmul.f32 %v2518, -0.5
        %v2599 = vmul.f32 %v2519, -0.5
        %v2600 = vlog2.pop %v1710
        %v2601 = vmul.f32 %v2600, 0.6931472
        %v2602 = vlog2.pop %v1711
        %v2603 = vmul.f32 %v2602, 0.6931472
        %v2604 = vlog2.pop %v1712
        %v2605 = vmul.f32 %v2604, 0.6931472
        %v2606 = vlog2.pop %v1713
        %v2607 = vmul.f32 %v2606, 0.6931472
        %v2608 = vlog2.pop %v1714
        %v2609 = vmul.f32 %v2608, 0.6931472
        %v2610 = vlog2.pop %v1715
        %v2611 = vmul.f32 %v2610, 0.6931472
        %v2612 = vlog2.pop %v1716
        %v2613 = vmul.f32 %v2612, 0.6931472
        %v2614 = vlog2.pop %v1717
        %v2615 = vmul.f32 %v2614, 0.6931472
        %v2616 = vlog2.pop %v1718
        %v2617 = vmul.f32 %v2616, 0.6931472
        %v2618 = vlog2.pop %v1719
        %v2619 = vmul.f32 %v2618, 0.6931472
        %v2620 = vlog2.pop %v1720
        %v2621 = vmul.f32 %v2620, 0.6931472
        %v2622 = vlog2.pop %v1721
        %v2623 = vmul.f32 %v2622, 0.6931472
        %v2624 = vlog2.pop %v1722
        %v2625 = vmul.f32 %v2624, 0.6931472
        %v2626 = vlog2.pop %v1723
        %v2627 = vmul.f32 %v2626, 0.6931472
        %v2628 = vlog2.pop %v1724
        %v2629 = vmul.f32 %v2628, 0.6931472
        %v2630 = vlog2.pop %v1725
        %v2631 = vmul.f32 %v2630, 0.6931472
        %v2632 = vlog2.pop %v1726
        %v2633 = vmul.f32 %v2632, 0.6931472
        %v2634 = vlog2.pop %v1727
        %v2635 = vmul.f32 %v2634, 0.6931472
        %v2636 = vlog2.pop %v1728
        %v2637 = vmul.f32 %v2636, 0.6931472
        %v2638 = vlog2.pop %v1729
        %v2639 = vmul.f32 %v2638, 0.6931472
        %v2640 = vlog2.pop %v1730
        %v2641 = vmul.f32 %v2640, 0.6931472
        %v2642 = vlog2.pop %v1731
        %v2643 = vmul.f32 %v2642, 0.6931472
        %v2644 = vlog2.pop %v1732
        %v2645 = vmul.f32 %v2644, 0.6931472
        %v2646 = vlog2.pop %v1733
        %v2647 = vmul.f32 %v2646, 0.6931472
        %v2648 = vlog2.pop %v1734
        %v2649 = vmul.f32 %v2648, 0.6931472
        %v2650 = vlog2.pop %v1735
        %v2651 = vmul.f32 %v2650, 0.6931472
        %v2652 = vlog2.pop %v1736
        %v2653 = vmul.f32 %v2652, 0.6931472
        %v2654 = vlog2.pop %v1737
        %v2655 = vmul.f32 %v2654, 0.6931472
        %v2656 = vlog2.pop %v1738
        %v2657 = vmul.f32 %v2656, 0.6931472
        %v2658 = vlog2.pop %v1739
        %v2659 = vmul.f32 %v2658, 0.6931472
        %v2660 = vlog2.pop %v1740
        %v2661 = vmul.f32 %v2660, 0.6931472
        %v2662 = vlog2.pop %v1741
        %v2663 = vmul.f32 %v2662, 0.6931472
        %v2664 = vlog2.pop %v1742
        %v2665 = vmul.f32 %v2664, 0.6931472
        %v2666 = vlog2.pop %v1743
        %v2667 = vmul.f32 %v2666, 0.6931472
        %v2668 = vlog2.pop %v1744
        %v2669 = vmul.f32 %v2668, 0.6931472
        %v2670 = vlog2.pop %v1745
        %v2671 = vmul.f32 %v2670, 0.6931472
        %v2672 = vlog2.pop %v1746
        %v2673 = vmul.f32 %v2672, 0.6931472
        %v2674 = vlog2.pop %v1747
        %v2675 = vmul.f32 %v2674, 0.6931472
        %v2676 = vlog2.pop %v1748
        %v2677 = vmul.f32 %v2676, 0.6931472
        %v2678 = vlog2.pop %v1749
        %v2679 = vmul.f32 %v2678, 0.6931472
        %v2680 = vlog2.pop %v1750
        %v2681 = vmul.f32 %v2680, 0.6931472
        %v2682 = vlog2.pop %v1751
        %v2683 = vmul.f32 %v2682, 0.6931472
        %v2684 = vlog2.pop %v1752
        %v2685 = vmul.f32 %v2684, 0.6931472
        %v2686 = vlog2.pop %v1753
        %v2687 = vmul.f32 %v2686, 0.6931472
        %v2688 = vlog2.pop %v1754
        %v2689 = vmul.f32 %v2688, 0.6931472
        %v2690 = vlog2.pop %v1755
        %v2691 = vmul.f32 %v2690, 0.6931472
        %v2692 = vlog2.pop %v1756
        %v2693 = vmul.f32 %v2692, 0.6931472
        %v2694 = vlog2.pop %v1757
        %v2695 = vmul.f32 %v2694, 0.6931472
        %v2696 = vlog2.pop %v1758
        %v2697 = vmul.f32 %v2696, 0.6931472
        %v2698 = vlog2.pop %v1759
        %v2699 = vmul.f32 %v2698, 0.6931472
        %v2700 = vlog2.pop %v1760
        %v2701 = vmul.f32 %v2700, 0.6931472
        %v2702 = vlog2.pop %v1761
        %v2703 = vmul.f32 %v2702, 0.6931472
        %v2704 = vlog2.pop %v1762
        %v2705 = vmul.f32 %v2704, 0.6931472
        %v2706 = vlog2.pop %v1763
        %v2707 = vmul.f32 %v2706, 0.6931472
        %v2708 = vlog2.pop %v1764
        %v2709 = vmul.f32 %v2708, 0.6931472
        %v2710 = vlog2.pop %v1765
        %v2711 = vmul.f32 %v2710, 0.6931472
        %v2712 = vlog2.pop %v1766
        %v2713 = vmul.f32 %v2712, 0.6931472
        %v2714 = vlog2.pop %v1767
        %v2715 = vmul.f32 %v2714, 0.6931472
        %v2716 = vlog2.pop %v1768
        %v2717 = vmul.f32 %v2716, 0.6931472
        %v2718 = vlog2.pop %v1769
        %v2719 = vmul.f32 %v2718, 0.6931472
        %v2720 = vlog2.pop %v1770
        %v2721 = vmul.f32 %v2720, 0.6931472
        %v2722 = vlog2.pop %v1771
        %v2723 = vmul.f32 %v2722, 0.6931472
        %v2724 = vlog2.pop %v1772
        %v2725 = vmul.f32 %v2724, 0.6931472
        %v2726 = vlog2.pop %v1773
        %v2727 = vmul.f32 %v2726, 0.6931472
        %v2728 = vlog2.pop %v1774
        %v2729 = vmul.f32 %v2728, 0.6931472
        %v2730 = vlog2.pop %v1775
        %v2731 = vmul.f32 %v2730, 0.6931472
        %v2732 = vlog2.pop %v1776
        %v2733 = vmul.f32 %v2732, 0.6931472
        %v2734 = vlog2.pop %v1777
        %v2735 = vmul.f32 %v2734, 0.6931472
        %v2736 = vlog2.pop %v1778
        %v2737 = vmul.f32 %v2736, 0.6931472
        %v2738 = vlog2.pop %v1779
        %v2739 = vmul.f32 %v2738, 0.6931472
        %v2740 = vlog2.pop %v1780
        %v2741 = vmul.f32 %v2740, 0.6931472
        %v2742 = vlog2.pop %v1781
        %v2743 = vmul.f32 %v2742, 0.6931472
        %v2744 = vlog2.pop %v1782
        %v2745 = vmul.f32 %v2744, 0.6931472
        %v2746 = vlog2.pop %v1783
        %v2747 = vmul.f32 %v2746, 0.6931472
        %v2748 = vlog2.pop %v1784
        %v2749 = vmul.f32 %v2748, 0.6931472
        %v2750 = vlog2.pop %v1785
        %v2751 = vmul.f32 %v2750, 0.6931472
        %v2752 = vlog2.pop %v1786
        %v2753 = vmul.f32 %v2752, 0.6931472
        %v2754 = vlog2.pop %v1787
        %v2755 = vmul.f32 %v2754, 0.6931472
        %v2756 = vlog2.pop %v1788
        %v2757 = vmul.f32 %v2756, 0.6931472
        %v2758 = vlog2.pop %v1789
        %v2759 = vmul.f32 %v2758, 0.6931472
        %v2760 = vsub.f32 %v2520, %v2601
        %v2761 = vsub.f32 %v2521, %v2603
        %v2762 = vsub.f32 %v2522, %v2605
        %v2763 = vsub.f32 %v2523, %v2607
        %v2764 = vsub.f32 %v2524, %v2609
        %v2765 = vsub.f32 %v2525, %v2611
        %v2766 = vsub.f32 %v2526, %v2613
        %v2767 = vsub.f32 %v2527, %v2615
        %v2768 = vsub.f32 %v2528, %v2617
        %v2769 = vsub.f32 %v2529, %v2619
        %v2770 = vsub.f32 %v2530, %v2621
        %v2771 = vsub.f32 %v2531, %v2623
        %v2772 = vsub.f32 %v2532, %v2625
        %v2773 = vsub.f32 %v2533, %v2627
        %v2774 = vsub.f32 %v2534, %v2629
        %v2775 = vsub.f32 %v2535, %v2631
        %v2776 = vsub.f32 %v2536, %v2633
        %v2777 = vsub.f32 %v2537, %v2635
        %v2778 = vsub.f32 %v2538, %v2637
        %v2779 = vsub.f32 %v2539, %v2639
        %v2780 = vsub.f32 %v2540, %v2641
        %v2781 = vsub.f32 %v2541, %v2643
        %v2782 = vsub.f32 %v2542, %v2645
        %v2783 = vsub.f32 %v2543, %v2647
        %v2784 = vsub.f32 %v2544, %v2649
        %v2785 = vsub.f32 %v2545, %v2651
        %v2786 = vsub.f32 %v2546, %v2653
        %v2787 = vsub.f32 %v2547, %v2655
        %v2788 = vsub.f32 %v2548, %v2657
        %v2789 = vsub.f32 %v2549, %v2659
        %v2790 = vsub.f32 %v2550, %v2661
        %v2791 = vsub.f32 %v2551, %v2663
        %v2792 = vsub.f32 %v2552, %v2665
        %v2793 = vsub.f32 %v2553, %v2667
        %v2794 = vsub.f32 %v2554, %v2669
        %v2795 = vsub.f32 %v2555, %v2671
        %v2796 = vsub.f32 %v2556, %v2673
        %v2797 = vsub.f32 %v2557, %v2675
        %v2798 = vsub.f32 %v2558, %v2677
        %v2799 = vsub.f32 %v2559, %v2679
        %v2800 = vsub.f32 %v2560, %v2681
        %v2801 = vsub.f32 %v2561, %v2683
        %v2802 = vsub.f32 %v2562, %v2685
        %v2803 = vsub.f32 %v2563, %v2687
        %v2804 = vsub.f32 %v2564, %v2689
        %v2805 = vsub.f32 %v2565, %v2691
        %v2806 = vsub.f32 %v2566, %v2693
        %v2807 = vsub.f32 %v2567, %v2695
        %v2808 = vsub.f32 %v2568, %v2697
        %v2809 = vsub.f32 %v2569, %v2699
        %v2810 = vsub.f32 %v2570, %v2701
        %v2811 = vsub.f32 %v2571, %v2703
        %v2812 = vsub.f32 %v2572, %v2705
        %v2813 = vsub.f32 %v2573, %v2707
        %v2814 = vsub.f32 %v2574, %v2709
        %v2815 = vsub.f32 %v2575, %v2711
        %v2816 = vsub.f32 %v2576, %v2713
        %v2817 = vsub.f32 %v2577, %v2715
        %v2818 = vsub.f32 %v2578, %v2717
        %v2819 = vsub.f32 %v2579, %v2719
        %v2820 = vsub.f32 %v2580, %v2721
        %v2821 = vsub.f32 %v2581, %v2723
        %v2822 = vsub.f32 %v2582, %v2725
        %v2823 = vsub.f32 %v2583, %v2727
        %v2824 = vsub.f32 %v2584, %v2729
        %v2825 = vsub.f32 %v2585, %v2731
        %v2826 = vsub.f32 %v2586, %v2733
        %v2827 = vsub.f32 %v2587, %v2735
        %v2828 = vsub.f32 %v2588, %v2737
        %v2829 = vsub.f32 %v2589, %v2739
        %v2830 = vsub.f32 %v2590, %v2741
        %v2831 = vsub.f32 %v2591, %v2743
        %v2832 = vsub.f32 %v2592, %v2745
        %v2833 = vsub.f32 %v2593, %v2747
        %v2834 = vsub.f32 %v2594, %v2749
        %v2835 = vsub.f32 %v2595, %v2751
        %v2836 = vsub.f32 %v2596, %v2753
        %v2837 = vsub.f32 %v2597, %v2755
        %v2838 = vsub.f32 %v2598, %v2757
        %v2839 = vsub.f32 %v2599, %v2759
        %v2840 = vadd.f32 %v2760, %v2761
        %v2841 = vadd.f32 %v2840, %v2762
        %v2842 = vadd.f32 %v2841, %v2763
        %v2843 = vadd.f32 %v2842, %v2764
        %v2844 = vadd.f32 %v2843, %v2765
        %v2845 = vadd.f32 %v2844, %v2766
        %v2846 = vadd.f32 %v2845, %v2767
        %v2847 = vadd.f32 %v2846, %v2768
        %v2848 = vadd.f32 %v2847, %v2769
        %v2849 = vadd.f32 %v2848, %v2770
        %v2850 = vadd.f32 %v2849, %v2771
        %v2851 = vadd.f32 %v2850, %v2772
        %v2852 = vadd.f32 %v2851, %v2773
        %v2853 = vadd.f32 %v2852, %v2774
        %v2854 = vadd.f32 %v2853, %v2775
        %v2855 = vadd.f32 %v2854, %v2776
        %v2856 = vadd.f32 %v2855, %v2777
        %v2857 = vadd.f32 %v2856, %v2778
        %v2858 = vadd.f32 %v2857, %v2779
        %v2859 = vadd.f32 %v2858, %v2780
        %v2860 = vadd.f32 %v2859, %v2781
        %v2861 = vadd.f32 %v2860, %v2782
        %v2862 = vadd.f32 %v2861, %v2783
        %v2863 = vadd.f32 %v2862, %v2784
        %v2864 = vadd.f32 %v2863, %v2785
        %v2865 = vadd.f32 %v2864, %v2786
        %v2866 = vadd.f32 %v2865, %v2787
        %v2867 = vadd.f32 %v2866, %v2788
        %v2868 = vadd.f32 %v2867, %v2789
        %v2869 = vadd.f32 %v2868, %v2790
        %v2870 = vadd.f32 %v2869, %v2791
        %v2871 = vadd.f32 %v2870, %v2792
        %v2872 = vadd.f32 %v2871, %v2793
        %v2873 = vadd.f32 %v2872, %v2794
        %v2874 = vadd.f32 %v2873, %v2795
        %v2875 = vadd.f32 %v2874, %v2796
        %v2876 = vadd.f32 %v2875, %v2797
        %v2877 = vadd.f32 %v2876, %v2798
        %v2878 = vadd.f32 %v2877, %v2799
        %v2879 = vadd.f32 %v2878, %v2800
        %v2880 = vadd.f32 %v2879, %v2801
        %v2881 = vadd.f32 %v2880, %v2802
        %v2882 = vadd.f32 %v2881, %v2803
        %v2883 = vadd.f32 %v2882, %v2804
        %v2884 = vadd.f32 %v2883, %v2805
        %v2885 = vadd.f32 %v2884, %v2806
        %v2886 = vadd.f32 %v2885, %v2807
        %v2887 = vadd.f32 %v2886, %v2808
        %v2888 = vadd.f32 %v2887, %v2809
        %v2889 = vadd.f32 %v2888, %v2810
        %v2890 = vadd.f32 %v2889, %v2811
        %v2891 = vadd.f32 %v2890, %v2812
        %v2892 = vadd.f32 %v2891, %v2813
        %v2893 = vadd.f32 %v2892, %v2814
        %v2894 = vadd.f32 %v2893, %v2815
        %v2895 = vadd.f32 %v2894, %v2816
        %v2896 = vadd.f32 %v2895, %v2817
        %v2897 = vadd.f32 %v2896, %v2818
        %v2898 = vadd.f32 %v2897, %v2819
        %v2899 = vadd.f32 %v2898, %v2820
        %v2900 = vadd.f32 %v2899, %v2821
        %v2901 = vadd.f32 %v2900, %v2822
        %v2902 = vadd.f32 %v2901, %v2823
        %v2903 = vadd.f32 %v2902, %v2824
        %v2904 = vadd.f32 %v2903, %v2825
        %v2905 = vadd.f32 %v2904, %v2826
        %v2906 = vadd.f32 %v2905, %v2827
        %v2907 = vadd.f32 %v2906, %v2828
        %v2908 = vadd.f32 %v2907, %v2829
        %v2909 = vadd.f32 %v2908, %v2830
        %v2910 = vadd.f32 %v2909, %v2831
        %v2911 = vadd.f32 %v2910, %v2832
        %v2912 = vadd.f32 %v2911, %v2833
        %v2913 = vadd.f32 %v2912, %v2834
        %v2914 = vadd.f32 %v2913, %v2835
        %v2915 = vadd.f32 %v2914, %v2836
        %v2916 = vadd.f32 %v2915, %v2837
        %v2917 = vadd.f32 %v2916, %v2838
        %v2918 = vadd.f32 %v2917, %v2839
        %2919 = vadd.xlane.f32.xlu0 %v2918
        %v2920 = vpop.xlane.xlu0 %2919
        %v2921 = vrot.slane %v2920, 4
        %v2922 = vadd.f32 %v2920, %v2921
        %v2923 = vrot.slane %v2922, 2
        %v2924 = vadd.f32 %v2922, %v2923
        %v2925 = vrot.slane %v2924, 1
        %v2926 = vadd.f32 %v2924, %v2925
        %s2927 = vtos %v2926
        %v2928 = vld [vmem:[%s407] sm:$0xff]
        %v2929 = vstv %s2439
        %v2930 = vadd.f32 %v2928, %v2929
        %2931 = vst [vmem:[%s407] sm:$0xff] %v2930
        %v2932 = vld [vmem:[%s414] sm:$0xff]
        %v2933 = vstv %s2927
        %v2934 = vadd.f32 %v2932, %v2933
        %2935 = vst [vmem:[%s414] sm:$0xff] %v2934
        // Predicated region
        $region57: #{tpu_custom_call.1} parent=35 // pred_check
          %p2936 = pneg %p422
        $region58: #{tpu_custom_call.1} parent=35 // pred_check_branch
          %2938 = sbr.rel (%p2936) target = $region60
        $region59: #{tpu_custom_call.1} parent=35 // pred_region
          %v2939 = vld [vmem:[#allocation2] sm:$0xff]
          %v2940 = vld [vmem:[#allocation2 + $0x8] sm:$0xff]
          %2941 = vst [vmem:[%s400] sm:$0xff] %v2939
          %2942 = vst [vmem:[%s400 + $0x8] sm:$0xff] %v2940
        $region60: #{tpu_custom_call.1} parent=35 // pred_fallthru
          _
        %s2943 = sand.u32 %s161, 1
        %s2944 = scalar_lea.sflag [#allocation5], %s2943
        %s2945 = sand.u32 %s161, 1
        %s2946 = smul.addr %s2945, 16
        %s2947 = scalar_lea.vmem [#allocation11], %s2946
        %s2948 = sand.u32 %s31, 1
        %s2949 = scalar_lea.sflag [#allocation13], %s2948
        %s2950 = sand.u32 %s187, 1
        %s2951 = smul.addr %s2950, 8
        %s2952 = scalar_lea.vmem [#allocation12], %s2951
        %s2953 = sand.u32 %s31, 1
        %s2954 = scalar_lea.sflag [#allocation13], %s2953
        %s2955 = sand.u32 %s213, 1
        %s2956 = smul.addr %s2955, 8
        %s2957 = scalar_lea.vmem [#allocation14], %s2956
        // Predicated region
        $region61: #{tpu_custom_call.1} parent=35 // pred_check
          %p2958 = pneg %p171
        $region62: #{tpu_custom_call.1} parent=35 // pred_check_branch
          %2960 = sbr.rel (%p2958) target = $region64
        $region63: #{tpu_custom_call.1} parent=35 // pred_region
          %s2962 = ssub.s32 256, 256
          %2963 = vsyncadd %s2944, %s2962
          %s2964 = smul.addr %s35, 128
          %s2965 = scalar_lea.hbm %s4, %s2964
          %s2966 = sshll.u32 %s2947, 4
          %s2967 = int_to_ptr.vmem [resolvable:$true] %s2966
          %2972 = dma.vmem_to_hbm [thread:$0]  %s2967, 256, %s2965, %s2944, 128, 384, 8
        $region64: #{tpu_custom_call.1} parent=35 // pred_fallthru
          _
        // Predicated region
        $region65: #{tpu_custom_call.1} parent=35 // pred_check
          %p2973 = pneg %p197
        $region66: #{tpu_custom_call.1} parent=35 // pred_check_branch
          %2975 = sbr.rel (%p2973) target = $region68
        $region67: #{tpu_custom_call.1} parent=35 // pred_region
          %s2977 = ssub.s32 128, 128
          %2978 = vsyncadd %s2949, %s2977
          %s2979 = smul.addr %s35, 128
          %s2980 = scalar_lea.hbm %s5, %s2979
          %s2982 = sshll.u32 %s2952, 4
          %s2983 = int_to_ptr.vmem [resolvable:$true] %s2982
          %2985 = dma.vmem_to_hbm [thread:$0]  %s2983, 128, %s2980, %s2949
        $region68: #{tpu_custom_call.1} parent=35 // pred_fallthru
          _
        // Predicated region
        $region69: #{tpu_custom_call.1} parent=35 // pred_check
          %p2986 = pneg %p223
        $region70: #{tpu_custom_call.1} parent=35 // pred_check_branch
          %2988 = sbr.rel (%p2986) target = $region72
        $region71: #{tpu_custom_call.1} parent=35 // pred_region
          %s2990 = ssub.s32 128, 128
          %2991 = vsyncadd %s2954, %s2990
          %s2992 = smul.addr %s35, 128
          %s2993 = scalar_lea.hbm %s6, %s2992
          %s2995 = sshll.u32 %s2957, 4
          %s2996 = int_to_ptr.vmem [resolvable:$true] %s2995
          %2998 = dma.vmem_to_hbm [thread:$0]  %s2996, 128, %s2993, %s2954
        $region72: #{tpu_custom_call.1} parent=35 // pred_fallthru
          _
      $region36: #{tpu_custom_call.1} parent=5 // pred_fallthru
        _
      %p2999 = scmp.le.s32.totalorder 2, %s26
      // Predicated region
      $region73: #{tpu_custom_call.1} parent=5 // pred_check
        %p3000 = pneg %p2999
      $region74: #{tpu_custom_call.1} parent=5 // pred_check_branch
        %3002 = sbr.rel (%p3000) target = $region76
      $region75: #{tpu_custom_call.1} parent=5 // pred_region
        %s3003 = ssub.s32 %s26, 2
        // Predicated region
        $region77: #{tpu_custom_call.1} parent=75 // pred_check
          %p3004 = pneg %p177
        $region78: #{tpu_custom_call.1} parent=75 // pred_check_branch
          %3006 = sbr.rel (%p3004) target = $region80
        $region79: #{tpu_custom_call.1} parent=75 // pred_region
          %s3007 = sand.u32 %s162, 1
          %s3008 = scalar_lea.sflag [#allocation5], %s3007
          %s3009 = sand.u32 %s162, 1
          %s3010 = smul.addr %s3009, 16
          %s3011 = scalar_lea.vmem [#allocation11], %s3010
          %3012 = dma.done %s3008, 256
        $region80: #{tpu_custom_call.1} parent=75 // pred_fallthru
          _
        // Predicated region
        $region81: #{tpu_custom_call.1} parent=75 // pred_check
          %p3013 = pneg %p203
        $region82: #{tpu_custom_call.1} parent=75 // pred_check_branch
          %3015 = sbr.rel (%p3013) target = $region84
        $region83: #{tpu_custom_call.1} parent=75 // pred_region
          %s3016 = sand.u32 %s32, 1
          %s3017 = scalar_lea.sflag [#allocation13], %s3016
          %s3018 = sand.u32 %s188, 1
          %s3019 = smul.addr %s3018, 8
          %s3020 = scalar_lea.vmem [#allocation12], %s3019
          %3021 = dma.done %s3017, 128
        $region84: #{tpu_custom_call.1} parent=75 // pred_fallthru
          _
        // Predicated region
        $region85: #{tpu_custom_call.1} parent=75 // pred_check
          %p3022 = pneg %p229
        $region86: #{tpu_custom_call.1} parent=75 // pred_check_branch
          %3024 = sbr.rel (%p3022) target = $region88
        $region87: #{tpu_custom_call.1} parent=75 // pred_region
          %s3025 = sand.u32 %s32, 1
          %s3026 = scalar_lea.sflag [#allocation13], %s3025
          %s3027 = sand.u32 %s214, 1
          %s3028 = smul.addr %s3027, 8
          %s3029 = scalar_lea.vmem [#allocation14], %s3028
          %3030 = dma.done %s3026, 128
        $region88: #{tpu_custom_call.1} parent=75 // pred_fallthru
          _
      $region76: #{tpu_custom_call.1} parent=5 // pred_fallthru
        _
    $region6: #{tpu_custom_call.1} parent=1 // loop_footer
      %s30 = sadd.s32 1, %s26
    $region7: #{tpu_custom_call.1} parent=1 // loop_footer_branch
      %25 = sbr.rel target = $region3
    $region8: #{tpu_custom_call.1} parent=1 // loop_exit
      _
    %3031 = vsyncpa [#allocation4], 1
    %s3032 = scalar_lea.sflag [#allocation4], 1
    %3033 = vsyncpa %s3032, 1
    %3034 = vsyncpa [#allocation7], 1
    %s3035 = scalar_lea.sflag [#allocation7], 1
    %3036 = vsyncpa %s3035, 1
    %3037 = vsyncpa [#allocation10], 1
    %s3038 = scalar_lea.sflag [#allocation10], 1
    %3039 = vsyncpa %s3038, 1
    %3040 = vsyncpa [#allocation5], 1
    %s3041 = scalar_lea.sflag [#allocation5], 1
    %3042 = vsyncpa %s3041, 1
    %3043 = vsyncpa [#allocation13], 1
    %s3044 = scalar_lea.sflag [#allocation13], 1
    %3045 = vsyncpa %s3044, 1

</llo_original>
